<compile_context>
chip_gen: v7x
topology: tpu7x:2x2x1
jax: 0.10.0
libtpu: 0.0.40
codegen_flags: <defaults>
</compile_context>

<pallas_src>
import functools
import math

import jax
import jax.numpy as jnp
from jax.experimental import pallas as pl
from jax.experimental.pallas import tpu as pltpu


# ---------------------------------------------------------------------------
# Front-end kernels (time-norm + subsampling matmuls)
# ---------------------------------------------------------------------------

def _time_norm_kernel(x_ref, o_ref):
    # x block: (1, T, F); reduce over the time (sublane) axis in-kernel.
    x = x_ref[...]
    n = x.shape[1]
    mean = jnp.mean(x, axis=1, keepdims=True)
    var = jnp.sum((x - mean) ** 2, axis=1, keepdims=True) / (n - 1)  # unbiased (torch.std)
    std = jnp.sqrt(var)
    o_ref[...] = (x - mean) / (std + 1e-5)


def time_normalize(x):
    # matches: (x - x.mean(dim=1, keepdim=True)) / (x.std(dim=1, keepdim=True) + 1e-5)
    B, T, F = x.shape
    return pl.pallas_call(
        _time_norm_kernel,
        out_shape=jax.ShapeDtypeStruct(x.shape, jnp.float32),
        grid=(B,),
        in_specs=[pl.BlockSpec((1, T, F), lambda b: (b, 0, 0))],
        out_specs=pl.BlockSpec((1, T, F), lambda b: (b, 0, 0)),
        compiler_params=pltpu.CompilerParams(dimension_semantics=("parallel",)),
    )(x)


def _matmul_act_kernel(x_ref, w_ref, b_ref, o_ref, *, activation):
    y = jnp.dot(x_ref[...].astype(jnp.bfloat16), w_ref[...],
                preferred_element_type=jnp.float32) + b_ref[...]
    if activation == "relu":
        y = jnp.maximum(y, 0.0)
    o_ref[...] = y.astype(o_ref.dtype)


def matmul_act(x, w, b, activation="none", tile_m=512):
    M, Kd = x.shape
    N = w.shape[1]
    tm = M if M <= tile_m else tile_m
    return pl.pallas_call(
        functools.partial(_matmul_act_kernel, activation=activation),
        out_shape=jax.ShapeDtypeStruct((M, N), jnp.float32),
        grid=(pl.cdiv(M, tm),),
        in_specs=[pl.BlockSpec((tm, Kd), lambda i: (i, 0)),
                  pl.BlockSpec((Kd, N), lambda i: (0, 0)),    # resident weight
                  pl.BlockSpec((1, N), lambda i: (0, 0))],
        out_specs=pl.BlockSpec((tm, N), lambda i: (i, 0)),
        compiler_params=pltpu.CompilerParams(dimension_semantics=("parallel",)),
    )(x, w, b)


def _double_linear_kernel(x_ref, w1_ref, b1_ref, w2_ref, b2_ref, o_ref):
    h = jnp.dot(x_ref[...].astype(jnp.bfloat16), w1_ref[...],
                preferred_element_type=jnp.float32) + b1_ref[...]
    o_ref[...] = (jnp.dot(h.astype(jnp.bfloat16), w2_ref[...],
                          preferred_element_type=jnp.float32) + b2_ref[...]
                  ).astype(o_ref.dtype)


def double_linear(x, w1, b1, w2, b2, tile_m=512):
    M, Kd = x.shape
    Nh = w1.shape[1]
    N = w2.shape[1]
    tm = M if M <= tile_m else tile_m
    return pl.pallas_call(
        _double_linear_kernel,
        out_shape=jax.ShapeDtypeStruct((M, N), jnp.float32),
        grid=(pl.cdiv(M, tm),),
        in_specs=[pl.BlockSpec((tm, Kd), lambda i: (i, 0)),
                  pl.BlockSpec((Kd, Nh), lambda i: (0, 0)),
                  pl.BlockSpec((1, Nh), lambda i: (0, 0)),
                  pl.BlockSpec((Nh, N), lambda i: (0, 0)),
                  pl.BlockSpec((1, N), lambda i: (0, 0))],
        out_specs=pl.BlockSpec((tm, N), lambda i: (i, 0)),
        compiler_params=pltpu.CompilerParams(dimension_semantics=("parallel",)),
    )(x, w1, b1, w2, b2)


# ---------------------------------------------------------------------------
# Fused Conformer block kernel: one pallas_call per block, grid over batch.
# ---------------------------------------------------------------------------

def _conformer_block_kernel(
        lens_ref,                                   # SMEM (B,) int32 (scalar prefetch)
        x_ref,                                      # (1, T, D) block of this batch
        ff1_g, ff1_bt, ff1_w1, ff1_b1, ff1_w2, ff1_b2,
        mh_g, mh_bt, wqkv, bqkv, wo, bo,
        cv_g, cv_bt, pa_w, pa_b, pb_w, pb_b,
        dw_w, dw_b, cn_g, cn_bt, pw2_w, pw2_b,
        ff2_g, ff2_bt, ff2_w1, ff2_b1, ff2_w2, ff2_b2,
        fin_g, fin_bt,
        o_ref,                                      # (1, T, D) block
        *, T, D, H, dh, K, Ch, num_prev, scale):

    eps = 1e-5
    bf16 = jnp.bfloat16
    b_idx = pl.program_id(0)
    length = lens_ref[b_idx]

    def layer_norm(v, g, bt):
        m = jnp.mean(v, axis=-1, keepdims=True)
        var = jnp.mean((v - m) ** 2, axis=-1, keepdims=True)
        return (v - m) * jax.lax.rsqrt(var + eps) * g + bt

    x = x_ref[0]                                    # (T, D) f32

    # Hoisted iotas / masks (built once per grid step, reused by MHSA and conv).
    row = jax.lax.broadcasted_iota(jnp.int32, (T, T), 0)
    col = jax.lax.broadcasted_iota(jnp.int32, (T, T), 1)
    mask = (col <= row) & (col < length)            # causal + key padding
    if num_prev is not None:
        mask = mask & ((row - col) <= num_prev)     # limited left context

    # ----- feed-forward module 1 (macaron, 0.5 residual) --------------------
    h = layer_norm(x, ff1_g[...], ff1_bt[...])
    h = jnp.dot(h.astype(bf16), ff1_w1[...], preferred_element_type=jnp.float32) + ff1_b1[...]
    h = h * jax.nn.sigmoid(h)                       # SiLU
    h = jnp.dot(h.astype(bf16), ff1_w2[...], preferred_element_type=jnp.float32) + ff1_b2[...]
    x = x + 0.5 * h

    # ----- multi-head self-attention (causal + limited left context) --------
    h = layer_norm(x, mh_g[...], mh_bt[...])
    qkv = jnp.dot(h.astype(bf16), wqkv[...], preferred_element_type=jnp.float32) + bqkv[...]
    q = qkv[:, 0:D]
    k = qkv[:, D:2 * D]
    v = qkv[:, 2 * D:3 * D]

    ctx_heads = []
    for hh in range(H):                             # per-head lane slices (d_h contraction)
        sl = slice(hh * dh, (hh + 1) * dh)
        qh = (q[:, sl] * scale).astype(bf16)
        kh = k[:, sl].astype(bf16)
        vh = v[:, sl].astype(bf16)
        s = jax.lax.dot_general(qh, kh, (((1,), (1,)), ((), ())),
                                preferred_element_type=jnp.float32)
        s = jnp.where(mask, s, -1e30)
        m = jnp.max(s, axis=-1, keepdims=True)
        p = jnp.exp(s - m)
        denom = jnp.sum(p, axis=-1, keepdims=True)
        attn = (p * pl.reciprocal(denom, approx=True)).astype(bf16)
        ctx_heads.append(jnp.dot(attn, vh, preferred_element_type=jnp.float32))
    ctx = jnp.concatenate(ctx_heads, axis=1)        # (T, D) lane-dense
    o = jnp.dot(ctx.astype(bf16), wo[...], preferred_element_type=jnp.float32) + bo[...]
    x = x + o

    # ----- convolution module ------------------------------------------------
    h = layer_norm(x, cv_g[...], cv_bt[...])
    hb = h.astype(bf16)
    a = jnp.dot(hb, pa_w[...], preferred_element_type=jnp.float32) + pa_b[...]
    gate = jnp.dot(hb, pb_w[...], preferred_element_type=jnp.float32) + pb_b[...]
    g = a * jax.nn.sigmoid(gate)                    # GLU -> (T, Ch)

    # Causal depthwise conv: per tap, shift g down by (K-1-kk) rows with zero fill.
    # Shift is done as an exact 0/1 shift-matrix matmul (all-vreg, no scratch).
    # TODO(synk): for long T, replace with pltpu.roll on the sublane axis + row mask.
    acc = g * dw_w[K - 1:K, :]                      # tap K-1 multiplies the current frame
    for kk in range(K - 1):
        shift = K - 1 - kk
        if shift < T:
            S = (row - col == shift).astype(jnp.float32)       # (T, T)
            shifted = jnp.dot(S, g, preferred_element_type=jnp.float32)
            acc = acc + shifted * dw_w[kk:kk + 1, :]
    acc = acc + dw_b[...]

    h = layer_norm(acc, cn_g[...], cn_bt[...])
    h = h * jax.nn.sigmoid(h)                       # SiLU
    h = jnp.dot(h.astype(bf16), pw2_w[...], preferred_element_type=jnp.float32) + pw2_b[...]
    x = x + h

    # ----- feed-forward module 2 (macaron, 0.5 residual) --------------------
    h = layer_norm(x, ff2_g[...], ff2_bt[...])
    h = jnp.dot(h.astype(bf16), ff2_w1[...], preferred_element_type=jnp.float32) + ff2_b1[...]
    h = h * jax.nn.sigmoid(h)
    h = jnp.dot(h.astype(bf16), ff2_w2[...], preferred_element_type=jnp.float32) + ff2_b2[...]
    x = x + 0.5 * h

    # ----- final layer norm ---------------------------------------------------
    # TODO(synk): is_timewise_ln=False (time-axis norm) variant not implemented —
    # the reference submodule source was not provided; feature-axis LayerNorm used.
    o_ref[0] = layer_norm(x, fin_g[...], fin_bt[...])


def conformer_block(x, lengths, p, cfg):
    B, T, D = x.shape
    H = cfg["mha_num_heads"]
    dh = D // H
    K = p["conv"]["dw_w"].shape[0]
    Ch = p["conv"]["dw_w"].shape[1]
    num_prev = cfg["num_previous_frames"]
    scale = 1.0 / math.sqrt(dh)

    weights = [
        p["ff1"]["ln_g"], p["ff1"]["ln_b"], p["ff1"]["w1"], p["ff1"]["b1"],
        p["ff1"]["w2"], p["ff1"]["b2"],
        p["mhsa"]["ln_g"], p["mhsa"]["ln_b"], p["mhsa"]["wqkv"], p["mhsa"]["bqkv"],
        p["mhsa"]["wo"], p["mhsa"]["bo"],
        p["conv"]["ln_g"], p["conv"]["ln_b"], p["conv"]["pa_w"], p["conv"]["pa_b"],
        p["conv"]["pb_w"], p["conv"]["pb_b"],
        p["conv"]["dw_w"], p["conv"]["dw_b"], p["conv"]["norm_g"], p["conv"]["norm_b"],
        p["conv"]["pw2_w"], p["conv"]["pw2_b"],
        p["ff2"]["ln_g"], p["ff2"]["ln_b"], p["ff2"]["w1"], p["ff2"]["b1"],
        p["ff2"]["w2"], p["ff2"]["b2"],
        p["final_g"], p["final_b"],
    ]
    x_spec = pl.BlockSpec((1, T, D), lambda b, lens: (b, 0, 0))
    # All weights are 2-D; constant index_map keeps them VMEM-resident across the grid.
    w_specs = [pl.BlockSpec(w.shape, lambda b, lens: (0, 0)) for w in weights]

    out = pl.pallas_call(
        functools.partial(_conformer_block_kernel, T=T, D=D, H=H, dh=dh, K=K,
                          Ch=Ch, num_prev=num_prev, scale=scale),
        out_shape=jax.ShapeDtypeStruct((B, T, D), jnp.float32),
        grid_spec=pltpu.PrefetchScalarGridSpec(
            num_scalar_prefetch=1,
            grid=(B,),
            in_specs=[x_spec] + w_specs,
            out_specs=pl.BlockSpec((1, T, D), lambda b, lens: (b, 0, 0)),
        ),
        compiler_params=pltpu.CompilerParams(
            dimension_semantics=("parallel",),          # shards batches across TCs on v7x
            vmem_limit_bytes=64 * 1024 * 1024),
    )(lengths.astype(jnp.int32), x, *weights)
    return out


# ---------------------------------------------------------------------------
# Subsampling front-end (im2col is plain-JAX reshape glue; matmuls are Pallas).
# ---------------------------------------------------------------------------

def _im2col(x, k, stride):
    # x: (B, C, H, W) -> (B, Ho, Wo, C*k*k); patch flattened as (cin, kh, kw)
    B, C, Hh, W = x.shape
    Ho = (Hh - k) // stride + 1
    Wo = (W - k) // stride + 1
    cols = []
    for dh_ in range(k):
        for dw_ in range(k):
            cols.append(x[:, :, dh_:dh_ + stride * Ho:stride, dw_:dw_ + stride * Wo:stride])
    patches = jnp.stack(cols, axis=2)                   # (B, C, k*k, Ho, Wo)
    patches = jnp.transpose(patches, (0, 3, 4, 1, 2))   # (B, Ho, Wo, C, k*k)
    return patches.reshape(B, Ho, Wo, C * k * k)


def conv2d_relu(x, wmat, b, k, stride):
    # x: (B, Cin, H, W); wmat: (Cin*k*k, Cout) bf16, pre-packed in init; b: (1, Cout)
    patches = _im2col(x, k, stride)
    B, Ho, Wo, P = patches.shape
    Cout = wmat.shape[1]
    y = matmul_act(patches.reshape(B * Ho * Wo, P), wmat, b, activation="relu")
    return y.reshape(B, Ho, Wo, Cout).transpose(0, 3, 1, 2)


def subsampling_and_fc(x, lengths, params, cfg):
    # Conv2DSubSampling (unsqueeze -> Conv2d -> ReLU -> Conv2d -> ReLU -> Linear),
    # fused with the encoder's fc Linear (dropout is identity at inference).
    p = params["subsampling"]
    k1, s1 = cfg["subsampling_kernel_size1"], cfg["subsampling_stride1"]
    k2, s2 = cfg["subsampling_kernel_size2"], cfg["subsampling_stride2"]
    h = x[:, None, :, :]                                # (B, 1, T, F)  NCHW
    h = conv2d_relu(h, p["conv1_wmat"], p["conv1_b"], k1, s1)
    h = conv2d_relu(h, p["conv2_wmat"], p["conv2_b"], k2, s2)
    B, C, T2, F2 = h.shape
    h = h.transpose(0, 2, 1, 3).reshape(B * T2, C * F2)
    h = double_linear(h, p["out_w"], p["out_b"], params["fc_w"], params["fc_b"])
    h = h.reshape(B, T2, -1)
    l1 = (lengths - k1) // s1 + 1
    l2 = (l1 - k2) // s2 + 1
    return h, l2


def encoder_forward(params, padded_input, input_lengths, cfg):
    x = time_normalize(padded_input)
    x, lengths = subsampling_and_fc(x, input_lengths, params, cfg)
    # dropout: identity (p = 0.0 / eval mode)
    for bp in params["blocks"]:
        x = conformer_block(x, lengths, bp, cfg)
    return x, lengths


# ---------------------------------------------------------------------------
# Deterministic synthetic parameters (matmul weights pre-packed + stored in bf16)
# ---------------------------------------------------------------------------

def init_params(key, cfg):
    keys = iter(jax.random.split(key, 512))

    def dense(shape, scale=0.1, dtype=jnp.bfloat16):
        return (scale * jax.random.normal(next(keys), shape, jnp.float32)).astype(dtype)

    D = cfg["subsampled_input_size"]
    Fh = cfg["ff_hidden_size"]
    Ch = cfg["conv_hidden_size"]
    K = cfg["conv_kernel_size"]
    Fin = cfg["input_size"]
    k1, s1 = cfg["subsampling_kernel_size1"], cfg["subsampling_stride1"]
    k2, s2 = cfg["subsampling_kernel_size2"], cfg["subsampling_stride2"]
    F1 = (Fin - k1) // s1 + 1
    F2 = (F1 - k2) // s2 + 1

    def zeros(dim):
        return jnp.zeros((1, dim), jnp.float32)

    def ln(dim):
        return jnp.ones((1, dim), jnp.float32), jnp.zeros((1, dim), jnp.float32)

    def ff_params():
        g, b = ln(D)
        return dict(ln_g=g, ln_b=b,
                    w1=dense((D, Fh)), b1=zeros(Fh),
                    w2=dense((Fh, D)), b2=zeros(D))

    def mhsa_params():
        g, b = ln(D)
        wq, wk, wv = dense((D, D)), dense((D, D)), dense((D, D))
        # QKV fusion pre-packed once here (not per forward step).
        return dict(ln_g=g, ln_b=b,
                    wqkv=jnp.concatenate([wq, wk, wv], axis=1), bqkv=zeros(3 * D),
                    wo=dense((D, D)), bo=zeros(D))

    def conv_params():
        g, b = ln(D)
        ng, nb = ln(Ch)
        pw1 = dense((D, 2 * Ch))                    # GLU columns pre-split once here.
        return dict(ln_g=g, ln_b=b,
                    pa_w=pw1[:, :Ch], pa_b=zeros(Ch),
                    pb_w=pw1[:, Ch:], pb_b=zeros(Ch),
                    dw_w=dense((K, Ch), dtype=jnp.float32), dw_b=zeros(Ch),
                    norm_g=ng, norm_b=nb,
                    pw2_w=dense((Ch, D)), pw2_b=zeros(D))

    def block_params():
        g, b = ln(D)
        return dict(ff1=ff_params(), mhsa=mhsa_params(), conv=conv_params(),
                    ff2=ff_params(), final_g=g, final_b=b)

    # Subsampling conv weights pre-packed as (Cin*k*k, Cout) im2col matrices (bf16).
    sub = dict(
        conv1_wmat=dense((1 * k1 * k1, D)), conv1_b=zeros(D),
        conv2_wmat=dense((D * k2 * k2, D)), conv2_b=zeros(D),
        out_w=dense((D * F2, D)), out_b=zeros(D),
    )
    return dict(
        subsampling=sub,
        fc_w=dense((D, D)), fc_b=zeros(D),
        blocks=[block_params() for _ in range(cfg["num_conformer_blocks"])],
    )


# ---------------------------------------------------------------------------

if __name__ == "__main__":
    cfg = dict(
        input_size=16,
        subsampled_input_size=32,
        num_conformer_blocks=2,
        ff_hidden_size=64,
        conv_hidden_size=32,
        conv_kernel_size=3,
        mha_num_heads=4,
        dropout=0.0,
        subsampling_kernel_size1=3,
        subsampling_stride1=2,
        subsampling_kernel_size2=3,
        subsampling_stride2=2,
        num_previous_frames=4,
        is_timewise_ln=True,
    )
    key = jax.random.PRNGKey(0)
    pkey, xkey = jax.random.split(key)
    params = init_params(pkey, cfg)

    B, T = 2, 16
    padded_input = jax.random.normal(xkey, (B, T, cfg["input_size"]), jnp.float32)
    input_lengths = jnp.array([16, 12], dtype=jnp.int32)

    fwd = jax.jit(lambda p, x, l: encoder_forward(p, x, l, cfg))
    out, out_lengths = fwd(params, padded_input, input_lengths)
    jax.block_until_ready(out)
    jax.block_until_ready(out_lengths)

    # (16-3)//2+1 = 7 -> (7-3)//2+1 = 3 subsampled frames
    assert out.shape == (B, 3, cfg["subsampled_input_size"]), out.shape
    assert out_lengths.shape == (B,)
    print("KERNEL_OK")
</pallas_src>

<mosaic_0001>
module attributes {stable_mosaic.version = 11 : i64} {
  func.func @_time_norm_kernel(%arg0: i32, %arg1: memref<1x16x16xf32, #tpu.memory_space<vmem>>, %arg2: memref<1x16x16xf32, #tpu.memory_space<vmem>>) attributes {dimension_semantics = [#tpu.dimension_semantics<parallel>], iteration_bounds = array<i64: 2>, scalar_prefetch = 0 : i64, scratch_operands = 0 : i64, tpu.core_type = #tpu.core_type<tc>, window_params = [{transform_indices = @transform_0, window_bounds = array<i64: 1, 16, 16>}, {transform_indices = @transform_1, window_bounds = array<i64: 1, 16, 16>}]} {
    %c0 = arith.constant 0 : index
    %c0_0 = arith.constant 0 : index
    %c0_1 = arith.constant 0 : index
    %0 = vector.load %arg1[%c0, %c0_0, %c0_1] : memref<1x16x16xf32, #tpu.memory_space<vmem>>, vector<1x16x16xf32>
    %cst = arith.constant dense<0.000000e+00> : vector<1x16xf32>
    %1 = vector.multi_reduction <add>, %0, %cst [1] : vector<1x16x16xf32> to vector<1x16xf32>
    %2 = vector.shape_cast %1 : vector<1x16xf32> to vector<1x1x16xf32>
    %cst_2 = arith.constant 1.600000e+01 : f32
    %3 = vector.broadcast %cst_2 : f32 to vector<1x1x16xf32>
    %4 = arith.divf %2, %3 : vector<1x1x16xf32>
    %5 = vector.broadcast %4 : vector<1x1x16xf32> to vector<1x16x16xf32>
    %6 = arith.subf %0, %5 : vector<1x16x16xf32>
    %7 = arith.mulf %6, %6 : vector<1x16x16xf32>
    %cst_3 = arith.constant dense<0.000000e+00> : vector<1x16xf32>
    %8 = vector.multi_reduction <add>, %7, %cst_3 [1] : vector<1x16x16xf32> to vector<1x16xf32>
    %9 = vector.shape_cast %8 : vector<1x16xf32> to vector<1x1x16xf32>
    %cst_4 = arith.constant 1.500000e+01 : f32
    %10 = vector.broadcast %cst_4 : f32 to vector<1x1x16xf32>
    %11 = arith.divf %9, %10 : vector<1x1x16xf32>
    %12 = math.sqrt %11 : vector<1x1x16xf32>
    %13 = vector.broadcast %4 : vector<1x1x16xf32> to vector<1x16x16xf32>
    %14 = arith.subf %0, %13 : vector<1x16x16xf32>
    %cst_5 = arith.constant 9.99999974E-6 : f32
    %15 = vector.broadcast %cst_5 : f32 to vector<1x1x16xf32>
    %16 = arith.addf %12, %15 : vector<1x1x16xf32>
    %17 = vector.broadcast %16 : vector<1x1x16xf32> to vector<1x16x16xf32>
    %18 = arith.divf %14, %17 : vector<1x16x16xf32>
    %c0_6 = arith.constant 0 : index
    %c0_7 = arith.constant 0 : index
    %c0_8 = arith.constant 0 : index
    %19 = vector.load %arg2[%c0_6, %c0_7, %c0_8] : memref<1x16x16xf32, #tpu.memory_space<vmem>>, vector<1x16x16xf32>
    tpu.vector_store %arg2[%c0_6, %c0_7, %c0_8], %18 {strides = array<i32>} : memref<1x16x16xf32, #tpu.memory_space<vmem>>, vector<1x16x16xf32>,
    return
  }
  func.func @transform_0(%arg0: i32) -> (i32, i32, i32) {
    %c0_i32 = arith.constant 0 : i32
    %c0_i32_0 = arith.constant 0 : i32
    %c0_i32_1 = arith.constant 0 : i32
    return %arg0, %c0_i32, %c0_i32_0 : i32, i32, i32
  }
  func.func @transform_1(%arg0: i32) -> (i32, i32, i32) {
    %c0_i32 = arith.constant 0 : i32
    %c0_i32_0 = arith.constant 0 : i32
    %c0_i32_1 = arith.constant 0 : i32
    return %arg0, %c0_i32, %c0_i32_0 : i32, i32, i32
  }
}

module attributes {stable_mosaic.version = 11 : i64} {
  func.func @_matmul_act_kernel(%arg0: i32, %arg1: memref<98x9xf32, #tpu.memory_space<vmem>>, %arg2: memref<9x32xbf16, #tpu.memory_space<vmem>>, %arg3: memref<1x32xf32, #tpu.memory_space<vmem>>, %arg4: memref<98x32xf32, #tpu.memory_space<vmem>>) attributes {dimension_semantics = [#tpu.dimension_semantics<parallel>], iteration_bounds = array<i64: 1>, scalar_prefetch = 0 : i64, scratch_operands = 0 : i64, tpu.core_type = #tpu.core_type<tc>, window_params = [{transform_indices = @transform_0, window_bounds = array<i64: 98, 9>}, {pipeline_mode = #tpu.pipeline_mode<synchronous>, transform_indices = @transform_1, window_bounds = array<i64: 9, 32>}, {pipeline_mode = #tpu.pipeline_mode<synchronous>, transform_indices = @transform_2, window_bounds = array<i64: 1, 32>}, {transform_indices = @transform_3, window_bounds = array<i64: 98, 32>}]} {
    %c0 = arith.constant 0 : index
    %c0_0 = arith.constant 0 : index
    %0 = vector.load %arg1[%c0, %c0_0] : memref<98x9xf32, #tpu.memory_space<vmem>>, vector<98x9xf32>
    %1 = arith.truncf %0 : vector<98x9xf32> to vector<98x9xbf16>
    %c0_1 = arith.constant 0 : index
    %c0_2 = arith.constant 0 : index
    %2 = vector.load %arg2[%c0_1, %c0_2] : memref<9x32xbf16, #tpu.memory_space<vmem>>, vector<9x32xbf16>
    %cst = arith.constant dense<0.000000e+00> : vector<98x32xf32>
    %3 = tpu.matmul %1, %2, %cst {dimension_numbers = #tpu.dot_dimension_numbers<[1], [0], [0], [1], [0, 0, 1, 1], [], []>} : vector<98x9xbf16>, vector<9x32xbf16>, vector<98x32xf32> -> vector<98x32xf32>
    %c0_3 = arith.constant 0 : index
    %c0_4 = arith.constant 0 : index
    %4 = vector.load %arg3[%c0_3, %c0_4] : memref<1x32xf32, #tpu.memory_space<vmem>>, vector<1x32xf32>
    %5 = vector.broadcast %4 : vector<1x32xf32> to vector<98x32xf32>
    %6 = arith.addf %3, %5 : vector<98x32xf32>
    %cst_5 = arith.constant 0.000000e+00 : f32
    %7 = vector.broadcast %cst_5 : f32 to vector<98x32xf32>
    %8 = arith.maximumf %6, %7 : vector<98x32xf32>
    %c0_6 = arith.constant 0 : index
    %c0_7 = arith.constant 0 : index
    %9 = vector.load %arg4[%c0_6, %c0_7] : memref<98x32xf32, #tpu.memory_space<vmem>>, vector<98x32xf32>
    tpu.vector_store %arg4[%c0_6, %c0_7], %8 {strides = array<i32>} : memref<98x32xf32, #tpu.memory_space<vmem>>, vector<98x32xf32>,
    return
  }
  func.func @transform_0(%arg0: i32) -> (i32, i32) {
    %c0_i32 = arith.constant 0 : i32
    %c0_i32_0 = arith.constant 0 : i32
    return %arg0, %c0_i32 : i32, i32
  }
  func.func @transform_1(%arg0: i32) -> (i32, i32) {
    %c0_i32 = arith.constant 0 : i32
    %c0_i32_0 = arith.constant 0 : i32
    %c0_i32_1 = arith.constant 0 : i32
    return %c0_i32, %c0_i32_0 : i32, i32
  }
  func.func @transform_2(%arg0: i32) -> (i32, i32) {
    %c0_i32 = arith.constant 0 : i32
    %c0_i32_0 = arith.constant 0 : i32
    %c0_i32_1 = arith.constant 0 : i32
    return %c0_i32, %c0_i32_0 : i32, i32
  }
  func.func @transform_3(%arg0: i32) -> (i32, i32) {
    %c0_i32 = arith.constant 0 : i32
    %c0_i32_0 = arith.constant 0 : i32
    return %arg0, %c0_i32 : i32, i32
  }
}

module attributes {stable_mosaic.version = 11 : i64} {
  func.func @_matmul_act_kernel(%arg0: i32, %arg1: memref<18x288xf32, #tpu.memory_space<vmem>>, %arg2: memref<288x32xbf16, #tpu.memory_space<vmem>>, %arg3: memref<1x32xf32, #tpu.memory_space<vmem>>, %arg4: memref<18x32xf32, #tpu.memory_space<vmem>>) attributes {dimension_semantics = [#tpu.dimension_semantics<parallel>], iteration_bounds = array<i64: 1>, scalar_prefetch = 0 : i64, scratch_operands = 0 : i64, tpu.core_type = #tpu.core_type<tc>, window_params = [{transform_indices = @transform_0, window_bounds = array<i64: 18, 288>}, {pipeline_mode = #tpu.pipeline_mode<synchronous>, transform_indices = @transform_1, window_bounds = array<i64: 288, 32>}, {pipeline_mode = #tpu.pipeline_mode<synchronous>, transform_indices = @transform_2, window_bounds = array<i64: 1, 32>}, {transform_indices = @transform_3, window_bounds = array<i64: 18, 32>}]} {
    %c0 = arith.constant 0 : index
    %c0_0 = arith.constant 0 : index
    %0 = vector.load %arg1[%c0, %c0_0] : memref<18x288xf32, #tpu.memory_space<vmem>>, vector<18x288xf32>
    %1 = arith.truncf %0 : vector<18x288xf32> to vector<18x288xbf16>
    %c0_1 = arith.constant 0 : index
    %c0_2 = arith.constant 0 : index
    %2 = vector.load %arg2[%c0_1, %c0_2] : memref<288x32xbf16, #tpu.memory_space<vmem>>, vector<288x32xbf16>
    %cst = arith.constant dense<0.000000e+00> : vector<18x32xf32>
    %3 = tpu.matmul %1, %2, %cst {dimension_numbers = #tpu.dot_dimension_numbers<[1], [0], [0], [1], [0, 0, 1, 1], [], []>} : vector<18x288xbf16>, vector<288x32xbf16>, vector<18x32xf32> -> vector<18x32xf32>
    %c0_3 = arith.constant 0 : index
    %c0_4 = arith.constant 0 : index
    %4 = vector.load %arg3[%c0_3, %c0_4] : memref<1x32xf32, #tpu.memory_space<vmem>>, vector<1x32xf32>
    %5 = vector.broadcast %4 : vector<1x32xf32> to vector<18x32xf32>
    %6 = arith.addf %3, %5 : vector<18x32xf32>
    %cst_5 = arith.constant 0.000000e+00 : f32
    %7 = vector.broadcast %cst_5 : f32 to vector<18x32xf32>
    %8 = arith.maximumf %6, %7 : vector<18x32xf32>
    %c0_6 = arith.constant 0 : index
    %c0_7 = arith.constant 0 : index
    %9 = vector.load %arg4[%c0_6, %c0_7] : memref<18x32xf32, #tpu.memory_space<vmem>>, vector<18x32xf32>
    tpu.vector_store %arg4[%c0_6, %c0_7], %8 {strides = array<i32>} : memref<18x32xf32, #tpu.memory_space<vmem>>, vector<18x32xf32>,
    return
  }
  func.func @transform_0(%arg0: i32) -> (i32, i32) {
    %c0_i32 = arith.constant 0 : i32
    %c0_i32_0 = arith.constant 0 : i32
    return %arg0, %c0_i32 : i32, i32
  }
  func.func @transform_1(%arg0: i32) -> (i32, i32) {
    %c0_i32 = arith.constant 0 : i32
    %c0_i32_0 = arith.constant 0 : i32
    %c0_i32_1 = arith.constant 0 : i32
    return %c0_i32, %c0_i32_0 : i32, i32
  }
  func.func @transform_2(%arg0: i32) -> (i32, i32) {
    %c0_i32 = arith.constant 0 : i32
    %c0_i32_0 = arith.constant 0 : i32
    %c0_i32_1 = arith.constant 0 : i32
    return %c0_i32, %c0_i32_0 : i32, i32
  }
  func.func @transform_3(%arg0: i32) -> (i32, i32) {
    %c0_i32 = arith.constant 0 : i32
    %c0_i32_0 = arith.constant 0 : i32
    return %arg0, %c0_i32 : i32, i32
  }
}

module attributes {stable_mosaic.version = 11 : i64} {
  func.func @_double_linear_kernel(%arg0: i32, %arg1: memref<6x96xf32, #tpu.memory_space<vmem>>, %arg2: memref<96x32xbf16, #tpu.memory_space<vmem>>, %arg3: memref<1x32xf32, #tpu.memory_space<vmem>>, %arg4: memref<32x32xbf16, #tpu.memory_space<vmem>>, %arg5: memref<1x32xf32, #tpu.memory_space<vmem>>, %arg6: memref<6x32xf32, #tpu.memory_space<vmem>>) attributes {dimension_semantics = [#tpu.dimension_semantics<parallel>], iteration_bounds = array<i64: 1>, scalar_prefetch = 0 : i64, scratch_operands = 0 : i64, tpu.core_type = #tpu.core_type<tc>, window_params = [{transform_indices = @transform_0, window_bounds = array<i64: 6, 96>}, {pipeline_mode = #tpu.pipeline_mode<synchronous>, transform_indices = @transform_1, window_bounds = array<i64: 96, 32>}, {pipeline_mode = #tpu.pipeline_mode<synchronous>, transform_indices = @transform_2, window_bounds = array<i64: 1, 32>}, {pipeline_mode = #tpu.pipeline_mode<synchronous>, transform_indices = @transform_3, window_bounds = array<i64: 32, 32>}, {pipeline_mode = #tpu.pipeline_mode<synchronous>, transform_indices = @transform_4, window_bounds = array<i64: 1, 32>}, {transform_indices = @transform_5, window_bounds = array<i64: 6, 32>}]} {
    %c0 = arith.constant 0 : index
    %c0_0 = arith.constant 0 : index
    %0 = vector.load %arg1[%c0, %c0_0] : memref<6x96xf32, #tpu.memory_space<vmem>>, vector<6x96xf32>
    %1 = arith.truncf %0 : vector<6x96xf32> to vector<6x96xbf16>
    %c0_1 = arith.constant 0 : index
    %c0_2 = arith.constant 0 : index
    %2 = vector.load %arg2[%c0_1, %c0_2] : memref<96x32xbf16, #tpu.memory_space<vmem>>, vector<96x32xbf16>
    %cst = arith.constant dense<0.000000e+00> : vector<6x32xf32>
    %3 = tpu.matmul %1, %2, %cst {dimension_numbers = #tpu.dot_dimension_numbers<[1], [0], [0], [1], [0, 0, 1, 1], [], []>} : vector<6x96xbf16>, vector<96x32xbf16>, vector<6x32xf32> -> vector<6x32xf32>
    %c0_3 = arith.constant 0 : index
    %c0_4 = arith.constant 0 : index
    %4 = vector.load %arg3[%c0_3, %c0_4] : memref<1x32xf32, #tpu.memory_space<vmem>>, vector<1x32xf32>
    %5 = vector.broadcast %4 : vector<1x32xf32> to vector<6x32xf32>
    %6 = arith.addf %3, %5 : vector<6x32xf32>
    %7 = arith.truncf %6 : vector<6x32xf32> to vector<6x32xbf16>
    %c0_5 = arith.constant 0 : index
    %c0_6 = arith.constant 0 : index
    %8 = vector.load %arg4[%c0_5, %c0_6] : memref<32x32xbf16, #tpu.memory_space<vmem>>, vector<32x32xbf16>
    %cst_7 = arith.constant dense<0.000000e+00> : vector<6x32xf32>
    %9 = tpu.matmul %7, %8, %cst_7 {dimension_numbers = #tpu.dot_dimension_numbers<[1], [0], [0], [1], [0, 0, 1, 1], [], []>} : vector<6x32xbf16>, vector<32x32xbf16>, vector<6x32xf32> -> vector<6x32xf32>
    %c0_8 = arith.constant 0 : index
    %c0_9 = arith.constant 0 : index
    %10 = vector.load %arg5[%c0_8, %c0_9] : memref<1x32xf32, #tpu.memory_space<vmem>>, vector<1x32xf32>
    %11 = vector.broadcast %10 : vector<1x32xf32> to vector<6x32xf32>
    %12 = arith.addf %9, %11 : vector<6x32xf32>
    %c0_10 = arith.constant 0 : index
    %c0_11 = arith.constant 0 : index
    %13 = vector.load %arg6[%c0_10, %c0_11] : memref<6x32xf32, #tpu.memory_space<vmem>>, vector<6x32xf32>
    tpu.vector_store %arg6[%c0_10, %c0_11], %12 {strides = array<i32>} : memref<6x32xf32, #tpu.memory_space<vmem>>, vector<6x32xf32>,
    return
  }
  func.func @transform_0(%arg0: i32) -> (i32, i32) {
    %c0_i32 = arith.constant 0 : i32
    %c0_i32_0 = arith.constant 0 : i32
    return %arg0, %c0_i32 : i32, i32
  }
  func.func @transform_1(%arg0: i32) -> (i32, i32) {
    %c0_i32 = arith.constant 0 : i32
    %c0_i32_0 = arith.constant 0 : i32
    %c0_i32_1 = arith.constant 0 : i32
    return %c0_i32, %c0_i32_0 : i32, i32
  }
  func.func @transform_2(%arg0: i32) -> (i32, i32) {
    %c0_i32 = arith.constant 0 : i32
    %c0_i32_0 = arith.constant 0 : i32
    %c0_i32_1 = arith.constant 0 : i32
    return %c0_i32, %c0_i32_0 : i32, i32
  }
  func.func @transform_3(%arg0: i32) -> (i32, i32) {
    %c0_i32 = arith.constant 0 : i32
    %c0_i32_0 = arith.constant 0 : i32
    %c0_i32_1 = arith.constant 0 : i32
    return %c0_i32, %c0_i32_0 : i32, i32
  }
  func.func @transform_4(%arg0: i32) -> (i32, i32) {
    %c0_i32 = arith.constant 0 : i32
    %c0_i32_0 = arith.constant 0 : i32
    %c0_i32_1 = arith.constant 0 : i32
    return %c0_i32, %c0_i32_0 : i32, i32
  }
  func.func @transform_5(%arg0: i32) -> (i32, i32) {
    %c0_i32 = arith.constant 0 : i32
    %c0_i32_0 = arith.constant 0 : i32
    return %arg0, %c0_i32 : i32, i32
  }
}

module attributes {stable_mosaic.version = 11 : i64} {
  func.func @_conformer_block_kernel(%arg0: i32, %arg1: memref<2xi32, #tpu.memory_space<smem>>, %arg2: memref<1x3x32xf32, #tpu.memory_space<vmem>>, %arg3: memref<1x32xf32, #tpu.memory_space<vmem>>, %arg4: memref<1x32xf32, #tpu.memory_space<vmem>>, %arg5: memref<32x64xbf16, #tpu.memory_space<vmem>>, %arg6: memref<1x64xf32, #tpu.memory_space<vmem>>, %arg7: memref<64x32xbf16, #tpu.memory_space<vmem>>, %arg8: memref<1x32xf32, #tpu.memory_space<vmem>>, %arg9: memref<1x32xf32, #tpu.memory_space<vmem>>, %arg10: memref<1x32xf32, #tpu.memory_space<vmem>>, %arg11: memref<32x96xbf16, #tpu.memory_space<vmem>>, %arg12: memref<1x96xf32, #tpu.memory_space<vmem>>, %arg13: memref<32x32xbf16, #tpu.memory_space<vmem>>, %arg14: memref<1x32xf32, #tpu.memory_space<vmem>>, %arg15: memref<1x32xf32, #tpu.memory_space<vmem>>, %arg16: memref<1x32xf32, #tpu.memory_space<vmem>>, %arg17: memref<32x32xbf16, #tpu.memory_space<vmem>>, %arg18: memref<1x32xf32, #tpu.memory_space<vmem>>, %arg19: memref<32x32xbf16, #tpu.memory_space<vmem>>, %arg20: memref<1x32xf32, #tpu.memory_space<vmem>>, %arg21: memref<3x32xf32, #tpu.memory_space<vmem>>, %arg22: memref<1x32xf32, #tpu.memory_space<vmem>>, %arg23: memref<1x32xf32, #tpu.memory_space<vmem>>, %arg24: memref<1x32xf32, #tpu.memory_space<vmem>>, %arg25: memref<32x32xbf16, #tpu.memory_space<vmem>>, %arg26: memref<1x32xf32, #tpu.memory_space<vmem>>, %arg27: memref<1x32xf32, #tpu.memory_space<vmem>>, %arg28: memref<1x32xf32, #tpu.memory_space<vmem>>, %arg29: memref<32x64xbf16, #tpu.memory_space<vmem>>, %arg30: memref<1x64xf32, #tpu.memory_space<vmem>>, %arg31: memref<64x32xbf16, #tpu.memory_space<vmem>>, %arg32: memref<1x32xf32, #tpu.memory_space<vmem>>, %arg33: memref<1x32xf32, #tpu.memory_space<vmem>>, %arg34: memref<1x32xf32, #tpu.memory_space<vmem>>, %arg35: memref<1x3x32xf32, #tpu.memory_space<vmem>>) attributes {dimension_semantics = [#tpu.dimension_semantics<parallel>], iteration_bounds = array<i64: 2>, scalar_prefetch = 1 : i64, scratch_operands = 0 : i64, tpu.core_type = #tpu.core_type<tc>, window_params = [{transform_indices = @transform_0, window_bounds = array<i64: 1, 3, 32>}, {pipeline_mode = #tpu.pipeline_mode<synchronous>, transform_indices = @transform_1, window_bounds = array<i64: 1, 32>}, {pipeline_mode = #tpu.pipeline_mode<synchronous>, transform_indices = @transform_2, window_bounds = array<i64: 1, 32>}, {pipeline_mode = #tpu.pipeline_mode<synchronous>, transform_indices = @transform_3, window_bounds = array<i64: 32, 64>}, {pipeline_mode = #tpu.pipeline_mode<synchronous>, transform_indices = @transform_4, window_bounds = array<i64: 1, 64>}, {pipeline_mode = #tpu.pipeline_mode<synchronous>, transform_indices = @transform_5, window_bounds = array<i64: 64, 32>}, {pipeline_mode = #tpu.pipeline_mode<synchronous>, transform_indices = @transform_6, window_bounds = array<i64: 1, 32>}, {pipeline_mode = #tpu.pipeline_mode<synchronous>, transform_indices = @transform_7, window_bounds = array<i64: 1, 32>}, {pipeline_mode = #tpu.pipeline_mode<synchronous>, transform_indices = @transform_8, window_bounds = array<i64: 1, 32>}, {pipeline_mode = #tpu.pipeline_mode<synchronous>, transform_indices = @transform_9, window_bounds = array<i64: 32, 96>}, {pipeline_mode = #tpu.pipeline_mode<synchronous>, transform_indices = @transform_10, window_bounds = array<i64: 1, 96>}, {pipeline_mode = #tpu.pipeline_mode<synchronous>, transform_indices = @transform_11, window_bounds = array<i64: 32, 32>}, {pipeline_mode = #tpu.pipeline_mode<synchronous>, transform_indices = @transform_12, window_bounds = array<i64: 1, 32>}, {pipeline_mode = #tpu.pipeline_mode<synchronous>, transform_indices = @transform_13, window_bounds = array<i64: 1, 32>}, {pipeline_mode = #tpu.pipeline_mode<synchronous>, transform_indices = @transform_14, window_bounds = array<i64: 1, 32>}, {pipeline_mode = #tpu.pipeline_mode<synchronous>, transform_indices = @transform_15, window_bounds = array<i64: 32, 32>}, {pipeline_mode = #tpu.pipeline_mode<synchronous>, transform_indices = @transform_16, window_bounds = array<i64: 1, 32>}, {pipeline_mode = #tpu.pipeline_mode<synchronous>, transform_indices = @transform_17, window_bounds = array<i64: 32, 32>}, {pipeline_mode = #tpu.pipeline_mode<synchronous>, transform_indices = @transform_18, window_bounds = array<i64: 1, 32>}, {pipeline_mode = #tpu.pipeline_mode<synchronous>, transform_indices = @transform_19, window_bounds = array<i64: 3, 32>}, {pipeline_mode = #tpu.pipeline_mode<synchronous>, transform_indices = @transform_20, window_bounds = array<i64: 1, 32>}, {pipeline_mode = #tpu.pipeline_mode<synchronous>, transform_indices = @transform_21, window_bounds = array<i64: 1, 32>}, {pipeline_mode = #tpu.pipeline_mode<synchronous>, transform_indices = @transform_22, window_bounds = array<i64: 1, 32>}, {pipeline_mode = #tpu.pipeline_mode<synchronous>, transform_indices = @transform_23, window_bounds = array<i64: 32, 32>}, {pipeline_mode = #tpu.pipeline_mode<synchronous>, transform_indices = @transform_24, window_bounds = array<i64: 1, 32>}, {pipeline_mode = #tpu.pipeline_mode<synchronous>, transform_indices = @transform_25, window_bounds = array<i64: 1, 32>}, {pipeline_mode = #tpu.pipeline_mode<synchronous>, transform_indices = @transform_26, window_bounds = array<i64: 1, 32>}, {pipeline_mode = #tpu.pipeline_mode<synchronous>, transform_indices = @transform_27, window_bounds = array<i64: 32, 64>}, {pipeline_mode = #tpu.pipeline_mode<synchronous>, transform_indices = @transform_28, window_bounds = array<i64: 1, 64>}, {pipeline_mode = #tpu.pipeline_mode<synchronous>, transform_indices = @transform_29, window_bounds = array<i64: 64, 32>}, {pipeline_mode = #tpu.pipeline_mode<synchronous>, transform_indices = @transform_30, window_bounds = array<i64: 1, 32>}, {pipeline_mode = #tpu.pipeline_mode<synchronous>, transform_indices = @transform_31, window_bounds = array<i64: 1, 32>}, {pipeline_mode = #tpu.pipeline_mode<synchronous>, transform_indices = @transform_32, window_bounds = array<i64: 1, 32>}, {transform_indices = @transform_33, window_bounds = array<i64: 1, 3, 32>}]} {
    %0 = arith.index_cast %arg0 : i32 to index
    %1 = memref.load %arg1[%0] : memref<2xi32, #tpu.memory_space<smem>>
    %c0 = arith.constant 0 : index
    %c0_0 = arith.constant 0 : index
    %c0_1 = arith.constant 0 : index
    %2 = vector.load %arg2[%c0, %c0_0, %c0_1] : memref<1x3x32xf32, #tpu.memory_space<vmem>>, vector<1x3x32xf32>
    %3 = vector.shape_cast %2 : vector<1x3x32xf32> to vector<3x32xf32>
    %4 = tpu.iota {dimensions = array<i32: 0>} : vector<3x3xi32>
    %5 = tpu.iota {dimensions = array<i32: 1>} : vector<3x3xi32>
    %6 = arith.cmpi sle, %5, %4 : vector<3x3xi32>
    %7 = vector.broadcast %1 : i32 to vector<3x3xi32>
    %8 = arith.cmpi slt, %5, %7 : vector<3x3xi32>
    %9 = arith.andi %6, %8 : vector<3x3xi1>
    %10 = arith.subi %4, %5 : vector<3x3xi32>
    %c4_i32 = arith.constant 4 : i32
    %11 = vector.broadcast %c4_i32 : i32 to vector<3x3xi32>
    %12 = arith.cmpi sle, %10, %11 : vector<3x3xi32>
    %13 = arith.andi %9, %12 : vector<3x3xi1>
    %c0_2 = arith.constant 0 : index
    %c0_3 = arith.constant 0 : index
    %14 = vector.load %arg3[%c0_2, %c0_3] : memref<1x32xf32, #tpu.memory_space<vmem>>, vector<1x32xf32>
    %c0_4 = arith.constant 0 : index
    %c0_5 = arith.constant 0 : index
    %15 = vector.load %arg4[%c0_4, %c0_5] : memref<1x32xf32, #tpu.memory_space<vmem>>, vector<1x32xf32>
    %cst = arith.constant dense<0.000000e+00> : vector<3xf32>
    %16 = vector.multi_reduction <add>, %3, %cst [1] : vector<3x32xf32> to vector<3xf32>
    %17 = vector.shape_cast %16 : vector<3xf32> to vector<3x1xf32>
    %cst_6 = arith.constant 3.200000e+01 : f32
    %18 = vector.broadcast %cst_6 : f32 to vector<3x1xf32>
    %19 = arith.divf %17, %18 : vector<3x1xf32>
    %20 = vector.broadcast %19 : vector<3x1xf32> to vector<3x32xf32>
    %21 = arith.subf %3, %20 : vector<3x32xf32>
    %22 = arith.mulf %21, %21 : vector<3x32xf32>
    %cst_7 = arith.constant dense<0.000000e+00> : vector<3xf32>
    %23 = vector.multi_reduction <add>, %22, %cst_7 [1] : vector<3x32xf32> to vector<3xf32>
    %24 = vector.shape_cast %23 : vector<3xf32> to vector<3x1xf32>
    %cst_8 = arith.constant 3.200000e+01 : f32
    %25 = vector.broadcast %cst_8 : f32 to vector<3x1xf32>
    %26 = arith.divf %24, %25 : vector<3x1xf32>
    %27 = vector.broadcast %19 : vector<3x1xf32> to vector<3x32xf32>
    %28 = arith.subf %3, %27 : vector<3x32xf32>
    %cst_9 = arith.constant 9.99999974E-6 : f32
    %29 = vector.broadcast %cst_9 : f32 to vector<3x1xf32>
    %30 = arith.addf %26, %29 : vector<3x1xf32>
    %31 = math.rsqrt %30 : vector<3x1xf32>
    %32 = vector.broadcast %31 : vector<3x1xf32> to vector<3x32xf32>
    %33 = arith.mulf %28, %32 : vector<3x32xf32>
    %34 = vector.broadcast %14 : vector<1x32xf32> to vector<3x32xf32>
    %35 = arith.mulf %33, %34 : vector<3x32xf32>
    %36 = vector.broadcast %15 : vector<1x32xf32> to vector<3x32xf32>
    %37 = arith.addf %35, %36 : vector<3x32xf32>
    %38 = arith.truncf %37 : vector<3x32xf32> to vector<3x32xbf16>
    %c0_10 = arith.constant 0 : index
    %c0_11 = arith.constant 0 : index
    %39 = vector.load %arg5[%c0_10, %c0_11] : memref<32x64xbf16, #tpu.memory_space<vmem>>, vector<32x64xbf16>
    %cst_12 = arith.constant dense<0.000000e+00> : vector<3x64xf32>
    %40 = tpu.matmul %38, %39, %cst_12 {dimension_numbers = #tpu.dot_dimension_numbers<[1], [0], [0], [1], [0, 0, 1, 1], [], []>} : vector<3x32xbf16>, vector<32x64xbf16>, vector<3x64xf32> -> vector<3x64xf32>
    %c0_13 = arith.constant 0 : index
    %c0_14 = arith.constant 0 : index
    %41 = vector.load %arg6[%c0_13, %c0_14] : memref<1x64xf32, #tpu.memory_space<vmem>>, vector<1x64xf32>
    %42 = vector.broadcast %41 : vector<1x64xf32> to vector<3x64xf32>
    %43 = arith.addf %40, %42 : vector<3x64xf32>
    %44 = arith.negf %43 : vector<3x64xf32>
    %45 = math.exp %44 : vector<3x64xf32>
    %cst_15 = arith.constant 1.000000e+00 : f32
    %46 = vector.broadcast %cst_15 : f32 to vector<3x64xf32>
    %47 = arith.addf %46, %45 : vector<3x64xf32>
    %48 = arith.divf %46, %47 : vector<3x64xf32>
    %49 = arith.mulf %43, %48 : vector<3x64xf32>
    %50 = arith.truncf %49 : vector<3x64xf32> to vector<3x64xbf16>
    %c0_16 = arith.constant 0 : index
    %c0_17 = arith.constant 0 : index
    %51 = vector.load %arg7[%c0_16, %c0_17] : memref<64x32xbf16, #tpu.memory_space<vmem>>, vector<64x32xbf16>
    %cst_18 = arith.constant dense<0.000000e+00> : vector<3x32xf32>
    %52 = tpu.matmul %50, %51, %cst_18 {dimension_numbers = #tpu.dot_dimension_numbers<[1], [0], [0], [1], [0, 0, 1, 1], [], []>} : vector<3x64xbf16>, vector<64x32xbf16>, vector<3x32xf32> -> vector<3x32xf32>
    %c0_19 = arith.constant 0 : index
    %c0_20 = arith.constant 0 : index
    %53 = vector.load %arg8[%c0_19, %c0_20] : memref<1x32xf32, #tpu.memory_space<vmem>>, vector<1x32xf32>
    %54 = vector.broadcast %53 : vector<1x32xf32> to vector<3x32xf32>
    %55 = arith.addf %52, %54 : vector<3x32xf32>
    %cst_21 = arith.constant 5.000000e-01 : f32
    %56 = vector.broadcast %cst_21 : f32 to vector<3x32xf32>
    %57 = arith.mulf %56, %55 : vector<3x32xf32>
    %58 = arith.addf %3, %57 : vector<3x32xf32>
    %c0_22 = arith.constant 0 : index
    %c0_23 = arith.constant 0 : index
    %59 = vector.load %arg9[%c0_22, %c0_23] : memref<1x32xf32, #tpu.memory_space<vmem>>, vector<1x32xf32>
    %c0_24 = arith.constant 0 : index
    %c0_25 = arith.constant 0 : index
    %60 = vector.load %arg10[%c0_24, %c0_25] : memref<1x32xf32, #tpu.memory_space<vmem>>, vector<1x32xf32>
    %cst_26 = arith.constant dense<0.000000e+00> : vector<3xf32>
    %61 = vector.multi_reduction <add>, %58, %cst_26 [1] : vector<3x32xf32> to vector<3xf32>
    %62 = vector.shape_cast %61 : vector<3xf32> to vector<3x1xf32>
    %cst_27 = arith.constant 3.200000e+01 : f32
    %63 = vector.broadcast %cst_27 : f32 to vector<3x1xf32>
    %64 = arith.divf %62, %63 : vector<3x1xf32>
    %65 = vector.broadcast %64 : vector<3x1xf32> to vector<3x32xf32>
    %66 = arith.subf %58, %65 : vector<3x32xf32>
    %67 = arith.mulf %66, %66 : vector<3x32xf32>
    %cst_28 = arith.constant dense<0.000000e+00> : vector<3xf32>
    %68 = vector.multi_reduction <add>, %67, %cst_28 [1] : vector<3x32xf32> to vector<3xf32>
    %69 = vector.shape_cast %68 : vector<3xf32> to vector<3x1xf32>
    %cst_29 = arith.constant 3.200000e+01 : f32
    %70 = vector.broadcast %cst_29 : f32 to vector<3x1xf32>
    %71 = arith.divf %69, %70 : vector<3x1xf32>
    %72 = vector.broadcast %64 : vector<3x1xf32> to vector<3x32xf32>
    %73 = arith.subf %58, %72 : vector<3x32xf32>
    %cst_30 = arith.constant 9.99999974E-6 : f32
    %74 = vector.broadcast %cst_30 : f32 to vector<3x1xf32>
    %75 = arith.addf %71, %74 : vector<3x1xf32>
    %76 = math.rsqrt %75 : vector<3x1xf32>
    %77 = vector.broadcast %76 : vector<3x1xf32> to vector<3x32xf32>
    %78 = arith.mulf %73, %77 : vector<3x32xf32>
    %79 = vector.broadcast %59 : vector<1x32xf32> to vector<3x32xf32>
    %80 = arith.mulf %78, %79 : vector<3x32xf32>
    %81 = vector.broadcast %60 : vector<1x32xf32> to vector<3x32xf32>
    %82 = arith.addf %80, %81 : vector<3x32xf32>
    %83 = arith.truncf %82 : vector<3x32xf32> to vector<3x32xbf16>
    %c0_31 = arith.constant 0 : index
    %c0_32 = arith.constant 0 : index
    %84 = vector.load %arg11[%c0_31, %c0_32] : memref<32x96xbf16, #tpu.memory_space<vmem>>, vector<32x96xbf16>
    %cst_33 = arith.constant dense<0.000000e+00> : vector<3x96xf32>
    %85 = tpu.matmul %83, %84, %cst_33 {dimension_numbers = #tpu.dot_dimension_numbers<[1], [0], [0], [1], [0, 0, 1, 1], [], []>} : vector<3x32xbf16>, vector<32x96xbf16>, vector<3x96xf32> -> vector<3x96xf32>
    %c0_34 = arith.constant 0 : index
    %c0_35 = arith.constant 0 : index
    %86 = vector.load %arg12[%c0_34, %c0_35] : memref<1x96xf32, #tpu.memory_space<vmem>>, vector<1x96xf32>
    %87 = vector.broadcast %86 : vector<1x96xf32> to vector<3x96xf32>
    %88 = arith.addf %85, %87 : vector<3x96xf32>
    %89 = vector.extract_strided_slice %88 {offsets = [0, 0], sizes = [3, 32], strides = [1, 1]} : vector<3x96xf32> to vector<3x32xf32>
    %90 = vector.extract_strided_slice %88 {offsets = [0, 32], sizes = [3, 32], strides = [1, 1]} : vector<3x96xf32> to vector<3x32xf32>
    %91 = vector.extract_strided_slice %88 {offsets = [0, 64], sizes = [3, 32], strides = [1, 1]} : vector<3x96xf32> to vector<3x32xf32>
    %92 = vector.extract_strided_slice %89 {offsets = [0, 0], sizes = [3, 8], strides = [1, 1]} : vector<3x32xf32> to vector<3x8xf32>
    %cst_36 = arith.constant 0.353553385 : f32
    %93 = vector.broadcast %cst_36 : f32 to vector<3x8xf32>
    %94 = arith.mulf %92, %93 : vector<3x8xf32>
    %95 = arith.truncf %94 : vector<3x8xf32> to vector<3x8xbf16>
    %96 = vector.extract_strided_slice %90 {offsets = [0, 0], sizes = [3, 8], strides = [1, 1]} : vector<3x32xf32> to vector<3x8xf32>
    %97 = arith.truncf %96 : vector<3x8xf32> to vector<3x8xbf16>
    %98 = vector.extract_strided_slice %91 {offsets = [0, 0], sizes = [3, 8], strides = [1, 1]} : vector<3x32xf32> to vector<3x8xf32>
    %99 = arith.truncf %98 : vector<3x8xf32> to vector<3x8xbf16>
    %cst_37 = arith.constant dense<0.000000e+00> : vector<3x3xf32>
    %100 = tpu.matmul %95, %97, %cst_37 {dimension_numbers = #tpu.dot_dimension_numbers<[1], [1], [0], [0], [0, 0, 1, 0], [], []>} : vector<3x8xbf16>, vector<3x8xbf16>, vector<3x3xf32> -> vector<3x3xf32>
    %cst_38 = arith.constant -1.000000e+30 : f32
    %101 = vector.broadcast %cst_38 : f32 to vector<3x3xf32>
    %102 = arith.select %13, %100, %101 : vector<3x3xi1>, vector<3x3xf32>
    %cst_39 = arith.constant dense<0xFF800000> : vector<3xf32>
    %103 = vector.multi_reduction <maximumf>, %102, %cst_39 [1] : vector<3x3xf32> to vector<3xf32>
    %104 = vector.shape_cast %103 : vector<3xf32> to vector<3x1xf32>
    %105 = vector.broadcast %104 : vector<3x1xf32> to vector<3x3xf32>
    %106 = arith.subf %102, %105 : vector<3x3xf32>
    %107 = math.exp %106 : vector<3x3xf32>
    %cst_40 = arith.constant dense<0.000000e+00> : vector<3xf32>
    %108 = vector.multi_reduction <add>, %107, %cst_40 [1] : vector<3x3xf32> to vector<3xf32>
    %109 = vector.shape_cast %108 : vector<3xf32> to vector<3x1xf32>
    %110 = tpu.reciprocal %109 {approx = true} : vector<3x1xf32> -> vector<3x1xf32>
    %111 = vector.broadcast %110 : vector<3x1xf32> to vector<3x3xf32>
    %112 = arith.mulf %107, %111 : vector<3x3xf32>
    %113 = arith.truncf %112 : vector<3x3xf32> to vector<3x3xbf16>
    %cst_41 = arith.constant dense<0.000000e+00> : vector<3x8xf32>
    %114 = tpu.matmul %113, %99, %cst_41 {dimension_numbers = #tpu.dot_dimension_numbers<[1], [0], [0], [1], [0, 0, 1, 1], [], []>} : vector<3x3xbf16>, vector<3x8xbf16>, vector<3x8xf32> -> vector<3x8xf32>
    %115 = vector.extract_strided_slice %89 {offsets = [0, 8], sizes = [3, 8], strides = [1, 1]} : vector<3x32xf32> to vector<3x8xf32>
    %cst_42 = arith.constant 0.353553385 : f32
    %116 = vector.broadcast %cst_42 : f32 to vector<3x8xf32>
    %117 = arith.mulf %115, %116 : vector<3x8xf32>
    %118 = arith.truncf %117 : vector<3x8xf32> to vector<3x8xbf16>
    %119 = vector.extract_strided_slice %90 {offsets = [0, 8], sizes = [3, 8], strides = [1, 1]} : vector<3x32xf32> to vector<3x8xf32>
    %120 = arith.truncf %119 : vector<3x8xf32> to vector<3x8xbf16>
    %121 = vector.extract_strided_slice %91 {offsets = [0, 8], sizes = [3, 8], strides = [1, 1]} : vector<3x32xf32> to vector<3x8xf32>
    %122 = arith.truncf %121 : vector<3x8xf32> to vector<3x8xbf16>
    %cst_43 = arith.constant dense<0.000000e+00> : vector<3x3xf32>
    %123 = tpu.matmul %118, %120, %cst_43 {dimension_numbers = #tpu.dot_dimension_numbers<[1], [1], [0], [0], [0, 0, 1, 0], [], []>} : vector<3x8xbf16>, vector<3x8xbf16>, vector<3x3xf32> -> vector<3x3xf32>
    %cst_44 = arith.constant -1.000000e+30 : f32
    %124 = vector.broadcast %cst_44 : f32 to vector<3x3xf32>
    %125 = arith.select %13, %123, %124 : vector<3x3xi1>, vector<3x3xf32>
    %cst_45 = arith.constant dense<0xFF800000> : vector<3xf32>
    %126 = vector.multi_reduction <maximumf>, %125, %cst_45 [1] : vector<3x3xf32> to vector<3xf32>
    %127 = vector.shape_cast %126 : vector<3xf32> to vector<3x1xf32>
    %128 = vector.broadcast %127 : vector<3x1xf32> to vector<3x3xf32>
    %129 = arith.subf %125, %128 : vector<3x3xf32>
    %130 = math.exp %129 : vector<3x3xf32>
    %cst_46 = arith.constant dense<0.000000e+00> : vector<3xf32>
    %131 = vector.multi_reduction <add>, %130, %cst_46 [1] : vector<3x3xf32> to vector<3xf32>
    %132 = vector.shape_cast %131 : vector<3xf32> to vector<3x1xf32>
    %133 = tpu.reciprocal %132 {approx = true} : vector<3x1xf32> -> vector<3x1xf32>
    %134 = vector.broadcast %133 : vector<3x1xf32> to vector<3x3xf32>
    %135 = arith.mulf %130, %134 : vector<3x3xf32>
    %136 = arith.truncf %135 : vector<3x3xf32> to vector<3x3xbf16>
    %cst_47 = arith.constant dense<0.000000e+00> : vector<3x8xf32>
    %137 = tpu.matmul %136, %122, %cst_47 {dimension_numbers = #tpu.dot_dimension_numbers<[1], [0], [0], [1], [0, 0, 1, 1], [], []>} : vector<3x3xbf16>, vector<3x8xbf16>, vector<3x8xf32> -> vector<3x8xf32>
    %138 = vector.extract_strided_slice %89 {offsets = [0, 16], sizes = [3, 8], strides = [1, 1]} : vector<3x32xf32> to vector<3x8xf32>
    %cst_48 = arith.constant 0.353553385 : f32
    %139 = vector.broadcast %cst_48 : f32 to vector<3x8xf32>
    %140 = arith.mulf %138, %139 : vector<3x8xf32>
    %141 = arith.truncf %140 : vector<3x8xf32> to vector<3x8xbf16>
    %142 = vector.extract_strided_slice %90 {offsets = [0, 16], sizes = [3, 8], strides = [1, 1]} : vector<3x32xf32> to vector<3x8xf32>
    %143 = arith.truncf %142 : vector<3x8xf32> to vector<3x8xbf16>
    %144 = vector.extract_strided_slice %91 {offsets = [0, 16], sizes = [3, 8], strides = [1, 1]} : vector<3x32xf32> to vector<3x8xf32>
    %145 = arith.truncf %144 : vector<3x8xf32> to vector<3x8xbf16>
    %cst_49 = arith.constant dense<0.000000e+00> : vector<3x3xf32>
    %146 = tpu.matmul %141, %143, %cst_49 {dimension_numbers = #tpu.dot_dimension_numbers<[1], [1], [0], [0], [0, 0, 1, 0], [], []>} : vector<3x8xbf16>, vector<3x8xbf16>, vector<3x3xf32> -> vector<3x3xf32>
    %cst_50 = arith.constant -1.000000e+30 : f32
    %147 = vector.broadcast %cst_50 : f32 to vector<3x3xf32>
    %148 = arith.select %13, %146, %147 : vector<3x3xi1>, vector<3x3xf32>
    %cst_51 = arith.constant dense<0xFF800000> : vector<3xf32>
    %149 = vector.multi_reduction <maximumf>, %148, %cst_51 [1] : vector<3x3xf32> to vector<3xf32>
    %150 = vector.shape_cast %149 : vector<3xf32> to vector<3x1xf32>
    %151 = vector.broadcast %150 : vector<3x1xf32> to vector<3x3xf32>
    %152 = arith.subf %148, %151 : vector<3x3xf32>
    %153 = math.exp %152 : vector<3x3xf32>
    %cst_52 = arith.constant dense<0.000000e+00> : vector<3xf32>
    %154 = vector.multi_reduction <add>, %153, %cst_52 [1] : vector<3x3xf32> to vector<3xf32>
    %155 = vector.shape_cast %154 : vector<3xf32> to vector<3x1xf32>
    %156 = tpu.reciprocal %155 {approx = true} : vector<3x1xf32> -> vector<3x1xf32>
    %157 = vector.broadcast %156 : vector<3x1xf32> to vector<3x3xf32>
    %158 = arith.mulf %153, %157 : vector<3x3xf32>
    %159 = arith.truncf %158 : vector<3x3xf32> to vector<3x3xbf16>
    %cst_53 = arith.constant dense<0.000000e+00> : vector<3x8xf32>
    %160 = tpu.matmul %159, %145, %cst_53 {dimension_numbers = #tpu.dot_dimension_numbers<[1], [0], [0], [1], [0, 0, 1, 1], [], []>} : vector<3x3xbf16>, vector<3x8xbf16>, vector<3x8xf32> -> vector<3x8xf32>
    %161 = vector.extract_strided_slice %89 {offsets = [0, 24], sizes = [3, 8], strides = [1, 1]} : vector<3x32xf32> to vector<3x8xf32>
    %cst_54 = arith.constant 0.353553385 : f32
    %162 = vector.broadcast %cst_54 : f32 to vector<3x8xf32>
    %163 = arith.mulf %161, %162 : vector<3x8xf32>
    %164 = arith.truncf %163 : vector<3x8xf32> to vector<3x8xbf16>
    %165 = vector.extract_strided_slice %90 {offsets = [0, 24], sizes = [3, 8], strides = [1, 1]} : vector<3x32xf32> to vector<3x8xf32>
    %166 = arith.truncf %165 : vector<3x8xf32> to vector<3x8xbf16>
    %167 = vector.extract_strided_slice %91 {offsets = [0, 24], sizes = [3, 8], strides = [1, 1]} : vector<3x32xf32> to vector<3x8xf32>
    %168 = arith.truncf %167 : vector<3x8xf32> to vector<3x8xbf16>
    %cst_55 = arith.constant dense<0.000000e+00> : vector<3x3xf32>
    %169 = tpu.matmul %164, %166, %cst_55 {dimension_numbers = #tpu.dot_dimension_numbers<[1], [1], [0], [0], [0, 0, 1, 0], [], []>} : vector<3x8xbf16>, vector<3x8xbf16>, vector<3x3xf32> -> vector<3x3xf32>
    %cst_56 = arith.constant -1.000000e+30 : f32
    %170 = vector.broadcast %cst_56 : f32 to vector<3x3xf32>
    %171 = arith.select %13, %169, %170 : vector<3x3xi1>, vector<3x3xf32>
    %cst_57 = arith.constant dense<0xFF800000> : vector<3xf32>
    %172 = vector.multi_reduction <maximumf>, %171, %cst_57 [1] : vector<3x3xf32> to vector<3xf32>
    %173 = vector.shape_cast %172 : vector<3xf32> to vector<3x1xf32>
    %174 = vector.broadcast %173 : vector<3x1xf32> to vector<3x3xf32>
    %175 = arith.subf %171, %174 : vector<3x3xf32>
    %176 = math.exp %175 : vector<3x3xf32>
    %cst_58 = arith.constant dense<0.000000e+00> : vector<3xf32>
    %177 = vector.multi_reduction <add>, %176, %cst_58 [1] : vector<3x3xf32> to vector<3xf32>
    %178 = vector.shape_cast %177 : vector<3xf32> to vector<3x1xf32>
    %179 = tpu.reciprocal %178 {approx = true} : vector<3x1xf32> -> vector<3x1xf32>
    %180 = vector.broadcast %179 : vector<3x1xf32> to vector<3x3xf32>
    %181 = arith.mulf %176, %180 : vector<3x3xf32>
    %182 = arith.truncf %181 : vector<3x3xf32> to vector<3x3xbf16>
    %cst_59 = arith.constant dense<0.000000e+00> : vector<3x8xf32>
    %183 = tpu.matmul %182, %168, %cst_59 {dimension_numbers = #tpu.dot_dimension_numbers<[1], [0], [0], [1], [0, 0, 1, 1], [], []>} : vector<3x3xbf16>, vector<3x8xbf16>, vector<3x8xf32> -> vector<3x8xf32>
    %184 = tpu.concatenate %114, %137, %160, %183 in 1 : vector<3x8xf32>, vector<3x8xf32>, vector<3x8xf32>, vector<3x8xf32> -> vector<3x32xf32>
    %185 = arith.truncf %184 : vector<3x32xf32> to vector<3x32xbf16>
    %c0_60 = arith.constant 0 : index
    %c0_61 = arith.constant 0 : index
    %186 = vector.load %arg13[%c0_60, %c0_61] : memref<32x32xbf16, #tpu.memory_space<vmem>>, vector<32x32xbf16>
    %cst_62 = arith.constant dense<0.000000e+00> : vector<3x32xf32>
    %187 = tpu.matmul %185, %186, %cst_62 {dimension_numbers = #tpu.dot_dimension_numbers<[1], [0], [0], [1], [0, 0, 1, 1], [], []>} : vector<3x32xbf16>, vector<32x32xbf16>, vector<3x32xf32> -> vector<3x32xf32>
    %c0_63 = arith.constant 0 : index
    %c0_64 = arith.constant 0 : index
    %188 = vector.load %arg14[%c0_63, %c0_64] : memref<1x32xf32, #tpu.memory_space<vmem>>, vector<1x32xf32>
    %189 = vector.broadcast %188 : vector<1x32xf32> to vector<3x32xf32>
    %190 = arith.addf %187, %189 : vector<3x32xf32>
    %191 = arith.addf %58, %190 : vector<3x32xf32>
    %c0_65 = arith.constant 0 : index
    %c0_66 = arith.constant 0 : index
    %192 = vector.load %arg15[%c0_65, %c0_66] : memref<1x32xf32, #tpu.memory_space<vmem>>, vector<1x32xf32>
    %c0_67 = arith.constant 0 : index
    %c0_68 = arith.constant 0 : index
    %193 = vector.load %arg16[%c0_67, %c0_68] : memref<1x32xf32, #tpu.memory_space<vmem>>, vector<1x32xf32>
    %cst_69 = arith.constant dense<0.000000e+00> : vector<3xf32>
    %194 = vector.multi_reduction <add>, %191, %cst_69 [1] : vector<3x32xf32> to vector<3xf32>
    %195 = vector.shape_cast %194 : vector<3xf32> to vector<3x1xf32>
    %cst_70 = arith.constant 3.200000e+01 : f32
    %196 = vector.broadcast %cst_70 : f32 to vector<3x1xf32>
    %197 = arith.divf %195, %196 : vector<3x1xf32>
    %198 = vector.broadcast %197 : vector<3x1xf32> to vector<3x32xf32>
    %199 = arith.subf %191, %198 : vector<3x32xf32>
    %200 = arith.mulf %199, %199 : vector<3x32xf32>
    %cst_71 = arith.constant dense<0.000000e+00> : vector<3xf32>
    %201 = vector.multi_reduction <add>, %200, %cst_71 [1] : vector<3x32xf32> to vector<3xf32>
    %202 = vector.shape_cast %201 : vector<3xf32> to vector<3x1xf32>
    %cst_72 = arith.constant 3.200000e+01 : f32
    %203 = vector.broadcast %cst_72 : f32 to vector<3x1xf32>
    %204 = arith.divf %202, %203 : vector<3x1xf32>
    %205 = vector.broadcast %197 : vector<3x1xf32> to vector<3x32xf32>
    %206 = arith.subf %191, %205 : vector<3x32xf32>
    %cst_73 = arith.constant 9.99999974E-6 : f32
    %207 = vector.broadcast %cst_73 : f32 to vector<3x1xf32>
    %208 = arith.addf %204, %207 : vector<3x1xf32>
    %209 = math.rsqrt %208 : vector<3x1xf32>
    %210 = vector.broadcast %209 : vector<3x1xf32> to vector<3x32xf32>
    %211 = arith.mulf %206, %210 : vector<3x32xf32>
    %212 = vector.broadcast %192 : vector<1x32xf32> to vector<3x32xf32>
    %213 = arith.mulf %211, %212 : vector<3x32xf32>
    %214 = vector.broadcast %193 : vector<1x32xf32> to vector<3x32xf32>
    %215 = arith.addf %213, %214 : vector<3x32xf32>
    %216 = arith.truncf %215 : vector<3x32xf32> to vector<3x32xbf16>
    %c0_74 = arith.constant 0 : index
    %c0_75 = arith.constant 0 : index
    %217 = vector.load %arg17[%c0_74, %c0_75] : memref<32x32xbf16, #tpu.memory_space<vmem>>, vector<32x32xbf16>
    %cst_76 = arith.constant dense<0.000000e+00> : vector<3x32xf32>
    %218 = tpu.matmul %216, %217, %cst_76 {dimension_numbers = #tpu.dot_dimension_numbers<[1], [0], [0], [1], [0, 0, 1, 1], [], []>} : vector<3x32xbf16>, vector<32x32xbf16>, vector<3x32xf32> -> vector<3x32xf32>
    %c0_77 = arith.constant 0 : index
    %c0_78 = arith.constant 0 : index
    %219 = vector.load %arg18[%c0_77, %c0_78] : memref<1x32xf32, #tpu.memory_space<vmem>>, vector<1x32xf32>
    %220 = vector.broadcast %219 : vector<1x32xf32> to vector<3x32xf32>
    %221 = arith.addf %218, %220 : vector<3x32xf32>
    %c0_79 = arith.constant 0 : index
    %c0_80 = arith.constant 0 : index
    %222 = vector.load %arg19[%c0_79, %c0_80] : memref<32x32xbf16, #tpu.memory_space<vmem>>, vector<32x32xbf16>
    %cst_81 = arith.constant dense<0.000000e+00> : vector<3x32xf32>
    %223 = tpu.matmul %216, %222, %cst_81 {dimension_numbers = #tpu.dot_dimension_numbers<[1], [0], [0], [1], [0, 0, 1, 1], [], []>} : vector<3x32xbf16>, vector<32x32xbf16>, vector<3x32xf32> -> vector<3x32xf32>
    %c0_82 = arith.constant 0 : index
    %c0_83 = arith.constant 0 : index
    %224 = vector.load %arg20[%c0_82, %c0_83] : memref<1x32xf32, #tpu.memory_space<vmem>>, vector<1x32xf32>
    %225 = vector.broadcast %224 : vector<1x32xf32> to vector<3x32xf32>
    %226 = arith.addf %223, %225 : vector<3x32xf32>
    %227 = arith.negf %226 : vector<3x32xf32>
    %228 = math.exp %227 : vector<3x32xf32>
    %cst_84 = arith.constant 1.000000e+00 : f32
    %229 = vector.broadcast %cst_84 : f32 to vector<3x32xf32>
    %230 = arith.addf %229, %228 : vector<3x32xf32>
    %231 = arith.divf %229, %230 : vector<3x32xf32>
    %232 = arith.mulf %221, %231 : vector<3x32xf32>
    %c2 = arith.constant 2 : index
    %c0_85 = arith.constant 0 : index
    %233 = vector.load %arg21[%c2, %c0_85] : memref<3x32xf32, #tpu.memory_space<vmem>>, vector<1x32xf32>
    %234 = vector.broadcast %233 : vector<1x32xf32> to vector<3x32xf32>
    %235 = arith.mulf %232, %234 : vector<3x32xf32>
    %236 = arith.subi %4, %5 : vector<3x3xi32>
    %c2_i32 = arith.constant 2 : i32
    %237 = vector.broadcast %c2_i32 : i32 to vector<3x3xi32>
    %238 = arith.cmpi eq, %236, %237 : vector<3x3xi32>
    %239 = arith.extui %238 : vector<3x3xi1> to vector<3x3xi32>
    %240 = arith.sitofp %239 : vector<3x3xi32> to vector<3x3xf32>
    %cst_86 = arith.constant dense<0.000000e+00> : vector<3x32xf32>
    %241 = tpu.matmul %240, %232, %cst_86 {dimension_numbers = #tpu.dot_dimension_numbers<[1], [0], [0], [1], [0, 0, 1, 1], [], []>} : vector<3x3xf32>, vector<3x32xf32>, vector<3x32xf32> -> vector<3x32xf32>
    %c0_87 = arith.constant 0 : index
    %c0_88 = arith.constant 0 : index
    %242 = vector.load %arg21[%c0_87, %c0_88] : memref<3x32xf32, #tpu.memory_space<vmem>>, vector<1x32xf32>
    %243 = vector.broadcast %242 : vector<1x32xf32> to vector<3x32xf32>
    %244 = arith.mulf %241, %243 : vector<3x32xf32>
    %245 = arith.addf %235, %244 : vector<3x32xf32>
    %246 = arith.subi %4, %5 : vector<3x3xi32>
    %c1_i32 = arith.constant 1 : i32
    %247 = vector.broadcast %c1_i32 : i32 to vector<3x3xi32>
    %248 = arith.cmpi eq, %246, %247 : vector<3x3xi32>
    %249 = arith.extui %248 : vector<3x3xi1> to vector<3x3xi32>
    %250 = arith.sitofp %249 : vector<3x3xi32> to vector<3x3xf32>
    %cst_89 = arith.constant dense<0.000000e+00> : vector<3x32xf32>
    %251 = tpu.matmul %250, %232, %cst_89 {dimension_numbers = #tpu.dot_dimension_numbers<[1], [0], [0], [1], [0, 0, 1, 1], [], []>} : vector<3x3xf32>, vector<3x32xf32>, vector<3x32xf32> -> vector<3x32xf32>
    %c1 = arith.constant 1 : index
    %c0_90 = arith.constant 0 : index
    %252 = vector.load %arg21[%c1, %c0_90] : memref<3x32xf32, #tpu.memory_space<vmem>>, vector<1x32xf32>
    %253 = vector.broadcast %252 : vector<1x32xf32> to vector<3x32xf32>
    %254 = arith.mulf %251, %253 : vector<3x32xf32>
    %255 = arith.addf %245, %254 : vector<3x32xf32>
    %c0_91 = arith.constant 0 : index
    %c0_92 = arith.constant 0 : index
    %256 = vector.load %arg22[%c0_91, %c0_92] : memref<1x32xf32, #tpu.memory_space<vmem>>, vector<1x32xf32>
    %257 = vector.broadcast %256 : vector<1x32xf32> to vector<3x32xf32>
    %258 = arith.addf %255, %257 : vector<3x32xf32>
    %c0_93 = arith.constant 0 : index
    %c0_94 = arith.constant 0 : index
    %259 = vector.load %arg23[%c0_93, %c0_94] : memref<1x32xf32, #tpu.memory_space<vmem>>, vector<1x32xf32>
    %c0_95 = arith.constant 0 : index
    %c0_96 = arith.constant 0 : index
    %260 = vector.load %arg24[%c0_95, %c0_96] : memref<1x32xf32, #tpu.memory_space<vmem>>, vector<1x32xf32>
    %cst_97 = arith.constant dense<0.000000e+00> : vector<3xf32>
    %261 = vector.multi_reduction <add>, %258, %cst_97 [1] : vector<3x32xf32> to vector<3xf32>
    %262 = vector.shape_cast %261 : vector<3xf32> to vector<3x1xf32>
    %cst_98 = arith.constant 3.200000e+01 : f32
    %263 = vector.broadcast %cst_98 : f32 to vector<3x1xf32>
    %264 = arith.divf %262, %263 : vector<3x1xf32>
    %265 = vector.broadcast %264 : vector<3x1xf32> to vector<3x32xf32>
    %266 = arith.subf %258, %265 : vector<3x32xf32>
    %267 = arith.mulf %266, %266 : vector<3x32xf32>
    %cst_99 = arith.constant dense<0.000000e+00> : vector<3xf32>
    %268 = vector.multi_reduction <add>, %267, %cst_99 [1] : vector<3x32xf32> to vector<3xf32>
    %269 = vector.shape_cast %268 : vector<3xf32> to vector<3x1xf32>
    %cst_100 = arith.constant 3.200000e+01 : f32
    %270 = vector.broadcast %cst_100 : f32 to vector<3x1xf32>
    %271 = arith.divf %269, %270 : vector<3x1xf32>
    %272 = vector.broadcast %264 : vector<3x1xf32> to vector<3x32xf32>
    %273 = arith.subf %258, %272 : vector<3x32xf32>
    %cst_101 = arith.constant 9.99999974E-6 : f32
    %274 = vector.broadcast %cst_101 : f32 to vector<3x1xf32>
    %275 = arith.addf %271, %274 : vector<3x1xf32>
    %276 = math.rsqrt %275 : vector<3x1xf32>
    %277 = vector.broadcast %276 : vector<3x1xf32> to vector<3x32xf32>
    %278 = arith.mulf %273, %277 : vector<3x32xf32>
    %279 = vector.broadcast %259 : vector<1x32xf32> to vector<3x32xf32>
    %280 = arith.mulf %278, %279 : vector<3x32xf32>
    %281 = vector.broadcast %260 : vector<1x32xf32> to vector<3x32xf32>
    %282 = arith.addf %280, %281 : vector<3x32xf32>
    %283 = arith.negf %282 : vector<3x32xf32>
    %284 = math.exp %283 : vector<3x32xf32>
    %cst_102 = arith.constant 1.000000e+00 : f32
    %285 = vector.broadcast %cst_102 : f32 to vector<3x32xf32>
    %286 = arith.addf %285, %284 : vector<3x32xf32>
    %287 = arith.divf %285, %286 : vector<3x32xf32>
    %288 = arith.mulf %282, %287 : vector<3x32xf32>
    %289 = arith.truncf %288 : vector<3x32xf32> to vector<3x32xbf16>
    %c0_103 = arith.constant 0 : index
    %c0_104 = arith.constant 0 : index
    %290 = vector.load %arg25[%c0_103, %c0_104] : memref<32x32xbf16, #tpu.memory_space<vmem>>, vector<32x32xbf16>
    %cst_105 = arith.constant dense<0.000000e+00> : vector<3x32xf32>
    %291 = tpu.matmul %289, %290, %cst_105 {dimension_numbers = #tpu.dot_dimension_numbers<[1], [0], [0], [1], [0, 0, 1, 1], [], []>} : vector<3x32xbf16>, vector<32x32xbf16>, vector<3x32xf32> -> vector<3x32xf32>
    %c0_106 = arith.constant 0 : index
    %c0_107 = arith.constant 0 : index
    %292 = vector.load %arg26[%c0_106, %c0_107] : memref<1x32xf32, #tpu.memory_space<vmem>>, vector<1x32xf32>
    %293 = vector.broadcast %292 : vector<1x32xf32> to vector<3x32xf32>
    %294 = arith.addf %291, %293 : vector<3x32xf32>
    %295 = arith.addf %191, %294 : vector<3x32xf32>
    %c0_108 = arith.constant 0 : index
    %c0_109 = arith.constant 0 : index
    %296 = vector.load %arg27[%c0_108, %c0_109] : memref<1x32xf32, #tpu.memory_space<vmem>>, vector<1x32xf32>
    %c0_110 = arith.constant 0 : index
    %c0_111 = arith.constant 0 : index
    %297 = vector.load %arg28[%c0_110, %c0_111] : memref<1x32xf32, #tpu.memory_space<vmem>>, vector<1x32xf32>
    %cst_112 = arith.constant dense<0.000000e+00> : vector<3xf32>
    %298 = vector.multi_reduction <add>, %295, %cst_112 [1] : vector<3x32xf32> to vector<3xf32>
    %299 = vector.shape_cast %298 : vector<3xf32> to vector<3x1xf32>
    %cst_113 = arith.constant 3.200000e+01 : f32
    %300 = vector.broadcast %cst_113 : f32 to vector<3x1xf32>
    %301 = arith.divf %299, %300 : vector<3x1xf32>
    %302 = vector.broadcast %301 : vector<3x1xf32> to vector<3x32xf32>
    %303 = arith.subf %295, %302 : vector<3x32xf32>
    %304 = arith.mulf %303, %303 : vector<3x32xf32>
    %cst_114 = arith.constant dense<0.000000e+00> : vector<3xf32>
    %305 = vector.multi_reduction <add>, %304, %cst_114 [1] : vector<3x32xf32> to vector<3xf32>
    %306 = vector.shape_cast %305 : vector<3xf32> to vector<3x1xf32>
    %cst_115 = arith.constant 3.200000e+01 : f32
    %307 = vector.broadcast %cst_115 : f32 to vector<3x1xf32>
    %308 = arith.divf %306, %307 : vector<3x1xf32>
    %309 = vector.broadcast %301 : vector<3x1xf32> to vector<3x32xf32>
    %310 = arith.subf %295, %309 : vector<3x32xf32>
    %cst_116 = arith.constant 9.99999974E-6 : f32
    %311 = vector.broadcast %cst_116 : f32 to vector<3x1xf32>
    %312 = arith.addf %308, %311 : vector<3x1xf32>
    %313 = math.rsqrt %312 : vector<3x1xf32>
    %314 = vector.broadcast %313 : vector<3x1xf32> to vector<3x32xf32>
    %315 = arith.mulf %310, %314 : vector<3x32xf32>
    %316 = vector.broadcast %296 : vector<1x32xf32> to vector<3x32xf32>
    %317 = arith.mulf %315, %316 : vector<3x32xf32>
    %318 = vector.broadcast %297 : vector<1x32xf32> to vector<3x32xf32>
    %319 = arith.addf %317, %318 : vector<3x32xf32>
    %320 = arith.truncf %319 : vector<3x32xf32> to vector<3x32xbf16>
    %c0_117 = arith.constant 0 : index
    %c0_118 = arith.constant 0 : index
    %321 = vector.load %arg29[%c0_117, %c0_118] : memref<32x64xbf16, #tpu.memory_space<vmem>>, vector<32x64xbf16>
    %cst_119 = arith.constant dense<0.000000e+00> : vector<3x64xf32>
    %322 = tpu.matmul %320, %321, %cst_119 {dimension_numbers = #tpu.dot_dimension_numbers<[1], [0], [0], [1], [0, 0, 1, 1], [], []>} : vector<3x32xbf16>, vector<32x64xbf16>, vector<3x64xf32> -> vector<3x64xf32>
    %c0_120 = arith.constant 0 : index
    %c0_121 = arith.constant 0 : index
    %323 = vector.load %arg30[%c0_120, %c0_121] : memref<1x64xf32, #tpu.memory_space<vmem>>, vector<1x64xf32>
    %324 = vector.broadcast %323 : vector<1x64xf32> to vector<3x64xf32>
    %325 = arith.addf %322, %324 : vector<3x64xf32>
    %326 = arith.negf %325 : vector<3x64xf32>
    %327 = math.exp %326 : vector<3x64xf32>
    %cst_122 = arith.constant 1.000000e+00 : f32
    %328 = vector.broadcast %cst_122 : f32 to vector<3x64xf32>
    %329 = arith.addf %328, %327 : vector<3x64xf32>
    %330 = arith.divf %328, %329 : vector<3x64xf32>
    %331 = arith.mulf %325, %330 : vector<3x64xf32>
    %332 = arith.truncf %331 : vector<3x64xf32> to vector<3x64xbf16>
    %c0_123 = arith.constant 0 : index
    %c0_124 = arith.constant 0 : index
    %333 = vector.load %arg31[%c0_123, %c0_124] : memref<64x32xbf16, #tpu.memory_space<vmem>>, vector<64x32xbf16>
    %cst_125 = arith.constant dense<0.000000e+00> : vector<3x32xf32>
    %334 = tpu.matmul %332, %333, %cst_125 {dimension_numbers = #tpu.dot_dimension_numbers<[1], [0], [0], [1], [0, 0, 1, 1], [], []>} : vector<3x64xbf16>, vector<64x32xbf16>, vector<3x32xf32> -> vector<3x32xf32>
    %c0_126 = arith.constant 0 : index
    %c0_127 = arith.constant 0 : index
    %335 = vector.load %arg32[%c0_126, %c0_127] : memref<1x32xf32, #tpu.memory_space<vmem>>, vector<1x32xf32>
    %336 = vector.broadcast %335 : vector<1x32xf32> to vector<3x32xf32>
    %337 = arith.addf %334, %336 : vector<3x32xf32>
    %cst_128 = arith.constant 5.000000e-01 : f32
    %338 = vector.broadcast %cst_128 : f32 to vector<3x32xf32>
    %339 = arith.mulf %338, %337 : vector<3x32xf32>
    %340 = arith.addf %295, %339 : vector<3x32xf32>
    %c0_129 = arith.constant 0 : index
    %c0_130 = arith.constant 0 : index
    %341 = vector.load %arg33[%c0_129, %c0_130] : memref<1x32xf32, #tpu.memory_space<vmem>>, vector<1x32xf32>
    %c0_131 = arith.constant 0 : index
    %c0_132 = arith.constant 0 : index
    %342 = vector.load %arg34[%c0_131, %c0_132] : memref<1x32xf32, #tpu.memory_space<vmem>>, vector<1x32xf32>
    %cst_133 = arith.constant dense<0.000000e+00> : vector<3xf32>
    %343 = vector.multi_reduction <add>, %340, %cst_133 [1] : vector<3x32xf32> to vector<3xf32>
    %344 = vector.shape_cast %343 : vector<3xf32> to vector<3x1xf32>
    %cst_134 = arith.constant 3.200000e+01 : f32
    %345 = vector.broadcast %cst_134 : f32 to vector<3x1xf32>
    %346 = arith.divf %344, %345 : vector<3x1xf32>
    %347 = vector.broadcast %346 : vector<3x1xf32> to vector<3x32xf32>
    %348 = arith.subf %340, %347 : vector<3x32xf32>
    %349 = arith.mulf %348, %348 : vector<3x32xf32>
    %cst_135 = arith.constant dense<0.000000e+00> : vector<3xf32>
    %350 = vector.multi_reduction <add>, %349, %cst_135 [1] : vector<3x32xf32> to vector<3xf32>
    %351 = vector.shape_cast %350 : vector<3xf32> to vector<3x1xf32>
    %cst_136 = arith.constant 3.200000e+01 : f32
    %352 = vector.broadcast %cst_136 : f32 to vector<3x1xf32>
    %353 = arith.divf %351, %352 : vector<3x1xf32>
    %354 = vector.broadcast %346 : vector<3x1xf32> to vector<3x32xf32>
    %355 = arith.subf %340, %354 : vector<3x32xf32>
    %cst_137 = arith.constant 9.99999974E-6 : f32
    %356 = vector.broadcast %cst_137 : f32 to vector<3x1xf32>
    %357 = arith.addf %353, %356 : vector<3x1xf32>
    %358 = math.rsqrt %357 : vector<3x1xf32>
    %359 = vector.broadcast %358 : vector<3x1xf32> to vector<3x32xf32>
    %360 = arith.mulf %355, %359 : vector<3x32xf32>
    %361 = vector.broadcast %341 : vector<1x32xf32> to vector<3x32xf32>
    %362 = arith.mulf %360, %361 : vector<3x32xf32>
    %363 = vector.broadcast %342 : vector<1x32xf32> to vector<3x32xf32>
    %364 = arith.addf %362, %363 : vector<3x32xf32>
    %c0_138 = arith.constant 0 : index
    %c0_139 = arith.constant 0 : index
    %c0_140 = arith.constant 0 : index
    %365 = vector.load %arg35[%c0_138, %c0_139, %c0_140] : memref<1x3x32xf32, #tpu.memory_space<vmem>>, vector<1x3x32xf32>
    %366 = vector.shape_cast %365 : vector<1x3x32xf32> to vector<3x32xf32>
    %367 = vector.shape_cast %364 : vector<3x32xf32> to vector<1x3x32xf32>
    tpu.vector_store %arg35[%c0_138, %c0_139, %c0_140], %367 {strides = array<i32>} : memref<1x3x32xf32, #tpu.memory_space<vmem>>, vector<1x3x32xf32>,
    return
  }
  func.func @transform_0(%arg0: i32, %arg1: memref<2xi32, #tpu.memory_space<smem>>) -> (i32, i32, i32) {
    %c0_i32 = arith.constant 0 : i32
    %c0_i32_0 = arith.constant 0 : i32
    %c0_i32_1 = arith.constant 0 : i32
    return %arg0, %c0_i32, %c0_i32_0 : i32, i32, i32
  }
  func.func @transform_1(%arg0: i32, %arg1: memref<2xi32, #tpu.memory_space<smem>>) -> (i32, i32) {
    %c0_i32 = arith.constant 0 : i32
    %c0_i32_0 = arith.constant 0 : i32
    %c0_i32_1 = arith.constant 0 : i32
    return %c0_i32, %c0_i32_0 : i32, i32
  }
  func.func @transform_2(%arg0: i32, %arg1: memref<2xi32, #tpu.memory_space<smem>>) -> (i32, i32) {
    %c0_i32 = arith.constant 0 : i32
    %c0_i32_0 = arith.constant 0 : i32
    %c0_i32_1 = arith.constant 0 : i32
    return %c0_i32, %c0_i32_0 : i32, i32
  }
  func.func @transform_3(%arg0: i32, %arg1: memref<2xi32, #tpu.memory_space<smem>>) -> (i32, i32) {
    %c0_i32 = arith.constant 0 : i32
    %c0_i32_0 = arith.constant 0 : i32
    %c0_i32_1 = arith.constant 0 : i32
    return %c0_i32, %c0_i32_0 : i32, i32
  }
  func.func @transform_4(%arg0: i32, %arg1: memref<2xi32, #tpu.memory_space<smem>>) -> (i32, i32) {
    %c0_i32 = arith.constant 0 : i32
    %c0_i32_0 = arith.constant 0 : i32
    %c0_i32_1 = arith.constant 0 : i32
    return %c0_i32, %c0_i32_0 : i32, i32
  }
  func.func @transform_5(%arg0: i32, %arg1: memref<2xi32, #tpu.memory_space<smem>>) -> (i32, i32) {
    %c0_i32 = arith.constant 0 : i32
    %c0_i32_0 = arith.constant 0 : i32
    %c0_i32_1 = arith.constant 0 : i32
    return %c0_i32, %c0_i32_0 : i32, i32
  }
  func.func @transform_6(%arg0: i32, %arg1: memref<2xi32, #tpu.memory_space<smem>>) -> (i32, i32) {
    %c0_i32 = arith.constant 0 : i32
    %c0_i32_0 = arith.constant 0 : i32
    %c0_i32_1 = arith.constant 0 : i32
    return %c0_i32, %c0_i32_0 : i32, i32
  }
  func.func @transform_7(%arg0: i32, %arg1: memref<2xi32, #tpu.memory_space<smem>>) -> (i32, i32) {
    %c0_i32 = arith.constant 0 : i32
    %c0_i32_0 = arith.constant 0 : i32
    %c0_i32_1 = arith.constant 0 : i32
    return %c0_i32, %c0_i32_0 : i32, i32
  }
  func.func @transform_8(%arg0: i32, %arg1: memref<2xi32, #tpu.memory_space<smem>>) -> (i32, i32) {
    %c0_i32 = arith.constant 0 : i32
    %c0_i32_0 = arith.constant 0 : i32
    %c0_i32_1 = arith.constant 0 : i32
    return %c0_i32, %c0_i32_0 : i32, i32
  }
  func.func @transform_9(%arg0: i32, %arg1: memref<2xi32, #tpu.memory_space<smem>>) -> (i32, i32) {
    %c0_i32 = arith.constant 0 : i32
    %c0_i32_0 = arith.constant 0 : i32
    %c0_i32_1 = arith.constant 0 : i32
    return %c0_i32, %c0_i32_0 : i32, i32
  }
  func.func @transform_10(%arg0: i32, %arg1: memref<2xi32, #tpu.memory_space<smem>>) -> (i32, i32) {
    %c0_i32 = arith.constant 0 : i32
    %c0_i32_0 = arith.constant 0 : i32
    %c0_i32_1 = arith.constant 0 : i32
    return %c0_i32, %c0_i32_0 : i32, i32
  }
  func.func @transform_11(%arg0: i32, %arg1: memref<2xi32, #tpu.memory_space<smem>>) -> (i32, i32) {
    %c0_i32 = arith.constant 0 : i32
    %c0_i32_0 = arith.constant 0 : i32
    %c0_i32_1 = arith.constant 0 : i32
    return %c0_i32, %c0_i32_0 : i32, i32
  }
  func.func @transform_12(%arg0: i32, %arg1: memref<2xi32, #tpu.memory_space<smem>>) -> (i32, i32) {
    %c0_i32 = arith.constant 0 : i32
    %c0_i32_0 = arith.constant 0 : i32
    %c0_i32_1 = arith.constant 0 : i32
    return %c0_i32, %c0_i32_0 : i32, i32
  }
  func.func @transform_13(%arg0: i32, %arg1: memref<2xi32, #tpu.memory_space<smem>>) -> (i32, i32) {
    %c0_i32 = arith.constant 0 : i32
    %c0_i32_0 = arith.constant 0 : i32
    %c0_i32_1 = arith.constant 0 : i32
    return %c0_i32, %c0_i32_0 : i32, i32
  }
  func.func @transform_14(%arg0: i32, %arg1: memref<2xi32, #tpu.memory_space<smem>>) -> (i32, i32) {
    %c0_i32 = arith.constant 0 : i32
    %c0_i32_0 = arith.constant 0 : i32
    %c0_i32_1 = arith.constant 0 : i32
    return %c0_i32, %c0_i32_0 : i32, i32
  }
  func.func @transform_15(%arg0: i32, %arg1: memref<2xi32, #tpu.memory_space<smem>>) -> (i32, i32) {
    %c0_i32 = arith.constant 0 : i32
    %c0_i32_0 = arith.constant 0 : i32
    %c0_i32_1 = arith.constant 0 : i32
    return %c0_i32, %c0_i32_0 : i32, i32
  }
  func.func @transform_16(%arg0: i32, %arg1: memref<2xi32, #tpu.memory_space<smem>>) -> (i32, i32) {
    %c0_i32 = arith.constant 0 : i32
    %c0_i32_0 = arith.constant 0 : i32
    %c0_i32_1 = arith.constant 0 : i32
    return %c0_i32, %c0_i32_0 : i32, i32
  }
  func.func @transform_17(%arg0: i32, %arg1: memref<2xi32, #tpu.memory_space<smem>>) -> (i32, i32) {
    %c0_i32 = arith.constant 0 : i32
    %c0_i32_0 = arith.constant 0 : i32
    %c0_i32_1 = arith.constant 0 : i32
    return %c0_i32, %c0_i32_0 : i32, i32
  }
  func.func @transform_18(%arg0: i32, %arg1: memref<2xi32, #tpu.memory_space<smem>>) -> (i32, i32) {
    %c0_i32 = arith.constant 0 : i32
    %c0_i32_0 = arith.constant 0 : i32
    %c0_i32_1 = arith.constant 0 : i32
    return %c0_i32, %c0_i32_0 : i32, i32
  }
  func.func @transform_19(%arg0: i32, %arg1: memref<2xi32, #tpu.memory_space<smem>>) -> (i32, i32) {
    %c0_i32 = arith.constant 0 : i32
    %c0_i32_0 = arith.constant 0 : i32
    %c0_i32_1 = arith.constant 0 : i32
    return %c0_i32, %c0_i32_0 : i32, i32
  }
  func.func @transform_20(%arg0: i32, %arg1: memref<2xi32, #tpu.memory_space<smem>>) -> (i32, i32) {
    %c0_i32 = arith.constant 0 : i32
    %c0_i32_0 = arith.constant 0 : i32
    %c0_i32_1 = arith.constant 0 : i32
    return %c0_i32, %c0_i32_0 : i32, i32
  }
  func.func @transform_21(%arg0: i32, %arg1: memref<2xi32, #tpu.memory_space<smem>>) -> (i32, i32) {
    %c0_i32 = arith.constant 0 : i32
    %c0_i32_0 = arith.constant 0 : i32
    %c0_i32_1 = arith.constant 0 : i32
    return %c0_i32, %c0_i32_0 : i32, i32
  }
  func.func @transform_22(%arg0: i32, %arg1: memref<2xi32, #tpu.memory_space<smem>>) -> (i32, i32) {
    %c0_i32 = arith.constant 0 : i32
    %c0_i32_0 = arith.constant 0 : i32
    %c0_i32_1 = arith.constant 0 : i32
    return %c0_i32, %c0_i32_0 : i32, i32
  }
  func.func @transform_23(%arg0: i32, %arg1: memref<2xi32, #tpu.memory_space<smem>>) -> (i32, i32) {
    %c0_i32 = arith.constant 0 : i32
    %c0_i32_0 = arith.constant 0 : i32
    %c0_i32_1 = arith.constant 0 : i32
    return %c0_i32, %c0_i32_0 : i32, i32
  }
  func.func @transform_24(%arg0: i32, %arg1: memref<2xi32, #tpu.memory_space<smem>>) -> (i32, i32) {
    %c0_i32 = arith.constant 0 : i32
    %c0_i32_0 = arith.constant 0 : i32
    %c0_i32_1 = arith.constant 0 : i32
    return %c0_i32, %c0_i32_0 : i32, i32
  }
  func.func @transform_25(%arg0: i32, %arg1: memref<2xi32, #tpu.memory_space<smem>>) -> (i32, i32) {
    %c0_i32 = arith.constant 0 : i32
    %c0_i32_0 = arith.constant 0 : i32
    %c0_i32_1 = arith.constant 0 : i32
    return %c0_i32, %c0_i32_0 : i32, i32
  }
  func.func @transform_26(%arg0: i32, %arg1: memref<2xi32, #tpu.memory_space<smem>>) -> (i32, i32) {
    %c0_i32 = arith.constant 0 : i32
    %c0_i32_0 = arith.constant 0 : i32
    %c0_i32_1 = arith.constant 0 : i32
    return %c0_i32, %c0_i32_0 : i32, i32
  }
  func.func @transform_27(%arg0: i32, %arg1: memref<2xi32, #tpu.memory_space<smem>>) -> (i32, i32) {
    %c0_i32 = arith.constant 0 : i32
    %c0_i32_0 = arith.constant 0 : i32
    %c0_i32_1 = arith.constant 0 : i32
    return %c0_i32, %c0_i32_0 : i32, i32
  }
  func.func @transform_28(%arg0: i32, %arg1: memref<2xi32, #tpu.memory_space<smem>>) -> (i32, i32) {
    %c0_i32 = arith.constant 0 : i32
    %c0_i32_0 = arith.constant 0 : i32
    %c0_i32_1 = arith.constant 0 : i32
    return %c0_i32, %c0_i32_0 : i32, i32
  }
  func.func @transform_29(%arg0: i32, %arg1: memref<2xi32, #tpu.memory_space<smem>>) -> (i32, i32) {
    %c0_i32 = arith.constant 0 : i32
    %c0_i32_0 = arith.constant 0 : i32
    %c0_i32_1 = arith.constant 0 : i32
    return %c0_i32, %c0_i32_0 : i32, i32
  }
  func.func @transform_30(%arg0: i32, %arg1: memref<2xi32, #tpu.memory_space<smem>>) -> (i32, i32) {
    %c0_i32 = arith.constant 0 : i32
    %c0_i32_0 = arith.constant 0 : i32
    %c0_i32_1 = arith.constant 0 : i32
    return %c0_i32, %c0_i32_0 : i32, i32
  }
  func.func @transform_31(%arg0: i32, %arg1: memref<2xi32, #tpu.memory_space<smem>>) -> (i32, i32) {
    %c0_i32 = arith.constant 0 : i32
    %c0_i32_0 = arith.constant 0 : i32
    %c0_i32_1 = arith.constant 0 : i32
    return %c0_i32, %c0_i32_0 : i32, i32
  }
  func.func @transform_32(%arg0: i32, %arg1: memref<2xi32, #tpu.memory_space<smem>>) -> (i32, i32) {
    %c0_i32 = arith.constant 0 : i32
    %c0_i32_0 = arith.constant 0 : i32
    %c0_i32_1 = arith.constant 0 : i32
    return %c0_i32, %c0_i32_0 : i32, i32
  }
  func.func @transform_33(%arg0: i32, %arg1: memref<2xi32, #tpu.memory_space<smem>>) -> (i32, i32, i32) {
    %c0_i32 = arith.constant 0 : i32
    %c0_i32_0 = arith.constant 0 : i32
    %c0_i32_1 = arith.constant 0 : i32
    return %arg0, %c0_i32, %c0_i32_0 : i32, i32, i32
  }
}

</mosaic_0001>

<llo_original>
// kernel: _lambda_.6
$region0: #{_lambda_.6}
  #allocation0 [shape = 'u32[]', space=smem, size = 0x4, offset = 0x4, fixed_abs, tag = 'smem constant byte address 0x4 - core index']
  #allocation1 [shape = 'u32[144,128]{1,0:T(1,128)}', space=vmem, size = 0x12000, scoped, tag = 'internal scratch']
  %s0 = inlined_call_operand.vmem [shape: f32[2,16,16], index: 0, kind: input, shape index: {}]
  %s1 = inlined_call_operand.vmem [shape: f32[2,16,16], index: 1, kind: output, shape index: {}]
  %s2 = sld [smem:[#allocation0]]
  $region37: #{_lambda_.6} parent=0
    _
  %s4 = ssub.s32 1, %s2
  %s5 = scalar_select 0, %s4, %s2
  loop: start=0, step=1, limit=4
  $region2: #{_lambda_.6} parent=0 // loop_pre_header
    _
  $region3: #{_lambda_.6} parent=0 // loop_header
    %s7 = sphi 0, %s11
    %p8 = scmp.ge.s32.totalorder %s7, 4
    %s17 = sphi 0, %s19
    %s20 = sphi 0, %s17
    %s21 = sphi 0, %s20
    %s37 = sphi 0, %s21
    %s43 = sphi 0, %s45
    %s46 = sphi 0, %s43
    %s47 = sphi 0, %s46
    %s63 = sphi 0, %s47
  $region4: #{_lambda_.6} parent=0 // loop_header_branch
    %10 = sbr.rel (%p8) target = $region8
  $region5: #{_lambda_.6} parent=0 // loop_body
    %s12 = ssub.s32 %s7, 1
    %s13 = ssub.s32 %s7, 2
    %s14 = sadd.s32 %s7, 1
    %s15 = ssub.s32 %s7, %s14
    %p16 = scmp.eq.s32.totalorder %s15, 0
    %s18 = sadd.s32 %s17, 1
    %s19 = scalar_select %p16, %s17, %s18
    %p22 = pneg %p16
    %p23 = scmp.eq.s32.totalorder %s7, 1
    %p24 = por %p22, %p23
    %p25 = scmp.ne.s32.totalorder %s17, %s20
    %p26 = scmp.eq.s32.totalorder %s7, 0
    %p27 = por %p25, %p26
    %p28 = scmp.ne.s32.totalorder %s17, %s20
    %p29 = scmp.eq.s32.totalorder %s12, 1
    %p30 = por %p28, %p29
    %p31 = scmp.ne.s32.totalorder %s20, %s21
    %p32 = scmp.eq.s32.totalorder %s12, 0
    %p33 = por %p31, %p32
    %p34 = scmp.ne.s32.totalorder %s20, %s21
    %p35 = scmp.eq.s32.totalorder %s13, 1
    %p36 = por %p34, %p35
    %p38 = scmp.ne.s32.totalorder %s21, %s37
    %p39 = scmp.eq.s32.totalorder %s13, 0
    %p40 = por %p38, %p39
    %s41 = ssub.s32 %s7, %s14
    %p42 = scmp.eq.s32.totalorder %s41, 0
    %s44 = sadd.s32 %s43, 1
    %s45 = scalar_select %p42, %s43, %s44
    %p48 = pneg %p42
    %p49 = scmp.eq.s32.totalorder %s7, 1
    %p50 = por %p48, %p49
    %p51 = scmp.ne.s32.totalorder %s43, %s46
    %p52 = scmp.eq.s32.totalorder %s7, 0
    %p53 = por %p51, %p52
    %p54 = scmp.ne.s32.totalorder %s43, %s46
    %p55 = scmp.eq.s32.totalorder %s12, 1
    %p56 = por %p54, %p55
    %p57 = scmp.ne.s32.totalorder %s46, %s47
    %p58 = scmp.eq.s32.totalorder %s12, 0
    %p59 = por %p57, %p58
    %p60 = scmp.ne.s32.totalorder %s46, %s47
    %p61 = scmp.eq.s32.totalorder %s13, 1
    %p62 = por %p60, %p61
    %p64 = scmp.ne.s32.totalorder %s47, %s63
    %p65 = scmp.eq.s32.totalorder %s13, 0
    %p66 = por %p64, %p65
    %p67 = scmp.le.s32.totalorder 1, %s7
    %p68 = scmp.lt.s32.totalorder %s7, 3
    %p69 = pnand %p67, %p68
    %p70 = pneg %p69
    // Predicated region
    $region9: #{_lambda_.6} parent=5 // pred_check
      _
    $region10: #{_lambda_.6} parent=5 // pred_check_branch
      %72 = sbr.rel (%p69) target = $region12
    $region11: #{_lambda_.6} parent=5 // pred_region
      %s73 = ssub.s32 %s7, 1
    $region12: #{_lambda_.6} parent=5 // pred_fallthru
      _
    %p74 = scmp.lt.s32.totalorder %s7, 2
    // Predicated region
    $region13: #{_lambda_.6} parent=5 // pred_check
      %p75 = pneg %p74
    $region14: #{_lambda_.6} parent=5 // pred_check_branch
      %77 = sbr.rel (%p75) target = $region16
    $region15: #{_lambda_.6} parent=5 // pred_region
      // Predicated region
      $region17: #{_lambda_.6} parent=15 // pred_check
        %p78 = pneg %p27
      $region18: #{_lambda_.6} parent=15 // pred_check_branch
        %80 = sbr.rel (%p78) target = $region20
      $region19: #{_lambda_.6} parent=15 // pred_region
        %p81 = scmp.lt.s32.totalorder %s7, 1
        %s82 = scalar_select %p81, %s7, 1
        %s83 = smul.addr %s82, 2
        %s84 = smul.addr %s83, 8
        %s85 = scalar_lea.vmem %s0, %s84
      $region20: #{_lambda_.6} parent=15 // pred_fallthru
        _
    $region16: #{_lambda_.6} parent=5 // pred_fallthru
      _
    %p86 = scmp.le.s32.totalorder 1, %s7
    %p87 = scmp.lt.s32.totalorder %s7, 3
    %p88 = pnand %p86, %p87
    %p89 = pneg %p88
    // Predicated region
    $region21: #{_lambda_.6} parent=5 // pred_check
      _
    $region22: #{_lambda_.6} parent=5 // pred_check_branch
      %91 = sbr.rel (%p88) target = $region24
    $region23: #{_lambda_.6} parent=5 // pred_region
      %s92 = ssub.s32 %s7, 1
      %p93 = scmp.lt.s32.totalorder %s12, 1
      %s94 = scalar_select %p93, %s12, 1
      %s95 = smul.addr %s94, 2
      %s96 = smul.addr %s95, 8
      %s97 = scalar_lea.vmem %s0, %s96
      %p98 = pneg %p33
      %p99 = pneg %p30
      %p100 = pneg %p59
      %p101 = pneg %p56
      %p102 = scmp.lt.s32.totalorder %s12, 1
      %s103 = scalar_select %p102, %s12, 1
      %s104 = smul.addr %s103, 2
      %s105 = smul.addr %s104, 8
      %s106 = scalar_lea.vmem %s1, %s105
      %p107 = scmp.lt.s32.totalorder %s12, 1
      %s108 = scalar_select %p107, %s12, 1
      %s109 = smul.addr %s108, 2
      %s110 = smul.addr %s109, 8
      %s111 = scalar_lea.vmem %s0, %s110
      %p112 = scmp.lt.s32.totalorder %s12, 1
      %s113 = scalar_select %p112, %s12, 1
      %s114 = smul.addr %s113, 2
      %s115 = smul.addr %s114, 8
      %s116 = scalar_lea.vmem %s1, %s115
      %v117 = vld [vmem:[%s111] sm:$0xff]
      %v118 = vld [vmem:[%s111 + $0x8] sm:$0xff]
      %vm119 = vcmask 130048
      %v120 = vsel %vm119, %v117, 0.0
      %v121 = vsel %vm119, %v118, 0.0
      %v122 = vadd.f32 %v120, %v121
      %v123 = vrot.slane %v122, 4
      %v124 = vadd.f32 %v122, %v123
      %v125 = vrot.slane %v124, 2
      %v126 = vadd.f32 %v124, %v125
      %v127 = vrot.slane %v126, 1
      %v128 = vadd.f32 %v126, %v127
      %v129 = vrcp.pop 16.0
      %v130 = vmul.f32 %v128, %v129
      %v131 = vsub.f32 %v117, %v130
      %v132 = vsub.f32 %v118, %v130
      %v133 = vmul.f32 %v131, %v131
      %v134 = vmul.f32 %v132, %v132
      %v135 = vsel %vm119, %v133, 0.0
      %v136 = vsel %vm119, %v134, 0.0
      %v137 = vadd.f32 %v135, %v136
      %v138 = vrot.slane %v137, 4
      %v139 = vadd.f32 %v137, %v138
      %v140 = vrot.slane %v139, 2
      %v141 = vadd.f32 %v139, %v140
      %v142 = vrot.slane %v141, 1
      %v143 = vadd.f32 %v141, %v142
      %v144 = vrcp.pop 15.0
      %v145 = vmul.f32 %v143, %v144
      %v146 = vrsqrt.pop %v145
      %v147 = vmul.f32 %v145, %v146
      %vm148 = vcmp.eq.f32.partialorder %v145, inf
      %v149 = vsel %vm148, %v145, %v147
      %vm150 = vcmp.eq.f32.partialorder %v145, 0.0
      %v151 = vand.u32 %v145, 2147483648
      %v152 = vsel %vm150, %v151, %v149
      %v153 = vadd.f32 %v152, 1e-05
      %v154 = vrcp.pop %v153
      %v155 = vmul.f32 %v131, %v154
      %v156 = vmul.f32 %v132, %v154
      %157 = vst.msk [vmem:[%s116] sm:$0xff] %vm119, %v155
      %158 = vst.msk [vmem:[%s116 + $0x8] sm:$0xff] %vm119, %v156
      %p159 = scmp.lt.s32.totalorder %s12, 1
      %s160 = scalar_select %p159, %s12, 1
      %s161 = smul.addr %s160, 2
      %s162 = smul.addr %s161, 8
      %s163 = scalar_lea.vmem %s1, %s162
      // Predicated region
      $region25: #{_lambda_.6} parent=23 // pred_check
        %p164 = pneg %p56
      $region26: #{_lambda_.6} parent=23 // pred_check_branch
        %166 = sbr.rel (%p164) target = $region28
      $region27: #{_lambda_.6} parent=23 // pred_region
        _
      $region28: #{_lambda_.6} parent=23 // pred_fallthru
        _
    $region24: #{_lambda_.6} parent=5 // pred_fallthru
      _
    %p167 = scmp.le.s32.totalorder 2, %s7
    // Predicated region
    $region29: #{_lambda_.6} parent=5 // pred_check
      %p168 = pneg %p167
    $region30: #{_lambda_.6} parent=5 // pred_check_branch
      %170 = sbr.rel (%p168) target = $region32
    $region31: #{_lambda_.6} parent=5 // pred_region
      %s171 = ssub.s32 %s7, 2
      // Predicated region
      $region33: #{_lambda_.6} parent=31 // pred_check
        %p172 = pneg %p62
      $region34: #{_lambda_.6} parent=31 // pred_check_branch
        %174 = sbr.rel (%p172) target = $region36
      $region35: #{_lambda_.6} parent=31 // pred_region
        %p175 = scmp.lt.s32.totalorder %s13, 1
        %s176 = scalar_select %p175, %s13, 1
        %s177 = smul.addr %s176, 2
        %s178 = smul.addr %s177, 8
        %s179 = scalar_lea.vmem %s1, %s178
      $region36: #{_lambda_.6} parent=31 // pred_fallthru
        _
    $region32: #{_lambda_.6} parent=5 // pred_fallthru
      _
  $region6: #{_lambda_.6} parent=0 // loop_footer
    %s11 = sadd.s32 1, %s7
  $region7: #{_lambda_.6} parent=0 // loop_footer_branch
    %6 = sbr.rel target = $region3
  $region8: #{_lambda_.6} parent=0 // loop_exit
    _

// kernel: _lambda_.7
$region0: #{_lambda_.7}
  #allocation0 [shape = 'u32[]', space=smem, size = 0x4, offset = 0x4, fixed_abs, tag = 'smem constant byte address 0x4 - core index']
  #allocation1 [shape = 'u32[144,128]{1,0:T(1,128)}', space=vmem, size = 0x12000, scoped, tag = 'internal scratch']
  %s0 = inlined_call_operand.vmem [shape: f32[98,9], index: 0, kind: input, shape index: {}]
  %s1 = inlined_call_operand.vmem [shape: bf16[9,32], index: 1, kind: input, shape index: {}]
  %s2 = inlined_call_operand.vmem [shape: f32[1,32], index: 2, kind: input, shape index: {}]
  %s3 = inlined_call_operand.vmem [shape: f32[98,32], index: 3, kind: output, shape index: {}]
  %s4 = sld [smem:[#allocation0]]
  $region22: #{_lambda_.7} parent=0
    _
  %s6 = ssub.s32 1, %s4
  %s7 = scalar_select 0, %s6, %s4
  // Predicated region
  $region2: #{_lambda_.7} parent=0 // pred_check
    _
  $region3: #{_lambda_.7} parent=0 // pred_check_branch
    %9 = sbr.rel (0) target = $region5
  $region4: #{_lambda_.7} parent=0 // pred_region
    _
  $region5: #{_lambda_.7} parent=0 // pred_fallthru
    _
  // Predicated region
  $region6: #{_lambda_.7} parent=0 // pred_check
    _
  $region7: #{_lambda_.7} parent=0 // pred_check_branch
    %11 = sbr.rel (0) target = $region9
  $region8: #{_lambda_.7} parent=0 // pred_region
    _
  $region9: #{_lambda_.7} parent=0 // pred_fallthru
    _
  // Predicated region
  $region10: #{_lambda_.7} parent=0 // pred_check
    _
  $region11: #{_lambda_.7} parent=0 // pred_check_branch
    %13 = sbr.rel (0) target = $region13
  $region12: #{_lambda_.7} parent=0 // pred_region
    _
  $region13: #{_lambda_.7} parent=0 // pred_fallthru
    _
  %v15 = vld [vmem:[%s0] sm:$0xff]
  %v16 = vld [vmem:[%s0 + $0x8] sm:$0xff]
  %v17 = vld [vmem:[%s0 + $0x10] sm:$0xff]
  %v18 = vld [vmem:[%s0 + $0x18] sm:$0xff]
  %v19 = vld [vmem:[%s0 + $0x20] sm:$0xff]
  %v20 = vld [vmem:[%s0 + $0x28] sm:$0xff]
  %v21 = vld [vmem:[%s0 + $0x30] sm:$0xff]
  %v22 = vld [vmem:[%s0 + $0x38] sm:$0xff]
  %v23 = vld [vmem:[%s0 + $0x40] sm:$0xff]
  %v24 = vld [vmem:[%s0 + $0x48] sm:$0xff]
  %v25 = vld [vmem:[%s0 + $0x50] sm:$0xff]
  %v26 = vld [vmem:[%s0 + $0x58] sm:$0xff]
  %v27 = vld [vmem:[%s0 + $0x60] sm:$0x3]
  %v28 = vpack.c.bf16 %v16, %v15
  %v29 = vpack.c.bf16 %v18, %v17
  %v30 = vpack.c.bf16 %v20, %v19
  %v31 = vpack.c.bf16 %v22, %v21
  %v32 = vpack.c.bf16 %v24, %v23
  %v33 = vpack.c.bf16 %v26, %v25
  %v34 = vpack.c.bf16 %v27, %v27
  %v35 = vld [vmem:[%s1] sm:$0xf]
  %v36 = vld [vmem:[%s1 + $0x4] sm:$0x1]
  %v37 = vld [vmem:[%s2] sm:$0x1]
  %v39 = vlaneseq
  %v40 = vshrl.u32 %v39, 7
  %v41 = vsub.s32 0, %v40
  %v42 = vrot.slane %v37, %v41
  %v46 = vunpack.c.l.b16 %v35
  %v47 = vunpack.c.l.b16 %v36
  %v48 = vpack.c.b16 %v47, %v46
  %vm49 = vcmask 72704
  %v51 = vsel %vm49, %v28, 0
  %v54 = vsel %vm49, %v29, 0
  %v57 = vsel %vm49, %v30, 0
  %v60 = vsel %vm49, %v31, 0
  %v63 = vsel %vm49, %v32, 0
  %v66 = vsel %vm49, %v33, 0
  %v69 = vsel %vm49, %v34, 0
  %vm71 = vcmask 1043456
  %vm72 = vcmask 1044480
  %v73 = vsel %vm71, 4294967295, 65535
  %v74 = vsel %vm72, %v73, 0
  %v76 = vand.u32 %v48, %v74
  %78 = vmatprep.subr.bf16.mxu0 0
  %79 = vmatpush1.bf16.msra.mxu0 %v76
  %80 = vmatprep.subr.bf16.mxu0 0
  %81 = vmatpush1.bf16.msra.mxu0 0
  %82 = vmatprep.subr.bf16.mxu0 0
  %83 = vmatpush1.bf16.msra.mxu0 0
  %84 = vmatprep.subr.bf16.mxu0 0
  %85 = vmatpush1.bf16.msra.mxu0 0
  %86 = vmatprep.subr.bf16.mxu0 0
  %87 = vmatpush1.bf16.msra.mxu0 0
  %88 = vmatprep.subr.bf16.mxu0 0
  %89 = vmatpush1.bf16.msra.mxu0 0
  %90 = vmatprep.subr.bf16.mxu0 0
  %91 = vmatpush1.bf16.msra.mxu0 0
  %92 = vmatprep.subr.bf16.mxu0 0
  %93 = vmatpush1.bf16.msra.mxu0 0
  %94 = vmatprep.subr.bf16.mxu0 0
  %95 = vmatpush1.bf16.msra.mxu0 0
  %96 = vmatprep.subr.bf16.mxu0 0
  %97 = vmatpush1.bf16.msra.mxu0 0
  %98 = vmatprep.subr.bf16.mxu0 0
  %99 = vmatpush1.bf16.msra.mxu0 0
  %100 = vmatprep.subr.bf16.mxu0 0
  %101 = vmatpush1.bf16.msra.mxu0 0
  %102 = vmatprep.subr.bf16.mxu0 0
  %103 = vmatpush1.bf16.msra.mxu0 0
  %104 = vmatprep.subr.bf16.mxu0 0
  %105 = vmatpush1.bf16.msra.mxu0 0
  %106 = vmatprep.subr.bf16.mxu0 0
  %107 = vmatpush1.bf16.msra.mxu0 0
  %108 = vmatprep.subr.bf16.mxu0 0
  %109 = vmatpush1.bf16.msra.mxu0 0
  %110 = vmatprep.mubr.bf16.mxu0 0
  %111 = vmatmul.mubr.bf16.gmra.mrb[0].mxu0 %v51
  %v112 = vpop.f32.mrb[0].mxu0
  %v113 = vadd.f32 %v42, %v112
  %v114 = vpop.f32.mrb[0].mxu0
  %v115 = vpop.f32.mrb[0].mxu0
  %v116 = vadd.f32 %v42, %v115
  %v117 = vpop.f32.mrb[0].mxu0
  %118 = vmatprep.mubr.bf16.mxu0 0
  %119 = vmatmul.mubr.bf16.gmra.mrb[0].mxu0 %v54
  %v120 = vpop.f32.mrb[0].mxu0
  %v121 = vadd.f32 %v42, %v120
  %v122 = vpop.f32.mrb[0].mxu0
  %v123 = vpop.f32.mrb[0].mxu0
  %v124 = vadd.f32 %v42, %v123
  %v125 = vpop.f32.mrb[0].mxu0
  %126 = vmatprep.mubr.bf16.mxu0 0
  %127 = vmatmul.mubr.bf16.gmra.mrb[0].mxu0 %v57
  %v128 = vpop.f32.mrb[0].mxu0
  %v129 = vadd.f32 %v42, %v128
  %v130 = vpop.f32.mrb[0].mxu0
  %v131 = vpop.f32.mrb[0].mxu0
  %v132 = vadd.f32 %v42, %v131
  %v133 = vpop.f32.mrb[0].mxu0
  %134 = vmatprep.mubr.bf16.mxu0 0
  %135 = vmatmul.mubr.bf16.gmra.mrb[0].mxu0 %v60
  %v136 = vpop.f32.mrb[0].mxu0
  %v137 = vadd.f32 %v42, %v136
  %v138 = vpop.f32.mrb[0].mxu0
  %v139 = vpop.f32.mrb[0].mxu0
  %v140 = vadd.f32 %v42, %v139
  %v141 = vpop.f32.mrb[0].mxu0
  %142 = vmatprep.mubr.bf16.mxu0 0
  %143 = vmatmul.mubr.bf16.gmra.mrb[0].mxu0 %v63
  %v144 = vpop.f32.mrb[0].mxu0
  %v145 = vadd.f32 %v42, %v144
  %v146 = vpop.f32.mrb[0].mxu0
  %v147 = vpop.f32.mrb[0].mxu0
  %v148 = vadd.f32 %v42, %v147
  %v149 = vpop.f32.mrb[0].mxu0
  %150 = vmatprep.mubr.bf16.mxu0 0
  %151 = vmatmul.mubr.bf16.gmra.mrb[0].mxu0 %v66
  %v152 = vpop.f32.mrb[0].mxu0
  %v153 = vadd.f32 %v42, %v152
  %v154 = vpop.f32.mrb[0].mxu0
  %v155 = vpop.f32.mrb[0].mxu0
  %v156 = vadd.f32 %v42, %v155
  %v157 = vpop.f32.mrb[0].mxu0
  %158 = vmatprep.mubr.bf16.mxu0 0
  %159 = vmatmul.mubr.bf16.gmra.mrb[0].mxu0 %v69
  %v160 = vpop.f32.mrb[0].mxu0
  %v161 = vadd.f32 %v42, %v160
  %v162 = vpop.f32.mrb[0].mxu0
  %v163 = vpop.f32.mrb[0].mxu0
  %v164 = vpop.f32.mrb[0].mxu0
  %165 = vdwg.mxu0
  %v166 = vmax.f32 %v113, 0.0
  %v167 = vmax.f32 %v116, 0.0
  %v168 = vmax.f32 %v121, 0.0
  %v169 = vmax.f32 %v124, 0.0
  %v170 = vmax.f32 %v129, 0.0
  %v171 = vmax.f32 %v132, 0.0
  %v172 = vmax.f32 %v137, 0.0
  %v173 = vmax.f32 %v140, 0.0
  %v174 = vmax.f32 %v145, 0.0
  %v175 = vmax.f32 %v148, 0.0
  %v176 = vmax.f32 %v153, 0.0
  %v177 = vmax.f32 %v156, 0.0
  %v178 = vmax.f32 %v161, 0.0
  %vm179 = vcmask 261120
  %180 = vst.msk [vmem:[%s3] sm:$0xff] %vm179, %v166
  %181 = vst.msk [vmem:[%s3 + $0x8] sm:$0xff] %vm179, %v167
  %182 = vst.msk [vmem:[%s3 + $0x10] sm:$0xff] %vm179, %v168
  %183 = vst.msk [vmem:[%s3 + $0x18] sm:$0xff] %vm179, %v169
  %184 = vst.msk [vmem:[%s3 + $0x20] sm:$0xff] %vm179, %v170
  %185 = vst.msk [vmem:[%s3 + $0x28] sm:$0xff] %vm179, %v171
  %186 = vst.msk [vmem:[%s3 + $0x30] sm:$0xff] %vm179, %v172
  %187 = vst.msk [vmem:[%s3 + $0x38] sm:$0xff] %vm179, %v173
  %188 = vst.msk [vmem:[%s3 + $0x40] sm:$0xff] %vm179, %v174
  %189 = vst.msk [vmem:[%s3 + $0x48] sm:$0xff] %vm179, %v175
  %190 = vst.msk [vmem:[%s3 + $0x50] sm:$0xff] %vm179, %v176
  %191 = vst.msk [vmem:[%s3 + $0x58] sm:$0xff] %vm179, %v177
  %vm192 = vcmask 254976
  %193 = vst.msk [vmem:[%s3 + $0x60] sm:$0x3] %vm192, %v178
  // Predicated region
  $region14: #{_lambda_.7} parent=0 // pred_check
    _
  $region15: #{_lambda_.7} parent=0 // pred_check_branch
    %195 = sbr.rel (0) target = $region17
  $region16: #{_lambda_.7} parent=0 // pred_region
    _
  $region17: #{_lambda_.7} parent=0 // pred_fallthru
    _
  // Predicated region
  $region18: #{_lambda_.7} parent=0 // pred_check
    _
  $region19: #{_lambda_.7} parent=0 // pred_check_branch
    %197 = sbr.rel (0) target = $region21
  $region20: #{_lambda_.7} parent=0 // pred_region
    _
  $region21: #{_lambda_.7} parent=0 // pred_fallthru
    _

// kernel: _lambda_.9
$region0: #{_lambda_.9}
  #allocation0 [shape = 'u32[]', space=smem, size = 0x4, offset = 0x4, fixed_abs, tag = 'smem constant byte address 0x4 - core index']
  #allocation1 [shape = 'u32[144,128]{1,0:T(1,128)}', space=vmem, size = 0x12000, scoped, tag = 'internal scratch']
  %s0 = inlined_call_operand.vmem [shape: f32[6,96], index: 0, kind: input, shape index: {}]
  %s1 = inlined_call_operand.vmem [shape: bf16[96,32], index: 1, kind: input, shape index: {}]
  %s2 = inlined_call_operand.vmem [shape: f32[1,32], index: 2, kind: input, shape index: {}]
  %s3 = inlined_call_operand.vmem [shape: bf16[32,32], index: 3, kind: input, shape index: {}]
  %s4 = inlined_call_operand.vmem [shape: f32[1,32], index: 4, kind: input, shape index: {}]
  %s5 = inlined_call_operand.vmem [shape: f32[6,32], index: 5, kind: output, shape index: {}]
  %s6 = sld [smem:[#allocation0]]
  $region30: #{_lambda_.9} parent=0
    _
  %s8 = ssub.s32 1, %s6
  %s9 = scalar_select 0, %s8, %s6
  // Predicated region
  $region2: #{_lambda_.9} parent=0 // pred_check
    _
  $region3: #{_lambda_.9} parent=0 // pred_check_branch
    %11 = sbr.rel (0) target = $region5
  $region4: #{_lambda_.9} parent=0 // pred_region
    _
  $region5: #{_lambda_.9} parent=0 // pred_fallthru
    _
  // Predicated region
  $region6: #{_lambda_.9} parent=0 // pred_check
    _
  $region7: #{_lambda_.9} parent=0 // pred_check_branch
    %13 = sbr.rel (0) target = $region9
  $region8: #{_lambda_.9} parent=0 // pred_region
    _
  $region9: #{_lambda_.9} parent=0 // pred_fallthru
    _
  // Predicated region
  $region10: #{_lambda_.9} parent=0 // pred_check
    _
  $region11: #{_lambda_.9} parent=0 // pred_check_branch
    %15 = sbr.rel (0) target = $region13
  $region12: #{_lambda_.9} parent=0 // pred_region
    _
  $region13: #{_lambda_.9} parent=0 // pred_fallthru
    _
  // Predicated region
  $region14: #{_lambda_.9} parent=0 // pred_check
    _
  $region15: #{_lambda_.9} parent=0 // pred_check_branch
    %17 = sbr.rel (0) target = $region17
  $region16: #{_lambda_.9} parent=0 // pred_region
    _
  $region17: #{_lambda_.9} parent=0 // pred_fallthru
    _
  // Predicated region
  $region18: #{_lambda_.9} parent=0 // pred_check
    _
  $region19: #{_lambda_.9} parent=0 // pred_check_branch
    %19 = sbr.rel (0) target = $region21
  $region20: #{_lambda_.9} parent=0 // pred_region
    _
  $region21: #{_lambda_.9} parent=0 // pred_fallthru
    _
  %v21 = vld [vmem:[%s0] sm:$0x3f]
  %v22 = vpack.c.bf16 %v21, %v21
  %v23 = vld [vmem:[%s1] sm:$0xf]
  %v24 = vld [vmem:[%s1 + $0x4] sm:$0xf]
  %v25 = vld [vmem:[%s1 + $0x8] sm:$0xf]
  %v26 = vld [vmem:[%s1 + $0xc] sm:$0xf]
  %v27 = vld [vmem:[%s1 + $0x10] sm:$0xf]
  %v28 = vld [vmem:[%s1 + $0x14] sm:$0xf]
  %v29 = vld [vmem:[%s1 + $0x18] sm:$0xf]
  %v30 = vld [vmem:[%s1 + $0x1c] sm:$0xf]
  %v31 = vld [vmem:[%s1 + $0x20] sm:$0xf]
  %v32 = vld [vmem:[%s1 + $0x24] sm:$0xf]
  %v33 = vld [vmem:[%s1 + $0x28] sm:$0xf]
  %v34 = vld [vmem:[%s1 + $0x2c] sm:$0xf]
  %v35 = vld [vmem:[%s2] sm:$0x1]
  %v37 = vlaneseq
  %v38 = vshrl.u32 %v37, 7
  %v39 = vsub.s32 0, %v38
  %v40 = vrot.slane %v35, %v39
  %v54 = vunpack.c.l.b16 %v23
  %v55 = vunpack.c.l.b16 %v24
  %v56 = vunpack.c.l.b16 %v25
  %v57 = vunpack.c.l.b16 %v26
  %v58 = vunpack.c.l.b16 %v27
  %v59 = vunpack.c.l.b16 %v28
  %v60 = vunpack.c.l.b16 %v29
  %v61 = vunpack.c.l.b16 %v30
  %v62 = vunpack.c.l.b16 %v31
  %v63 = vunpack.c.l.b16 %v32
  %v64 = vunpack.c.l.b16 %v33
  %v65 = vunpack.c.l.b16 %v34
  %v66 = vpack.c.b16 %v55, %v54
  %v67 = vpack.c.b16 %v57, %v56
  %v68 = vpack.c.b16 %v59, %v58
  %v69 = vpack.c.b16 %v61, %v60
  %v70 = vpack.c.b16 %v63, %v62
  %v71 = vpack.c.b16 %v65, %v64
  %vm78 = vcmask 785408
  %v80 = vsel %vm78, %v22, 0
  %82 = vmatprep.subr.bf16.mxu0 0
  %83 = vmatpush1.bf16.msra.mxu0 %v66
  %84 = vmatprep.subr.bf16.mxu0 0
  %85 = vmatpush1.bf16.msra.mxu0 %v67
  %86 = vmatprep.subr.bf16.mxu0 0
  %87 = vmatpush1.bf16.msra.mxu0 %v68
  %88 = vmatprep.subr.bf16.mxu0 0
  %89 = vmatpush1.bf16.msra.mxu0 %v69
  %90 = vmatprep.subr.bf16.mxu0 0
  %91 = vmatpush1.bf16.msra.mxu0 %v70
  %92 = vmatprep.subr.bf16.mxu0 0
  %93 = vmatpush1.bf16.msra.mxu0 %v71
  %94 = vmatprep.subr.bf16.mxu0 0
  %95 = vmatpush1.bf16.msra.mxu0 0
  %96 = vmatprep.subr.bf16.mxu0 0
  %97 = vmatpush1.bf16.msra.mxu0 0
  %98 = vmatprep.subr.bf16.mxu0 0
  %99 = vmatpush1.bf16.msra.mxu0 0
  %100 = vmatprep.subr.bf16.mxu0 0
  %101 = vmatpush1.bf16.msra.mxu0 0
  %102 = vmatprep.subr.bf16.mxu0 0
  %103 = vmatpush1.bf16.msra.mxu0 0
  %104 = vmatprep.subr.bf16.mxu0 0
  %105 = vmatpush1.bf16.msra.mxu0 0
  %106 = vmatprep.subr.bf16.mxu0 0
  %107 = vmatpush1.bf16.msra.mxu0 0
  %108 = vmatprep.subr.bf16.mxu0 0
  %109 = vmatpush1.bf16.msra.mxu0 0
  %110 = vmatprep.subr.bf16.mxu0 0
  %111 = vmatpush1.bf16.msra.mxu0 0
  %112 = vmatprep.subr.bf16.mxu0 0
  %113 = vmatpush1.bf16.msra.mxu0 0
  %114 = vmatprep.mubr.bf16.mxu0 0
  %115 = vmatmul.mubr.bf16.gmra.mrb[0].mxu0 %v80
  %v116 = vpop.f32.mrb[0].mxu0
  %v117 = vadd.f32 %v40, %v116
  %v118 = vpop.f32.mrb[0].mxu0
  %v119 = vpop.f32.mrb[0].mxu0
  %v120 = vpop.f32.mrb[0].mxu0
  %121 = vdwg.mxu0
  %v122 = vpack.c.bf16 %v117, %v117
  %v123 = vld [vmem:[%s3] sm:$0xf]
  %v124 = vld [vmem:[%s3 + $0x4] sm:$0xf]
  %v125 = vld [vmem:[%s3 + $0x8] sm:$0xf]
  %v126 = vld [vmem:[%s3 + $0xc] sm:$0xf]
  %v127 = vld [vmem:[%s4] sm:$0x1]
  %v129 = vlaneseq
  %v130 = vshrl.u32 %v129, 7
  %v131 = vsub.s32 0, %v130
  %v132 = vrot.slane %v127, %v131
  %v138 = vunpack.c.l.b16 %v123
  %v139 = vunpack.c.l.b16 %v124
  %v140 = vunpack.c.l.b16 %v125
  %v141 = vunpack.c.l.b16 %v126
  %v142 = vpack.c.b16 %v139, %v138
  %v143 = vpack.c.b16 %v141, %v140
  %vm146 = vcmask 261120
  %v148 = vsel %vm146, %v122, 0
  %150 = vmatprep.subr.bf16.mxu0 0
  %151 = vmatpush1.bf16.msra.mxu0 %v142
  %152 = vmatprep.subr.bf16.mxu0 0
  %153 = vmatpush1.bf16.msra.mxu0 %v143
  %154 = vmatprep.subr.bf16.mxu0 0
  %155 = vmatpush1.bf16.msra.mxu0 0
  %156 = vmatprep.subr.bf16.mxu0 0
  %157 = vmatpush1.bf16.msra.mxu0 0
  %158 = vmatprep.subr.bf16.mxu0 0
  %159 = vmatpush1.bf16.msra.mxu0 0
  %160 = vmatprep.subr.bf16.mxu0 0
  %161 = vmatpush1.bf16.msra.mxu0 0
  %162 = vmatprep.subr.bf16.mxu0 0
  %163 = vmatpush1.bf16.msra.mxu0 0
  %164 = vmatprep.subr.bf16.mxu0 0
  %165 = vmatpush1.bf16.msra.mxu0 0
  %166 = vmatprep.subr.bf16.mxu0 0
  %167 = vmatpush1.bf16.msra.mxu0 0
  %168 = vmatprep.subr.bf16.mxu0 0
  %169 = vmatpush1.bf16.msra.mxu0 0
  %170 = vmatprep.subr.bf16.mxu0 0
  %171 = vmatpush1.bf16.msra.mxu0 0
  %172 = vmatprep.subr.bf16.mxu0 0
  %173 = vmatpush1.bf16.msra.mxu0 0
  %174 = vmatprep.subr.bf16.mxu0 0
  %175 = vmatpush1.bf16.msra.mxu0 0
  %176 = vmatprep.subr.bf16.mxu0 0
  %177 = vmatpush1.bf16.msra.mxu0 0
  %178 = vmatprep.subr.bf16.mxu0 0
  %179 = vmatpush1.bf16.msra.mxu0 0
  %180 = vmatprep.subr.bf16.mxu0 0
  %181 = vmatpush1.bf16.msra.mxu0 0
  %182 = vmatprep.mubr.bf16.mxu0 0
  %183 = vmatmul.mubr.bf16.gmra.mrb[0].mxu0 %v148
  %v184 = vpop.f32.mrb[0].mxu0
  %v185 = vadd.f32 %v132, %v184
  %v186 = vpop.f32.mrb[0].mxu0
  %v187 = vpop.f32.mrb[0].mxu0
  %v188 = vpop.f32.mrb[0].mxu0
  %189 = vdwg.mxu0
  %vm190 = vcmask 259072
  %191 = vst.msk [vmem:[%s5] sm:$0x3f] %vm190, %v185
  // Predicated region
  $region22: #{_lambda_.9} parent=0 // pred_check
    _
  $region23: #{_lambda_.9} parent=0 // pred_check_branch
    %193 = sbr.rel (0) target = $region25
  $region24: #{_lambda_.9} parent=0 // pred_region
    _
  $region25: #{_lambda_.9} parent=0 // pred_fallthru
    _
  // Predicated region
  $region26: #{_lambda_.9} parent=0 // pred_check
    _
  $region27: #{_lambda_.9} parent=0 // pred_check_branch
    %195 = sbr.rel (0) target = $region29
  $region28: #{_lambda_.9} parent=0 // pred_region
    _
  $region29: #{_lambda_.9} parent=0 // pred_fallthru
    _

// kernel: _lambda_.8
$region0: #{_lambda_.8}
  #allocation0 [shape = 'u32[]', space=smem, size = 0x4, offset = 0x4, fixed_abs, tag = 'smem constant byte address 0x4 - core index']
  #allocation1 [shape = 'u32[144,128]{1,0:T(1,128)}', space=vmem, size = 0x12000, scoped, tag = 'internal scratch']
  %s0 = inlined_call_operand.vmem [shape: f32[18,288], index: 0, kind: input, shape index: {}]
  %s1 = inlined_call_operand.vmem [shape: bf16[288,32], index: 1, kind: input, shape index: {}]
  %s2 = inlined_call_operand.vmem [shape: f32[1,32], index: 2, kind: input, shape index: {}]
  %s3 = inlined_call_operand.vmem [shape: f32[18,32], index: 3, kind: output, shape index: {}]
  %s4 = sld [smem:[#allocation0]]
  $region22: #{_lambda_.8} parent=0
    _
  %s6 = ssub.s32 1, %s4
  %s7 = scalar_select 0, %s6, %s4
  // Predicated region
  $region2: #{_lambda_.8} parent=0 // pred_check
    _
  $region3: #{_lambda_.8} parent=0 // pred_check_branch
    %9 = sbr.rel (0) target = $region5
  $region4: #{_lambda_.8} parent=0 // pred_region
    _
  $region5: #{_lambda_.8} parent=0 // pred_fallthru
    _
  // Predicated region
  $region6: #{_lambda_.8} parent=0 // pred_check
    _
  $region7: #{_lambda_.8} parent=0 // pred_check_branch
    %11 = sbr.rel (0) target = $region9
  $region8: #{_lambda_.8} parent=0 // pred_region
    _
  $region9: #{_lambda_.8} parent=0 // pred_fallthru
    _
  // Predicated region
  $region10: #{_lambda_.8} parent=0 // pred_check
    _
  $region11: #{_lambda_.8} parent=0 // pred_check_branch
    %13 = sbr.rel (0) target = $region13
  $region12: #{_lambda_.8} parent=0 // pred_region
    _
  $region13: #{_lambda_.8} parent=0 // pred_fallthru
    _
  %v15 = vld [vmem:[%s0] sm:$0xff]
  %v16 = vld [vmem:[%s0 + $0x8] sm:$0xff]
  %v17 = vld [vmem:[%s0 + $0x10] sm:$0xff]
  %v18 = vld [vmem:[%s0 + $0x18] sm:$0xff]
  %v19 = vld [vmem:[%s0 + $0x20] sm:$0xff]
  %v20 = vld [vmem:[%s0 + $0x28] sm:$0xff]
  %v21 = vld [vmem:[%s0 + $0x30] sm:$0x3]
  %v22 = vld [vmem:[%s0 + $0x38] sm:$0x3]
  %v23 = vld [vmem:[%s0 + $0x40] sm:$0x3]
  %v24 = vpack.c.bf16 %v18, %v15
  %v25 = vpack.c.bf16 %v19, %v16
  %v26 = vpack.c.bf16 %v20, %v17
  %v27 = vpack.c.bf16 %v21, %v21
  %v28 = vpack.c.bf16 %v22, %v22
  %v29 = vpack.c.bf16 %v23, %v23
  %v30 = vld [vmem:[%s1] sm:$0xf]
  %v31 = vld [vmem:[%s1 + $0x4] sm:$0xf]
  %v32 = vld [vmem:[%s1 + $0x8] sm:$0xf]
  %v33 = vld [vmem:[%s1 + $0xc] sm:$0xf]
  %v34 = vld [vmem:[%s1 + $0x10] sm:$0xf]
  %v35 = vld [vmem:[%s1 + $0x14] sm:$0xf]
  %v36 = vld [vmem:[%s1 + $0x18] sm:$0xf]
  %v37 = vld [vmem:[%s1 + $0x1c] sm:$0xf]
  %v38 = vld [vmem:[%s1 + $0x20] sm:$0xf]
  %v39 = vld [vmem:[%s1 + $0x24] sm:$0xf]
  %v40 = vld [vmem:[%s1 + $0x28] sm:$0xf]
  %v41 = vld [vmem:[%s1 + $0x2c] sm:$0xf]
  %v42 = vld [vmem:[%s1 + $0x30] sm:$0xf]
  %v43 = vld [vmem:[%s1 + $0x34] sm:$0xf]
  %v44 = vld [vmem:[%s1 + $0x38] sm:$0xf]
  %v45 = vld [vmem:[%s1 + $0x3c] sm:$0xf]
  %v46 = vld [vmem:[%s1 + $0x40] sm:$0xf]
  %v47 = vld [vmem:[%s1 + $0x44] sm:$0xf]
  %v48 = vld [vmem:[%s1 + $0x48] sm:$0xf]
  %v49 = vld [vmem:[%s1 + $0x4c] sm:$0xf]
  %v50 = vld [vmem:[%s1 + $0x50] sm:$0xf]
  %v51 = vld [vmem:[%s1 + $0x54] sm:$0xf]
  %v52 = vld [vmem:[%s1 + $0x58] sm:$0xf]
  %v53 = vld [vmem:[%s1 + $0x5c] sm:$0xf]
  %v54 = vld [vmem:[%s1 + $0x60] sm:$0xf]
  %v55 = vld [vmem:[%s1 + $0x64] sm:$0xf]
  %v56 = vld [vmem:[%s1 + $0x68] sm:$0xf]
  %v57 = vld [vmem:[%s1 + $0x6c] sm:$0xf]
  %v58 = vld [vmem:[%s1 + $0x70] sm:$0xf]
  %v59 = vld [vmem:[%s1 + $0x74] sm:$0xf]
  %v60 = vld [vmem:[%s1 + $0x78] sm:$0xf]
  %v61 = vld [vmem:[%s1 + $0x7c] sm:$0xf]
  %v62 = vld [vmem:[%s1 + $0x80] sm:$0xf]
  %v63 = vld [vmem:[%s1 + $0x84] sm:$0xf]
  %v64 = vld [vmem:[%s1 + $0x88] sm:$0xf]
  %v65 = vld [vmem:[%s1 + $0x8c] sm:$0xf]
  %v66 = vld [vmem:[%s2] sm:$0x1]
  %v68 = vlaneseq
  %v69 = vshrl.u32 %v68, 7
  %v70 = vsub.s32 0, %v69
  %v71 = vrot.slane %v66, %v70
  %v109 = vunpack.c.l.b16 %v30
  %v110 = vunpack.c.l.b16 %v31
  %v111 = vunpack.c.l.b16 %v32
  %v112 = vunpack.c.l.b16 %v33
  %v113 = vunpack.c.l.b16 %v34
  %v114 = vunpack.c.l.b16 %v35
  %v115 = vunpack.c.l.b16 %v36
  %v116 = vunpack.c.l.b16 %v37
  %v117 = vunpack.c.l.b16 %v38
  %v118 = vunpack.c.l.b16 %v39
  %v119 = vunpack.c.l.b16 %v40
  %v120 = vunpack.c.l.b16 %v41
  %v121 = vunpack.c.l.b16 %v42
  %v122 = vunpack.c.l.b16 %v43
  %v123 = vunpack.c.l.b16 %v44
  %v124 = vunpack.c.l.b16 %v45
  %v125 = vunpack.c.l.b16 %v46
  %v126 = vunpack.c.l.b16 %v47
  %v127 = vunpack.c.l.b16 %v48
  %v128 = vunpack.c.l.b16 %v49
  %v129 = vunpack.c.l.b16 %v50
  %v130 = vunpack.c.l.b16 %v51
  %v131 = vunpack.c.l.b16 %v52
  %v132 = vunpack.c.l.b16 %v53
  %v133 = vunpack.c.l.b16 %v54
  %v134 = vunpack.c.l.b16 %v55
  %v135 = vunpack.c.l.b16 %v56
  %v136 = vunpack.c.l.b16 %v57
  %v137 = vunpack.c.l.b16 %v58
  %v138 = vunpack.c.l.b16 %v59
  %v139 = vunpack.c.l.b16 %v60
  %v140 = vunpack.c.l.b16 %v61
  %v141 = vunpack.c.l.b16 %v62
  %v142 = vunpack.c.l.b16 %v63
  %v143 = vunpack.c.l.b16 %v64
  %v144 = vunpack.c.l.b16 %v65
  %v145 = vpack.c.b16 %v110, %v109
  %v146 = vpack.c.b16 %v112, %v111
  %v147 = vpack.c.b16 %v114, %v113
  %v148 = vpack.c.b16 %v116, %v115
  %v149 = vpack.c.b16 %v118, %v117
  %v150 = vpack.c.b16 %v120, %v119
  %v151 = vpack.c.b16 %v122, %v121
  %v152 = vpack.c.b16 %v124, %v123
  %v153 = vpack.c.b16 %v126, %v125
  %v154 = vpack.c.b16 %v128, %v127
  %v155 = vpack.c.b16 %v130, %v129
  %v156 = vpack.c.b16 %v132, %v131
  %v157 = vpack.c.b16 %v134, %v133
  %v158 = vpack.c.b16 %v136, %v135
  %v159 = vpack.c.b16 %v138, %v137
  %v160 = vpack.c.b16 %v140, %v139
  %v161 = vpack.c.b16 %v142, %v141
  %v162 = vpack.c.b16 %v144, %v143
  %vm181 = vcmask 261120
  %v183 = vsel %vm181, %v26, 0
  %v186 = vsel %vm181, %v29, 0
  %188 = vmatprep.subr.bf16.mxu0 0
  %189 = vmatpush1.bf16.msra.mxu0 %v145
  %190 = vmatprep.subr.bf16.mxu0 0
  %191 = vmatpush1.bf16.msra.mxu0 %v146
  %192 = vmatprep.subr.bf16.mxu0 0
  %193 = vmatpush1.bf16.msra.mxu0 %v147
  %194 = vmatprep.subr.bf16.mxu0 0
  %195 = vmatpush1.bf16.msra.mxu0 %v148
  %196 = vmatprep.subr.bf16.mxu0 0
  %197 = vmatpush1.bf16.msra.mxu0 %v149
  %198 = vmatprep.subr.bf16.mxu0 0
  %199 = vmatpush1.bf16.msra.mxu0 %v150
  %200 = vmatprep.subr.bf16.mxu0 0
  %201 = vmatpush1.bf16.msra.mxu0 %v151
  %202 = vmatprep.subr.bf16.mxu0 0
  %203 = vmatpush1.bf16.msra.mxu0 %v152
  %204 = vmatprep.subr.bf16.mxu0 0
  %205 = vmatpush1.bf16.msra.mxu0 %v153
  %206 = vmatprep.subr.bf16.mxu0 0
  %207 = vmatpush1.bf16.msra.mxu0 %v154
  %208 = vmatprep.subr.bf16.mxu0 0
  %209 = vmatpush1.bf16.msra.mxu0 %v155
  %210 = vmatprep.subr.bf16.mxu0 0
  %211 = vmatpush1.bf16.msra.mxu0 %v156
  %212 = vmatprep.subr.bf16.mxu0 0
  %213 = vmatpush1.bf16.msra.mxu0 %v157
  %214 = vmatprep.subr.bf16.mxu0 0
  %215 = vmatpush1.bf16.msra.mxu0 %v158
  %216 = vmatprep.subr.bf16.mxu0 0
  %217 = vmatpush1.bf16.msra.mxu0 %v159
  %218 = vmatprep.subr.bf16.mxu0 0
  %219 = vmatpush1.bf16.msra.mxu0 %v160
  %220 = vmatprep.mubr.bf16.mxu0 %v25
  %221 = vmatmul.mubr.bf16.gmra.mrb[0].mxu0 %v24
  %v222 = vpop.f32.mrb[0].mxu0
  %v223 = vadd.f32 %v71, %v222
  %v224 = vpop.f32.mrb[0].mxu0
  %v225 = vpop.f32.mrb[0].mxu0
  %v226 = vadd.f32 %v71, %v225
  %v227 = vpop.f32.mrb[0].mxu0
  %228 = vmatprep.mubr.bf16.mxu0 %v28
  %229 = vmatmul.mubr.bf16.gmra.mrb[0].mxu0 %v27
  %v230 = vpop.f32.mrb[0].mxu0
  %v231 = vadd.f32 %v71, %v230
  %v232 = vpop.f32.mrb[0].mxu0
  %v233 = vpop.f32.mrb[0].mxu0
  %v234 = vpop.f32.mrb[0].mxu0
  %235 = vdwg.mxu0
  %236 = vmatprep.subr.bf16.mxu0 0
  %237 = vmatpush1.bf16.msra.mxu0 %v161
  %238 = vmatprep.subr.bf16.mxu0 0
  %239 = vmatpush1.bf16.msra.mxu0 %v162
  %240 = vmatprep.subr.bf16.mxu0 0
  %241 = vmatpush1.bf16.msra.mxu0 0
  %242 = vmatprep.subr.bf16.mxu0 0
  %243 = vmatpush1.bf16.msra.mxu0 0
  %244 = vmatprep.subr.bf16.mxu0 0
  %245 = vmatpush1.bf16.msra.mxu0 0
  %246 = vmatprep.subr.bf16.mxu0 0
  %247 = vmatpush1.bf16.msra.mxu0 0
  %248 = vmatprep.subr.bf16.mxu0 0
  %249 = vmatpush1.bf16.msra.mxu0 0
  %250 = vmatprep.subr.bf16.mxu0 0
  %251 = vmatpush1.bf16.msra.mxu0 0
  %252 = vmatprep.subr.bf16.mxu0 0
  %253 = vmatpush1.bf16.msra.mxu0 0
  %254 = vmatprep.subr.bf16.mxu0 0
  %255 = vmatpush1.bf16.msra.mxu0 0
  %256 = vmatprep.subr.bf16.mxu0 0
  %257 = vmatpush1.bf16.msra.mxu0 0
  %258 = vmatprep.subr.bf16.mxu0 0
  %259 = vmatpush1.bf16.msra.mxu0 0
  %260 = vmatprep.subr.bf16.mxu0 0
  %261 = vmatpush1.bf16.msra.mxu0 0
  %262 = vmatprep.subr.bf16.mxu0 0
  %263 = vmatpush1.bf16.msra.mxu0 0
  %264 = vmatprep.subr.bf16.mxu0 0
  %265 = vmatpush1.bf16.msra.mxu0 0
  %266 = vmatprep.subr.bf16.mxu0 0
  %267 = vmatpush1.bf16.msra.mxu0 0
  %268 = vmatprep.mubr.bf16.mxu0 0
  %269 = vmatmul.mubr.bf16.gmra.mrb[0].mxu0 %v183
  %v270 = vpop.f32.mrb[0].mxu0
  %v271 = vadd.f32 %v223, %v270
  %v272 = vpop.f32.mrb[0].mxu0
  %v273 = vpop.f32.mrb[0].mxu0
  %v274 = vadd.f32 %v226, %v273
  %v275 = vpop.f32.mrb[0].mxu0
  %276 = vmatprep.mubr.bf16.mxu0 0
  %277 = vmatmul.mubr.bf16.gmra.mrb[0].mxu0 %v186
  %v278 = vpop.f32.mrb[0].mxu0
  %v279 = vadd.f32 %v231, %v278
  %v280 = vpop.f32.mrb[0].mxu0
  %v281 = vpop.f32.mrb[0].mxu0
  %v282 = vpop.f32.mrb[0].mxu0
  %283 = vdwg.mxu0
  %v284 = vmax.f32 %v271, 0.0
  %v285 = vmax.f32 %v274, 0.0
  %v286 = vmax.f32 %v279, 0.0
  %287 = vst.msk [vmem:[%s3] sm:$0xff] %vm181, %v284
  %288 = vst.msk [vmem:[%s3 + $0x8] sm:$0xff] %vm181, %v285
  %vm289 = vcmask 254976
  %290 = vst.msk [vmem:[%s3 + $0x10] sm:$0x3] %vm289, %v286
  // Predicated region
  $region14: #{_lambda_.8} parent=0 // pred_check
    _
  $region15: #{_lambda_.8} parent=0 // pred_check_branch
    %292 = sbr.rel (0) target = $region17
  $region16: #{_lambda_.8} parent=0 // pred_region
    _
  $region17: #{_lambda_.8} parent=0 // pred_fallthru
    _
  // Predicated region
  $region18: #{_lambda_.8} parent=0 // pred_check
    _
  $region19: #{_lambda_.8} parent=0 // pred_check_branch
    %294 = sbr.rel (0) target = $region21
  $region20: #{_lambda_.8} parent=0 // pred_region
    _
  $region21: #{_lambda_.8} parent=0 // pred_fallthru
    _

// kernel: _lambda_.10
$region0: #{_lambda_.10}
  #allocation0 [shape = 'u32[]', space=smem, size = 0x4, offset = 0x4, fixed_abs, tag = 'smem constant byte address 0x4 - core index']
  #allocation1 [shape = 'u32[144,128]{1,0:T(1,128)}', space=vmem, size = 0x12000, scoped, tag = 'internal scratch']
  #allocation2 [shape = 's32[1]{0}', space=sflag, size = 0x4, scoped, tag = 'scoped memory for _lambda_.10']
  #allocation3 [shape = 'u8[512]{0}', space=smem, size = 0x200, scoped, tag = 'prefetched SMEM operand 0']
  %s0 = inlined_call_operand.smem [shape: u32[35], index: -1, kind: input, shape index: {}]
  %s1 = sld [smem:[%s0]]
  %s2 = scalar_lea.smem %s0, 1
  %s3 = sld [smem:[%s2]]
  %s4 = scalar_lea.smem %s0, 2
  %s5 = sld [smem:[%s4]]
  %s6 = scalar_lea.smem %s0, 3
  %s7 = sld [smem:[%s6]]
  %s8 = scalar_lea.smem %s0, 4
  %s9 = sld [smem:[%s8]]
  %s10 = scalar_lea.smem %s0, 5
  %s11 = sld [smem:[%s10]]
  %s12 = scalar_lea.smem %s0, 6
  %s13 = sld [smem:[%s12]]
  %s14 = scalar_lea.smem %s0, 7
  %s15 = sld [smem:[%s14]]
  %s16 = scalar_lea.smem %s0, 8
  %s17 = sld [smem:[%s16]]
  %s18 = scalar_lea.smem %s0, 9
  %s19 = sld [smem:[%s18]]
  %s20 = scalar_lea.smem %s0, 10
  %s21 = sld [smem:[%s20]]
  %s22 = scalar_lea.smem %s0, 11
  %s23 = sld [smem:[%s22]]
  %s24 = scalar_lea.smem %s0, 12
  %s25 = sld [smem:[%s24]]
  %s26 = scalar_lea.smem %s0, 13
  %s27 = sld [smem:[%s26]]
  %s28 = scalar_lea.smem %s0, 14
  %s29 = sld [smem:[%s28]]
  %s30 = scalar_lea.smem %s0, 15
  %s31 = sld [smem:[%s30]]
  %s32 = scalar_lea.smem %s0, 16
  %s33 = sld [smem:[%s32]]
  %s34 = scalar_lea.smem %s0, 17
  %s35 = sld [smem:[%s34]]
  %s36 = scalar_lea.smem %s0, 18
  %s37 = sld [smem:[%s36]]
  %s38 = scalar_lea.smem %s0, 19
  %s39 = sld [smem:[%s38]]
  %s40 = scalar_lea.smem %s0, 20
  %s41 = sld [smem:[%s40]]
  %s42 = scalar_lea.smem %s0, 21
  %s43 = sld [smem:[%s42]]
  %s44 = scalar_lea.smem %s0, 22
  %s45 = sld [smem:[%s44]]
  %s46 = scalar_lea.smem %s0, 23
  %s47 = sld [smem:[%s46]]
  %s48 = scalar_lea.smem %s0, 24
  %s49 = sld [smem:[%s48]]
  %s50 = scalar_lea.smem %s0, 25
  %s51 = sld [smem:[%s50]]
  %s52 = scalar_lea.smem %s0, 26
  %s53 = sld [smem:[%s52]]
  %s54 = scalar_lea.smem %s0, 27
  %s55 = sld [smem:[%s54]]
  %s56 = scalar_lea.smem %s0, 28
  %s57 = sld [smem:[%s56]]
  %s58 = scalar_lea.smem %s0, 29
  %s59 = sld [smem:[%s58]]
  %s60 = scalar_lea.smem %s0, 30
  %s61 = sld [smem:[%s60]]
  %s62 = scalar_lea.smem %s0, 31
  %s63 = sld [smem:[%s62]]
  %s64 = scalar_lea.smem %s0, 32
  %s65 = sld [smem:[%s64]]
  %s66 = scalar_lea.smem %s0, 33
  %s67 = sld [smem:[%s66]]
  %s68 = scalar_lea.smem %s0, 34
  %s69 = sld [smem:[%s68]]
  %s70 = sld [smem:[#allocation0]]
  $region297: #{_lambda_.10} parent=0
    _
  %s72 = ssub.s32 1, %s70
  %s73 = scalar_select 0, %s72, %s70
  %75 = dma.hbm_to_smem %s1, 16, [#allocation3], [#allocation2]
  %76 = dma.done [#allocation2], 16
  %77 = sfence
  $region1: #{_lambda_.10} parent=0
    #allocation4 [shape = 'u8[4096]{0}', space=vmem, size = 0x1000, scoped, tag = 'input window, operand 1']
    #allocation5 [shape = 's32[2]{0}', space=sflag, size = 0x8, scoped, tag = 'scoped memory for _lambda_.10']
    #allocation6 [shape = 's32[2]{0}', space=sflag, size = 0x8, scoped, tag = 'scoped memory for _lambda_.10']
    #allocation7 [shape = 'u8[512]{0}', space=vmem, size = 0x400, scoped, tag = 'input window, operand 2, single buffered']
    #allocation8 [shape = 's32[1]{0}', space=sflag, size = 0x4, scoped, tag = 'scoped memory for _lambda_.10']
    #allocation9 [shape = 'u8[512]{0}', space=vmem, size = 0x400, scoped, tag = 'input window, operand 3, single buffered']
    #allocation10 [shape = 'u8[8192]{0}', space=vmem, size = 0x2000, scoped, tag = 'input window, operand 4, single buffered']
    #allocation11 [shape = 's32[1]{0}', space=sflag, size = 0x4, scoped, tag = 'scoped memory for _lambda_.10']
    #allocation12 [shape = 'u8[512]{0}', space=vmem, size = 0x400, scoped, tag = 'input window, operand 5, single buffered']
    #allocation13 [shape = 'u8[16384]{0}', space=vmem, size = 0x4000, scoped, tag = 'input window, operand 6, single buffered']
    #allocation14 [shape = 's32[1]{0}', space=sflag, size = 0x4, scoped, tag = 'scoped memory for _lambda_.10']
    #allocation15 [shape = 'u8[512]{0}', space=vmem, size = 0x400, scoped, tag = 'input window, operand 7, single buffered']
    #allocation16 [shape = 'u8[512]{0}', space=vmem, size = 0x400, scoped, tag = 'input window, operand 8, single buffered']
    #allocation17 [shape = 's32[1]{0}', space=sflag, size = 0x4, scoped, tag = 'scoped memory for _lambda_.10']
    #allocation18 [shape = 'u8[512]{0}', space=vmem, size = 0x400, scoped, tag = 'input window, operand 9, single buffered']
    #allocation19 [shape = 'u8[8192]{0}', space=vmem, size = 0x2000, scoped, tag = 'input window, operand 10, single buffered']
    #allocation20 [shape = 's32[1]{0}', space=sflag, size = 0x4, scoped, tag = 'scoped memory for _lambda_.10']
    #allocation21 [shape = 'u8[512]{0}', space=vmem, size = 0x400, scoped, tag = 'input window, operand 11, single buffered']
    #allocation22 [shape = 'u8[8192]{0}', space=vmem, size = 0x2000, scoped, tag = 'input window, operand 12, single buffered']
    #allocation23 [shape = 's32[1]{0}', space=sflag, size = 0x4, scoped, tag = 'scoped memory for _lambda_.10']
    #allocation24 [shape = 'u8[512]{0}', space=vmem, size = 0x400, scoped, tag = 'input window, operand 13, single buffered']
    #allocation25 [shape = 'u8[512]{0}', space=vmem, size = 0x400, scoped, tag = 'input window, operand 14, single buffered']
    #allocation26 [shape = 's32[1]{0}', space=sflag, size = 0x4, scoped, tag = 'scoped memory for _lambda_.10']
    #allocation27 [shape = 'u8[512]{0}', space=vmem, size = 0x400, scoped, tag = 'input window, operand 15, single buffered']
    #allocation28 [shape = 'u8[8192]{0}', space=vmem, size = 0x2000, scoped, tag = 'input window, operand 16, single buffered']
    #allocation29 [shape = 's32[1]{0}', space=sflag, size = 0x4, scoped, tag = 'scoped memory for _lambda_.10']
    #allocation30 [shape = 'u8[512]{0}', space=vmem, size = 0x400, scoped, tag = 'input window, operand 17, single buffered']
    #allocation31 [shape = 'u8[8192]{0}', space=vmem, size = 0x2000, scoped, tag = 'input window, operand 18, single buffered']
    #allocation32 [shape = 's32[1]{0}', space=sflag, size = 0x4, scoped, tag = 'scoped memory for _lambda_.10']
    #allocation33 [shape = 'u8[512]{0}', space=vmem, size = 0x400, scoped, tag = 'input window, operand 19, single buffered']
    #allocation34 [shape = 'u8[2048]{0}', space=vmem, size = 0x800, scoped, tag = 'input window, operand 20, single buffered']
    #allocation35 [shape = 's32[1]{0}', space=sflag, size = 0x4, scoped, tag = 'scoped memory for _lambda_.10']
    #allocation36 [shape = 'u8[512]{0}', space=vmem, size = 0x400, scoped, tag = 'input window, operand 21, single buffered']
    #allocation37 [shape = 'u8[512]{0}', space=vmem, size = 0x400, scoped, tag = 'input window, operand 22, single buffered']
    #allocation38 [shape = 's32[1]{0}', space=sflag, size = 0x4, scoped, tag = 'scoped memory for _lambda_.10']
    #allocation39 [shape = 'u8[512]{0}', space=vmem, size = 0x400, scoped, tag = 'input window, operand 23, single buffered']
    #allocation40 [shape = 'u8[8192]{0}', space=vmem, size = 0x2000, scoped, tag = 'input window, operand 24, single buffered']
    #allocation41 [shape = 's32[1]{0}', space=sflag, size = 0x4, scoped, tag = 'scoped memory for _lambda_.10']
    #allocation42 [shape = 'u8[512]{0}', space=vmem, size = 0x400, scoped, tag = 'input window, operand 25, single buffered']
    #allocation43 [shape = 'u8[512]{0}', space=vmem, size = 0x400, scoped, tag = 'input window, operand 26, single buffered']
    #allocation44 [shape = 's32[1]{0}', space=sflag, size = 0x4, scoped, tag = 'scoped memory for _lambda_.10']
    #allocation45 [shape = 'u8[512]{0}', space=vmem, size = 0x400, scoped, tag = 'input window, operand 27, single buffered']
    #allocation46 [shape = 'u8[8192]{0}', space=vmem, size = 0x2000, scoped, tag = 'input window, operand 28, single buffered']
    #allocation47 [shape = 's32[1]{0}', space=sflag, size = 0x4, scoped, tag = 'scoped memory for _lambda_.10']
    #allocation48 [shape = 'u8[512]{0}', space=vmem, size = 0x400, scoped, tag = 'input window, operand 29, single buffered']
    #allocation49 [shape = 'u8[16384]{0}', space=vmem, size = 0x4000, scoped, tag = 'input window, operand 30, single buffered']
    #allocation50 [shape = 's32[1]{0}', space=sflag, size = 0x4, scoped, tag = 'scoped memory for _lambda_.10']
    #allocation51 [shape = 'u8[512]{0}', space=vmem, size = 0x400, scoped, tag = 'input window, operand 31, single buffered']
    #allocation52 [shape = 'u8[512]{0}', space=vmem, size = 0x400, scoped, tag = 'input window, operand 32, single buffered']
    #allocation53 [shape = 's32[1]{0}', space=sflag, size = 0x4, scoped, tag = 'scoped memory for _lambda_.10']
    #allocation54 [shape = 'u8[512]{0}', space=vmem, size = 0x400, scoped, tag = 'input window, operand 33, single buffered']
    #allocation55 [shape = 'u8[4096]{0}', space=vmem, size = 0x1000, scoped, tag = 'output window, operand 0']
    %78 = vsyncpa [#allocation5], 0
    %s79 = scalar_lea.sflag [#allocation5], 1
    %80 = vsyncpa %s79, 0
    %81 = vsyncpa [#allocation8], 0
    %82 = vsyncpa [#allocation11], 0
    %83 = vsyncpa [#allocation14], 0
    %84 = vsyncpa [#allocation17], 0
    %85 = vsyncpa [#allocation20], 0
    %86 = vsyncpa [#allocation23], 0
    %87 = vsyncpa [#allocation26], 0
    %88 = vsyncpa [#allocation29], 0
    %89 = vsyncpa [#allocation32], 0
    %90 = vsyncpa [#allocation35], 0
    %91 = vsyncpa [#allocation38], 0
    %92 = vsyncpa [#allocation41], 0
    %93 = vsyncpa [#allocation44], 0
    %94 = vsyncpa [#allocation47], 0
    %95 = vsyncpa [#allocation50], 0
    %96 = vsyncpa [#allocation53], 0
    %97 = vsyncpa [#allocation6], 0
    %s98 = scalar_lea.sflag [#allocation6], 1
    %99 = vsyncpa %s98, 0
    loop: start=0, step=1, limit=4
    $region2: #{_lambda_.10} parent=1 // loop_pre_header
      _
    $region3: #{_lambda_.10} parent=1 // loop_header
      %s101 = sphi 0, %s105
      %p102 = scmp.ge.s32.totalorder %s101, 4
      %s111 = sphi 0, %s113
      %s114 = sphi 0, %s111
      %s115 = sphi 0, %s114
      %s131 = sphi 0, %s115
      %s135 = sphi 0, %s135
      %s137 = sphi 0, %s135
      %s138 = sphi 0, %s137
      %s152 = sphi 0, %s138
      %s156 = sphi 0, %s156
      %s158 = sphi 0, %s156
      %s159 = sphi 0, %s158
      %s173 = sphi 0, %s159
      %s177 = sphi 0, %s177
      %s179 = sphi 0, %s177
      %s180 = sphi 0, %s179
      %s194 = sphi 0, %s180
      %s198 = sphi 0, %s198
      %s200 = sphi 0, %s198
      %s201 = sphi 0, %s200
      %s215 = sphi 0, %s201
      %s219 = sphi 0, %s219
      %s221 = sphi 0, %s219
      %s222 = sphi 0, %s221
      %s236 = sphi 0, %s222
      %s240 = sphi 0, %s240
      %s242 = sphi 0, %s240
      %s243 = sphi 0, %s242
      %s257 = sphi 0, %s243
      %s261 = sphi 0, %s261
      %s263 = sphi 0, %s261
      %s264 = sphi 0, %s263
      %s278 = sphi 0, %s264
      %s282 = sphi 0, %s282
      %s284 = sphi 0, %s282
      %s285 = sphi 0, %s284
      %s299 = sphi 0, %s285
      %s303 = sphi 0, %s303
      %s305 = sphi 0, %s303
      %s306 = sphi 0, %s305
      %s320 = sphi 0, %s306
      %s324 = sphi 0, %s324
      %s326 = sphi 0, %s324
      %s327 = sphi 0, %s326
      %s341 = sphi 0, %s327
      %s345 = sphi 0, %s345
      %s347 = sphi 0, %s345
      %s348 = sphi 0, %s347
      %s362 = sphi 0, %s348
      %s366 = sphi 0, %s366
      %s368 = sphi 0, %s366
      %s369 = sphi 0, %s368
      %s383 = sphi 0, %s369
      %s387 = sphi 0, %s387
      %s389 = sphi 0, %s387
      %s390 = sphi 0, %s389
      %s404 = sphi 0, %s390
      %s408 = sphi 0, %s408
      %s410 = sphi 0, %s408
      %s411 = sphi 0, %s410
      %s425 = sphi 0, %s411
      %s429 = sphi 0, %s429
      %s431 = sphi 0, %s429
      %s432 = sphi 0, %s431
      %s446 = sphi 0, %s432
      %s450 = sphi 0, %s450
      %s452 = sphi 0, %s450
      %s453 = sphi 0, %s452
      %s467 = sphi 0, %s453
      %s471 = sphi 0, %s471
      %s473 = sphi 0, %s471
      %s474 = sphi 0, %s473
      %s488 = sphi 0, %s474
      %s492 = sphi 0, %s492
      %s494 = sphi 0, %s492
      %s495 = sphi 0, %s494
      %s509 = sphi 0, %s495
      %s513 = sphi 0, %s513
      %s515 = sphi 0, %s513
      %s516 = sphi 0, %s515
      %s530 = sphi 0, %s516
      %s534 = sphi 0, %s534
      %s536 = sphi 0, %s534
      %s537 = sphi 0, %s536
      %s551 = sphi 0, %s537
      %s555 = sphi 0, %s555
      %s557 = sphi 0, %s555
      %s558 = sphi 0, %s557
      %s572 = sphi 0, %s558
      %s576 = sphi 0, %s576
      %s578 = sphi 0, %s576
      %s579 = sphi 0, %s578
      %s593 = sphi 0, %s579
      %s597 = sphi 0, %s597
      %s599 = sphi 0, %s597
      %s600 = sphi 0, %s599
      %s614 = sphi 0, %s600
      %s618 = sphi 0, %s618
      %s620 = sphi 0, %s618
      %s621 = sphi 0, %s620
      %s635 = sphi 0, %s621
      %s639 = sphi 0, %s639
      %s641 = sphi 0, %s639
      %s642 = sphi 0, %s641
      %s656 = sphi 0, %s642
      %s660 = sphi 0, %s660
      %s662 = sphi 0, %s660
      %s663 = sphi 0, %s662
      %s677 = sphi 0, %s663
      %s681 = sphi 0, %s681
      %s683 = sphi 0, %s681
      %s684 = sphi 0, %s683
      %s698 = sphi 0, %s684
      %s702 = sphi 0, %s702
      %s704 = sphi 0, %s702
      %s705 = sphi 0, %s704
      %s719 = sphi 0, %s705
      %s723 = sphi 0, %s723
      %s725 = sphi 0, %s723
      %s726 = sphi 0, %s725
      %s740 = sphi 0, %s726
      %s744 = sphi 0, %s744
      %s746 = sphi 0, %s744
      %s747 = sphi 0, %s746
      %s761 = sphi 0, %s747
      %s765 = sphi 0, %s765
      %s767 = sphi 0, %s765
      %s768 = sphi 0, %s767
      %s782 = sphi 0, %s768
      %s786 = sphi 0, %s786
      %s788 = sphi 0, %s786
      %s789 = sphi 0, %s788
      %s803 = sphi 0, %s789
      %s809 = sphi 0, %s811
      %s812 = sphi 0, %s809
      %s813 = sphi 0, %s812
      %s829 = sphi 0, %s813
    $region4: #{_lambda_.10} parent=1 // loop_header_branch
      %104 = sbr.rel (%p102) target = $region8
    $region5: #{_lambda_.10} parent=1 // loop_body
      %s106 = ssub.s32 %s101, 1
      %s107 = ssub.s32 %s101, 2
      %s108 = sadd.s32 %s101, 1
      %s109 = ssub.s32 %s101, %s108
      %p110 = scmp.eq.s32.totalorder %s109, 0
      %s112 = sadd.s32 %s111, 1
      %s113 = scalar_select %p110, %s111, %s112
      %p116 = pneg %p110
      %p117 = scmp.eq.s32.totalorder %s101, 1
      %p118 = por %p116, %p117
      %p119 = scmp.ne.s32.totalorder %s111, %s114
      %p120 = scmp.eq.s32.totalorder %s101, 0
      %p121 = por %p119, %p120
      %p122 = scmp.ne.s32.totalorder %s111, %s114
      %p123 = scmp.eq.s32.totalorder %s106, 1
      %p124 = por %p122, %p123
      %p125 = scmp.ne.s32.totalorder %s114, %s115
      %p126 = scmp.eq.s32.totalorder %s106, 0
      %p127 = por %p125, %p126
      %p128 = scmp.ne.s32.totalorder %s114, %s115
      %p129 = scmp.eq.s32.totalorder %s107, 1
      %p130 = por %p128, %p129
      %p132 = scmp.ne.s32.totalorder %s115, %s131
      %p133 = scmp.eq.s32.totalorder %s107, 0
      %p134 = por %p132, %p133
      %s136 = sadd.s32 %s135, 1
      %p139 = scmp.eq.s32.totalorder %s101, 1
      %p140 = scmp.ne.s32.totalorder %s135, %s137
      %p141 = scmp.eq.s32.totalorder %s101, 0
      %p142 = por %p140, %p141
      %p143 = scmp.ne.s32.totalorder %s135, %s137
      %p144 = scmp.eq.s32.totalorder %s106, 1
      %p145 = por %p143, %p144
      %p146 = scmp.ne.s32.totalorder %s137, %s138
      %p147 = scmp.eq.s32.totalorder %s106, 0
      %p148 = por %p146, %p147
      %p149 = scmp.ne.s32.totalorder %s137, %s138
      %p150 = scmp.eq.s32.totalorder %s107, 1
      %p151 = por %p149, %p150
      %p153 = scmp.ne.s32.totalorder %s138, %s152
      %p154 = scmp.eq.s32.totalorder %s107, 0
      %p155 = por %p153, %p154
      %s157 = sadd.s32 %s156, 1
      %p160 = scmp.eq.s32.totalorder %s101, 1
      %p161 = scmp.ne.s32.totalorder %s156, %s158
      %p162 = scmp.eq.s32.totalorder %s101, 0
      %p163 = por %p161, %p162
      %p164 = scmp.ne.s32.totalorder %s156, %s158
      %p165 = scmp.eq.s32.totalorder %s106, 1
      %p166 = por %p164, %p165
      %p167 = scmp.ne.s32.totalorder %s158, %s159
      %p168 = scmp.eq.s32.totalorder %s106, 0
      %p169 = por %p167, %p168
      %p170 = scmp.ne.s32.totalorder %s158, %s159
      %p171 = scmp.eq.s32.totalorder %s107, 1
      %p172 = por %p170, %p171
      %p174 = scmp.ne.s32.totalorder %s159, %s173
      %p175 = scmp.eq.s32.totalorder %s107, 0
      %p176 = por %p174, %p175
      %s178 = sadd.s32 %s177, 1
      %p181 = scmp.eq.s32.totalorder %s101, 1
      %p182 = scmp.ne.s32.totalorder %s177, %s179
      %p183 = scmp.eq.s32.totalorder %s101, 0
      %p184 = por %p182, %p183
      %p185 = scmp.ne.s32.totalorder %s177, %s179
      %p186 = scmp.eq.s32.totalorder %s106, 1
      %p187 = por %p185, %p186
      %p188 = scmp.ne.s32.totalorder %s179, %s180
      %p189 = scmp.eq.s32.totalorder %s106, 0
      %p190 = por %p188, %p189
      %p191 = scmp.ne.s32.totalorder %s179, %s180
      %p192 = scmp.eq.s32.totalorder %s107, 1
      %p193 = por %p191, %p192
      %p195 = scmp.ne.s32.totalorder %s180, %s194
      %p196 = scmp.eq.s32.totalorder %s107, 0
      %p197 = por %p195, %p196
      %s199 = sadd.s32 %s198, 1
      %p202 = scmp.eq.s32.totalorder %s101, 1
      %p203 = scmp.ne.s32.totalorder %s198, %s200
      %p204 = scmp.eq.s32.totalorder %s101, 0
      %p205 = por %p203, %p204
      %p206 = scmp.ne.s32.totalorder %s198, %s200
      %p207 = scmp.eq.s32.totalorder %s106, 1
      %p208 = por %p206, %p207
      %p209 = scmp.ne.s32.totalorder %s200, %s201
      %p210 = scmp.eq.s32.totalorder %s106, 0
      %p211 = por %p209, %p210
      %p212 = scmp.ne.s32.totalorder %s200, %s201
      %p213 = scmp.eq.s32.totalorder %s107, 1
      %p214 = por %p212, %p213
      %p216 = scmp.ne.s32.totalorder %s201, %s215
      %p217 = scmp.eq.s32.totalorder %s107, 0
      %p218 = por %p216, %p217
      %s220 = sadd.s32 %s219, 1
      %p223 = scmp.eq.s32.totalorder %s101, 1
      %p224 = scmp.ne.s32.totalorder %s219, %s221
      %p225 = scmp.eq.s32.totalorder %s101, 0
      %p226 = por %p224, %p225
      %p227 = scmp.ne.s32.totalorder %s219, %s221
      %p228 = scmp.eq.s32.totalorder %s106, 1
      %p229 = por %p227, %p228
      %p230 = scmp.ne.s32.totalorder %s221, %s222
      %p231 = scmp.eq.s32.totalorder %s106, 0
      %p232 = por %p230, %p231
      %p233 = scmp.ne.s32.totalorder %s221, %s222
      %p234 = scmp.eq.s32.totalorder %s107, 1
      %p235 = por %p233, %p234
      %p237 = scmp.ne.s32.totalorder %s222, %s236
      %p238 = scmp.eq.s32.totalorder %s107, 0
      %p239 = por %p237, %p238
      %s241 = sadd.s32 %s240, 1
      %p244 = scmp.eq.s32.totalorder %s101, 1
      %p245 = scmp.ne.s32.totalorder %s240, %s242
      %p246 = scmp.eq.s32.totalorder %s101, 0
      %p247 = por %p245, %p246
      %p248 = scmp.ne.s32.totalorder %s240, %s242
      %p249 = scmp.eq.s32.totalorder %s106, 1
      %p250 = por %p248, %p249
      %p251 = scmp.ne.s32.totalorder %s242, %s243
      %p252 = scmp.eq.s32.totalorder %s106, 0
      %p253 = por %p251, %p252
      %p254 = scmp.ne.s32.totalorder %s242, %s243
      %p255 = scmp.eq.s32.totalorder %s107, 1
      %p256 = por %p254, %p255
      %p258 = scmp.ne.s32.totalorder %s243, %s257
      %p259 = scmp.eq.s32.totalorder %s107, 0
      %p260 = por %p258, %p259
      %s262 = sadd.s32 %s261, 1
      %p265 = scmp.eq.s32.totalorder %s101, 1
      %p266 = scmp.ne.s32.totalorder %s261, %s263
      %p267 = scmp.eq.s32.totalorder %s101, 0
      %p268 = por %p266, %p267
      %p269 = scmp.ne.s32.totalorder %s261, %s263
      %p270 = scmp.eq.s32.totalorder %s106, 1
      %p271 = por %p269, %p270
      %p272 = scmp.ne.s32.totalorder %s263, %s264
      %p273 = scmp.eq.s32.totalorder %s106, 0
      %p274 = por %p272, %p273
      %p275 = scmp.ne.s32.totalorder %s263, %s264
      %p276 = scmp.eq.s32.totalorder %s107, 1
      %p277 = por %p275, %p276
      %p279 = scmp.ne.s32.totalorder %s264, %s278
      %p280 = scmp.eq.s32.totalorder %s107, 0
      %p281 = por %p279, %p280
      %s283 = sadd.s32 %s282, 1
      %p286 = scmp.eq.s32.totalorder %s101, 1
      %p287 = scmp.ne.s32.totalorder %s282, %s284
      %p288 = scmp.eq.s32.totalorder %s101, 0
      %p289 = por %p287, %p288
      %p290 = scmp.ne.s32.totalorder %s282, %s284
      %p291 = scmp.eq.s32.totalorder %s106, 1
      %p292 = por %p290, %p291
      %p293 = scmp.ne.s32.totalorder %s284, %s285
      %p294 = scmp.eq.s32.totalorder %s106, 0
      %p295 = por %p293, %p294
      %p296 = scmp.ne.s32.totalorder %s284, %s285
      %p297 = scmp.eq.s32.totalorder %s107, 1
      %p298 = por %p296, %p297
      %p300 = scmp.ne.s32.totalorder %s285, %s299
      %p301 = scmp.eq.s32.totalorder %s107, 0
      %p302 = por %p300, %p301
      %s304 = sadd.s32 %s303, 1
      %p307 = scmp.eq.s32.totalorder %s101, 1
      %p308 = scmp.ne.s32.totalorder %s303, %s305
      %p309 = scmp.eq.s32.totalorder %s101, 0
      %p310 = por %p308, %p309
      %p311 = scmp.ne.s32.totalorder %s303, %s305
      %p312 = scmp.eq.s32.totalorder %s106, 1
      %p313 = por %p311, %p312
      %p314 = scmp.ne.s32.totalorder %s305, %s306
      %p315 = scmp.eq.s32.totalorder %s106, 0
      %p316 = por %p314, %p315
      %p317 = scmp.ne.s32.totalorder %s305, %s306
      %p318 = scmp.eq.s32.totalorder %s107, 1
      %p319 = por %p317, %p318
      %p321 = scmp.ne.s32.totalorder %s306, %s320
      %p322 = scmp.eq.s32.totalorder %s107, 0
      %p323 = por %p321, %p322
      %s325 = sadd.s32 %s324, 1
      %p328 = scmp.eq.s32.totalorder %s101, 1
      %p329 = scmp.ne.s32.totalorder %s324, %s326
      %p330 = scmp.eq.s32.totalorder %s101, 0
      %p331 = por %p329, %p330
      %p332 = scmp.ne.s32.totalorder %s324, %s326
      %p333 = scmp.eq.s32.totalorder %s106, 1
      %p334 = por %p332, %p333
      %p335 = scmp.ne.s32.totalorder %s326, %s327
      %p336 = scmp.eq.s32.totalorder %s106, 0
      %p337 = por %p335, %p336
      %p338 = scmp.ne.s32.totalorder %s326, %s327
      %p339 = scmp.eq.s32.totalorder %s107, 1
      %p340 = por %p338, %p339
      %p342 = scmp.ne.s32.totalorder %s327, %s341
      %p343 = scmp.eq.s32.totalorder %s107, 0
      %p344 = por %p342, %p343
      %s346 = sadd.s32 %s345, 1
      %p349 = scmp.eq.s32.totalorder %s101, 1
      %p350 = scmp.ne.s32.totalorder %s345, %s347
      %p351 = scmp.eq.s32.totalorder %s101, 0
      %p352 = por %p350, %p351
      %p353 = scmp.ne.s32.totalorder %s345, %s347
      %p354 = scmp.eq.s32.totalorder %s106, 1
      %p355 = por %p353, %p354
      %p356 = scmp.ne.s32.totalorder %s347, %s348
      %p357 = scmp.eq.s32.totalorder %s106, 0
      %p358 = por %p356, %p357
      %p359 = scmp.ne.s32.totalorder %s347, %s348
      %p360 = scmp.eq.s32.totalorder %s107, 1
      %p361 = por %p359, %p360
      %p363 = scmp.ne.s32.totalorder %s348, %s362
      %p364 = scmp.eq.s32.totalorder %s107, 0
      %p365 = por %p363, %p364
      %s367 = sadd.s32 %s366, 1
      %p370 = scmp.eq.s32.totalorder %s101, 1
      %p371 = scmp.ne.s32.totalorder %s366, %s368
      %p372 = scmp.eq.s32.totalorder %s101, 0
      %p373 = por %p371, %p372
      %p374 = scmp.ne.s32.totalorder %s366, %s368
      %p375 = scmp.eq.s32.totalorder %s106, 1
      %p376 = por %p374, %p375
      %p377 = scmp.ne.s32.totalorder %s368, %s369
      %p378 = scmp.eq.s32.totalorder %s106, 0
      %p379 = por %p377, %p378
      %p380 = scmp.ne.s32.totalorder %s368, %s369
      %p381 = scmp.eq.s32.totalorder %s107, 1
      %p382 = por %p380, %p381
      %p384 = scmp.ne.s32.totalorder %s369, %s383
      %p385 = scmp.eq.s32.totalorder %s107, 0
      %p386 = por %p384, %p385
      %s388 = sadd.s32 %s387, 1
      %p391 = scmp.eq.s32.totalorder %s101, 1
      %p392 = scmp.ne.s32.totalorder %s387, %s389
      %p393 = scmp.eq.s32.totalorder %s101, 0
      %p394 = por %p392, %p393
      %p395 = scmp.ne.s32.totalorder %s387, %s389
      %p396 = scmp.eq.s32.totalorder %s106, 1
      %p397 = por %p395, %p396
      %p398 = scmp.ne.s32.totalorder %s389, %s390
      %p399 = scmp.eq.s32.totalorder %s106, 0
      %p400 = por %p398, %p399
      %p401 = scmp.ne.s32.totalorder %s389, %s390
      %p402 = scmp.eq.s32.totalorder %s107, 1
      %p403 = por %p401, %p402
      %p405 = scmp.ne.s32.totalorder %s390, %s404
      %p406 = scmp.eq.s32.totalorder %s107, 0
      %p407 = por %p405, %p406
      %s409 = sadd.s32 %s408, 1
      %p412 = scmp.eq.s32.totalorder %s101, 1
      %p413 = scmp.ne.s32.totalorder %s408, %s410
      %p414 = scmp.eq.s32.totalorder %s101, 0
      %p415 = por %p413, %p414
      %p416 = scmp.ne.s32.totalorder %s408, %s410
      %p417 = scmp.eq.s32.totalorder %s106, 1
      %p418 = por %p416, %p417
      %p419 = scmp.ne.s32.totalorder %s410, %s411
      %p420 = scmp.eq.s32.totalorder %s106, 0
      %p421 = por %p419, %p420
      %p422 = scmp.ne.s32.totalorder %s410, %s411
      %p423 = scmp.eq.s32.totalorder %s107, 1
      %p424 = por %p422, %p423
      %p426 = scmp.ne.s32.totalorder %s411, %s425
      %p427 = scmp.eq.s32.totalorder %s107, 0
      %p428 = por %p426, %p427
      %s430 = sadd.s32 %s429, 1
      %p433 = scmp.eq.s32.totalorder %s101, 1
      %p434 = scmp.ne.s32.totalorder %s429, %s431
      %p435 = scmp.eq.s32.totalorder %s101, 0
      %p436 = por %p434, %p435
      %p437 = scmp.ne.s32.totalorder %s429, %s431
      %p438 = scmp.eq.s32.totalorder %s106, 1
      %p439 = por %p437, %p438
      %p440 = scmp.ne.s32.totalorder %s431, %s432
      %p441 = scmp.eq.s32.totalorder %s106, 0
      %p442 = por %p440, %p441
      %p443 = scmp.ne.s32.totalorder %s431, %s432
      %p444 = scmp.eq.s32.totalorder %s107, 1
      %p445 = por %p443, %p444
      %p447 = scmp.ne.s32.totalorder %s432, %s446
      %p448 = scmp.eq.s32.totalorder %s107, 0
      %p449 = por %p447, %p448
      %s451 = sadd.s32 %s450, 1
      %p454 = scmp.eq.s32.totalorder %s101, 1
      %p455 = scmp.ne.s32.totalorder %s450, %s452
      %p456 = scmp.eq.s32.totalorder %s101, 0
      %p457 = por %p455, %p456
      %p458 = scmp.ne.s32.totalorder %s450, %s452
      %p459 = scmp.eq.s32.totalorder %s106, 1
      %p460 = por %p458, %p459
      %p461 = scmp.ne.s32.totalorder %s452, %s453
      %p462 = scmp.eq.s32.totalorder %s106, 0
      %p463 = por %p461, %p462
      %p464 = scmp.ne.s32.totalorder %s452, %s453
      %p465 = scmp.eq.s32.totalorder %s107, 1
      %p466 = por %p464, %p465
      %p468 = scmp.ne.s32.totalorder %s453, %s467
      %p469 = scmp.eq.s32.totalorder %s107, 0
      %p470 = por %p468, %p469
      %s472 = sadd.s32 %s471, 1
      %p475 = scmp.eq.s32.totalorder %s101, 1
      %p476 = scmp.ne.s32.totalorder %s471, %s473
      %p477 = scmp.eq.s32.totalorder %s101, 0
      %p478 = por %p476, %p477
      %p479 = scmp.ne.s32.totalorder %s471, %s473
      %p480 = scmp.eq.s32.totalorder %s106, 1
      %p481 = por %p479, %p480
      %p482 = scmp.ne.s32.totalorder %s473, %s474
      %p483 = scmp.eq.s32.totalorder %s106, 0
      %p484 = por %p482, %p483
      %p485 = scmp.ne.s32.totalorder %s473, %s474
      %p486 = scmp.eq.s32.totalorder %s107, 1
      %p487 = por %p485, %p486
      %p489 = scmp.ne.s32.totalorder %s474, %s488
      %p490 = scmp.eq.s32.totalorder %s107, 0
      %p491 = por %p489, %p490
      %s493 = sadd.s32 %s492, 1
      %p496 = scmp.eq.s32.totalorder %s101, 1
      %p497 = scmp.ne.s32.totalorder %s492, %s494
      %p498 = scmp.eq.s32.totalorder %s101, 0
      %p499 = por %p497, %p498
      %p500 = scmp.ne.s32.totalorder %s492, %s494
      %p501 = scmp.eq.s32.totalorder %s106, 1
      %p502 = por %p500, %p501
      %p503 = scmp.ne.s32.totalorder %s494, %s495
      %p504 = scmp.eq.s32.totalorder %s106, 0
      %p505 = por %p503, %p504
      %p506 = scmp.ne.s32.totalorder %s494, %s495
      %p507 = scmp.eq.s32.totalorder %s107, 1
      %p508 = por %p506, %p507
      %p510 = scmp.ne.s32.totalorder %s495, %s509
      %p511 = scmp.eq.s32.totalorder %s107, 0
      %p512 = por %p510, %p511
      %s514 = sadd.s32 %s513, 1
      %p517 = scmp.eq.s32.totalorder %s101, 1
      %p518 = scmp.ne.s32.totalorder %s513, %s515
      %p519 = scmp.eq.s32.totalorder %s101, 0
      %p520 = por %p518, %p519
      %p521 = scmp.ne.s32.totalorder %s513, %s515
      %p522 = scmp.eq.s32.totalorder %s106, 1
      %p523 = por %p521, %p522
      %p524 = scmp.ne.s32.totalorder %s515, %s516
      %p525 = scmp.eq.s32.totalorder %s106, 0
      %p526 = por %p524, %p525
      %p527 = scmp.ne.s32.totalorder %s515, %s516
      %p528 = scmp.eq.s32.totalorder %s107, 1
      %p529 = por %p527, %p528
      %p531 = scmp.ne.s32.totalorder %s516, %s530
      %p532 = scmp.eq.s32.totalorder %s107, 0
      %p533 = por %p531, %p532
      %s535 = sadd.s32 %s534, 1
      %p538 = scmp.eq.s32.totalorder %s101, 1
      %p539 = scmp.ne.s32.totalorder %s534, %s536
      %p540 = scmp.eq.s32.totalorder %s101, 0
      %p541 = por %p539, %p540
      %p542 = scmp.ne.s32.totalorder %s534, %s536
      %p543 = scmp.eq.s32.totalorder %s106, 1
      %p544 = por %p542, %p543
      %p545 = scmp.ne.s32.totalorder %s536, %s537
      %p546 = scmp.eq.s32.totalorder %s106, 0
      %p547 = por %p545, %p546
      %p548 = scmp.ne.s32.totalorder %s536, %s537
      %p549 = scmp.eq.s32.totalorder %s107, 1
      %p550 = por %p548, %p549
      %p552 = scmp.ne.s32.totalorder %s537, %s551
      %p553 = scmp.eq.s32.totalorder %s107, 0
      %p554 = por %p552, %p553
      %s556 = sadd.s32 %s555, 1
      %p559 = scmp.eq.s32.totalorder %s101, 1
      %p560 = scmp.ne.s32.totalorder %s555, %s557
      %p561 = scmp.eq.s32.totalorder %s101, 0
      %p562 = por %p560, %p561
      %p563 = scmp.ne.s32.totalorder %s555, %s557
      %p564 = scmp.eq.s32.totalorder %s106, 1
      %p565 = por %p563, %p564
      %p566 = scmp.ne.s32.totalorder %s557, %s558
      %p567 = scmp.eq.s32.totalorder %s106, 0
      %p568 = por %p566, %p567
      %p569 = scmp.ne.s32.totalorder %s557, %s558
      %p570 = scmp.eq.s32.totalorder %s107, 1
      %p571 = por %p569, %p570
      %p573 = scmp.ne.s32.totalorder %s558, %s572
      %p574 = scmp.eq.s32.totalorder %s107, 0
      %p575 = por %p573, %p574
      %s577 = sadd.s32 %s576, 1
      %p580 = scmp.eq.s32.totalorder %s101, 1
      %p581 = scmp.ne.s32.totalorder %s576, %s578
      %p582 = scmp.eq.s32.totalorder %s101, 0
      %p583 = por %p581, %p582
      %p584 = scmp.ne.s32.totalorder %s576, %s578
      %p585 = scmp.eq.s32.totalorder %s106, 1
      %p586 = por %p584, %p585
      %p587 = scmp.ne.s32.totalorder %s578, %s579
      %p588 = scmp.eq.s32.totalorder %s106, 0
      %p589 = por %p587, %p588
      %p590 = scmp.ne.s32.totalorder %s578, %s579
      %p591 = scmp.eq.s32.totalorder %s107, 1
      %p592 = por %p590, %p591
      %p594 = scmp.ne.s32.totalorder %s579, %s593
      %p595 = scmp.eq.s32.totalorder %s107, 0
      %p596 = por %p594, %p595
      %s598 = sadd.s32 %s597, 1
      %p601 = scmp.eq.s32.totalorder %s101, 1
      %p602 = scmp.ne.s32.totalorder %s597, %s599
      %p603 = scmp.eq.s32.totalorder %s101, 0
      %p604 = por %p602, %p603
      %p605 = scmp.ne.s32.totalorder %s597, %s599
      %p606 = scmp.eq.s32.totalorder %s106, 1
      %p607 = por %p605, %p606
      %p608 = scmp.ne.s32.totalorder %s599, %s600
      %p609 = scmp.eq.s32.totalorder %s106, 0
      %p610 = por %p608, %p609
      %p611 = scmp.ne.s32.totalorder %s599, %s600
      %p612 = scmp.eq.s32.totalorder %s107, 1
      %p613 = por %p611, %p612
      %p615 = scmp.ne.s32.totalorder %s600, %s614
      %p616 = scmp.eq.s32.totalorder %s107, 0
      %p617 = por %p615, %p616
      %s619 = sadd.s32 %s618, 1
      %p622 = scmp.eq.s32.totalorder %s101, 1
      %p623 = scmp.ne.s32.totalorder %s618, %s620
      %p624 = scmp.eq.s32.totalorder %s101, 0
      %p625 = por %p623, %p624
      %p626 = scmp.ne.s32.totalorder %s618, %s620
      %p627 = scmp.eq.s32.totalorder %s106, 1
      %p628 = por %p626, %p627
      %p629 = scmp.ne.s32.totalorder %s620, %s621
      %p630 = scmp.eq.s32.totalorder %s106, 0
      %p631 = por %p629, %p630
      %p632 = scmp.ne.s32.totalorder %s620, %s621
      %p633 = scmp.eq.s32.totalorder %s107, 1
      %p634 = por %p632, %p633
      %p636 = scmp.ne.s32.totalorder %s621, %s635
      %p637 = scmp.eq.s32.totalorder %s107, 0
      %p638 = por %p636, %p637
      %s640 = sadd.s32 %s639, 1
      %p643 = scmp.eq.s32.totalorder %s101, 1
      %p644 = scmp.ne.s32.totalorder %s639, %s641
      %p645 = scmp.eq.s32.totalorder %s101, 0
      %p646 = por %p644, %p645
      %p647 = scmp.ne.s32.totalorder %s639, %s641
      %p648 = scmp.eq.s32.totalorder %s106, 1
      %p649 = por %p647, %p648
      %p650 = scmp.ne.s32.totalorder %s641, %s642
      %p651 = scmp.eq.s32.totalorder %s106, 0
      %p652 = por %p650, %p651
      %p653 = scmp.ne.s32.totalorder %s641, %s642
      %p654 = scmp.eq.s32.totalorder %s107, 1
      %p655 = por %p653, %p654
      %p657 = scmp.ne.s32.totalorder %s642, %s656
      %p658 = scmp.eq.s32.totalorder %s107, 0
      %p659 = por %p657, %p658
      %s661 = sadd.s32 %s660, 1
      %p664 = scmp.eq.s32.totalorder %s101, 1
      %p665 = scmp.ne.s32.totalorder %s660, %s662
      %p666 = scmp.eq.s32.totalorder %s101, 0
      %p667 = por %p665, %p666
      %p668 = scmp.ne.s32.totalorder %s660, %s662
      %p669 = scmp.eq.s32.totalorder %s106, 1
      %p670 = por %p668, %p669
      %p671 = scmp.ne.s32.totalorder %s662, %s663
      %p672 = scmp.eq.s32.totalorder %s106, 0
      %p673 = por %p671, %p672
      %p674 = scmp.ne.s32.totalorder %s662, %s663
      %p675 = scmp.eq.s32.totalorder %s107, 1
      %p676 = por %p674, %p675
      %p678 = scmp.ne.s32.totalorder %s663, %s677
      %p679 = scmp.eq.s32.totalorder %s107, 0
      %p680 = por %p678, %p679
      %s682 = sadd.s32 %s681, 1
      %p685 = scmp.eq.s32.totalorder %s101, 1
      %p686 = scmp.ne.s32.totalorder %s681, %s683
      %p687 = scmp.eq.s32.totalorder %s101, 0
      %p688 = por %p686, %p687
      %p689 = scmp.ne.s32.totalorder %s681, %s683
      %p690 = scmp.eq.s32.totalorder %s106, 1
      %p691 = por %p689, %p690
      %p692 = scmp.ne.s32.totalorder %s683, %s684
      %p693 = scmp.eq.s32.totalorder %s106, 0
      %p694 = por %p692, %p693
      %p695 = scmp.ne.s32.totalorder %s683, %s684
      %p696 = scmp.eq.s32.totalorder %s107, 1
      %p697 = por %p695, %p696
      %p699 = scmp.ne.s32.totalorder %s684, %s698
      %p700 = scmp.eq.s32.totalorder %s107, 0
      %p701 = por %p699, %p700
      %s703 = sadd.s32 %s702, 1
      %p706 = scmp.eq.s32.totalorder %s101, 1
      %p707 = scmp.ne.s32.totalorder %s702, %s704
      %p708 = scmp.eq.s32.totalorder %s101, 0
      %p709 = por %p707, %p708
      %p710 = scmp.ne.s32.totalorder %s702, %s704
      %p711 = scmp.eq.s32.totalorder %s106, 1
      %p712 = por %p710, %p711
      %p713 = scmp.ne.s32.totalorder %s704, %s705
      %p714 = scmp.eq.s32.totalorder %s106, 0
      %p715 = por %p713, %p714
      %p716 = scmp.ne.s32.totalorder %s704, %s705
      %p717 = scmp.eq.s32.totalorder %s107, 1
      %p718 = por %p716, %p717
      %p720 = scmp.ne.s32.totalorder %s705, %s719
      %p721 = scmp.eq.s32.totalorder %s107, 0
      %p722 = por %p720, %p721
      %s724 = sadd.s32 %s723, 1
      %p727 = scmp.eq.s32.totalorder %s101, 1
      %p728 = scmp.ne.s32.totalorder %s723, %s725
      %p729 = scmp.eq.s32.totalorder %s101, 0
      %p730 = por %p728, %p729
      %p731 = scmp.ne.s32.totalorder %s723, %s725
      %p732 = scmp.eq.s32.totalorder %s106, 1
      %p733 = por %p731, %p732
      %p734 = scmp.ne.s32.totalorder %s725, %s726
      %p735 = scmp.eq.s32.totalorder %s106, 0
      %p736 = por %p734, %p735
      %p737 = scmp.ne.s32.totalorder %s725, %s726
      %p738 = scmp.eq.s32.totalorder %s107, 1
      %p739 = por %p737, %p738
      %p741 = scmp.ne.s32.totalorder %s726, %s740
      %p742 = scmp.eq.s32.totalorder %s107, 0
      %p743 = por %p741, %p742
      %s745 = sadd.s32 %s744, 1
      %p748 = scmp.eq.s32.totalorder %s101, 1
      %p749 = scmp.ne.s32.totalorder %s744, %s746
      %p750 = scmp.eq.s32.totalorder %s101, 0
      %p751 = por %p749, %p750
      %p752 = scmp.ne.s32.totalorder %s744, %s746
      %p753 = scmp.eq.s32.totalorder %s106, 1
      %p754 = por %p752, %p753
      %p755 = scmp.ne.s32.totalorder %s746, %s747
      %p756 = scmp.eq.s32.totalorder %s106, 0
      %p757 = por %p755, %p756
      %p758 = scmp.ne.s32.totalorder %s746, %s747
      %p759 = scmp.eq.s32.totalorder %s107, 1
      %p760 = por %p758, %p759
      %p762 = scmp.ne.s32.totalorder %s747, %s761
      %p763 = scmp.eq.s32.totalorder %s107, 0
      %p764 = por %p762, %p763
      %s766 = sadd.s32 %s765, 1
      %p769 = scmp.eq.s32.totalorder %s101, 1
      %p770 = scmp.ne.s32.totalorder %s765, %s767
      %p771 = scmp.eq.s32.totalorder %s101, 0
      %p772 = por %p770, %p771
      %p773 = scmp.ne.s32.totalorder %s765, %s767
      %p774 = scmp.eq.s32.totalorder %s106, 1
      %p775 = por %p773, %p774
      %p776 = scmp.ne.s32.totalorder %s767, %s768
      %p777 = scmp.eq.s32.totalorder %s106, 0
      %p778 = por %p776, %p777
      %p779 = scmp.ne.s32.totalorder %s767, %s768
      %p780 = scmp.eq.s32.totalorder %s107, 1
      %p781 = por %p779, %p780
      %p783 = scmp.ne.s32.totalorder %s768, %s782
      %p784 = scmp.eq.s32.totalorder %s107, 0
      %p785 = por %p783, %p784
      %s787 = sadd.s32 %s786, 1
      %p790 = scmp.eq.s32.totalorder %s101, 1
      %p791 = scmp.ne.s32.totalorder %s786, %s788
      %p792 = scmp.eq.s32.totalorder %s101, 0
      %p793 = por %p791, %p792
      %p794 = scmp.ne.s32.totalorder %s786, %s788
      %p795 = scmp.eq.s32.totalorder %s106, 1
      %p796 = por %p794, %p795
      %p797 = scmp.ne.s32.totalorder %s788, %s789
      %p798 = scmp.eq.s32.totalorder %s106, 0
      %p799 = por %p797, %p798
      %p800 = scmp.ne.s32.totalorder %s788, %s789
      %p801 = scmp.eq.s32.totalorder %s107, 1
      %p802 = por %p800, %p801
      %p804 = scmp.ne.s32.totalorder %s789, %s803
      %p805 = scmp.eq.s32.totalorder %s107, 0
      %p806 = por %p804, %p805
      %s807 = ssub.s32 %s101, %s108
      %p808 = scmp.eq.s32.totalorder %s807, 0
      %s810 = sadd.s32 %s809, 1
      %s811 = scalar_select %p808, %s809, %s810
      %p814 = pneg %p808
      %p815 = scmp.eq.s32.totalorder %s101, 1
      %p816 = por %p814, %p815
      %p817 = scmp.ne.s32.totalorder %s809, %s812
      %p818 = scmp.eq.s32.totalorder %s101, 0
      %p819 = por %p817, %p818
      %p820 = scmp.ne.s32.totalorder %s809, %s812
      %p821 = scmp.eq.s32.totalorder %s106, 1
      %p822 = por %p820, %p821
      %p823 = scmp.ne.s32.totalorder %s812, %s813
      %p824 = scmp.eq.s32.totalorder %s106, 0
      %p825 = por %p823, %p824
      %p826 = scmp.ne.s32.totalorder %s812, %s813
      %p827 = scmp.eq.s32.totalorder %s107, 1
      %p828 = por %p826, %p827
      %p830 = scmp.ne.s32.totalorder %s813, %s829
      %p831 = scmp.eq.s32.totalorder %s107, 0
      %p832 = por %p830, %p831
      %p833 = scmp.le.s32.totalorder 1, %s101
      %p834 = scmp.lt.s32.totalorder %s101, 3
      %p835 = pnand %p833, %p834
      %p836 = pneg %p835
      // Predicated region
      $region9: #{_lambda_.10} parent=5 // pred_check
        _
      $region10: #{_lambda_.10} parent=5 // pred_check_branch
        %838 = sbr.rel (%p835) target = $region12
      $region11: #{_lambda_.10} parent=5 // pred_region
        %s839 = ssub.s32 %s101, 1
        // Predicated region
        $region13: #{_lambda_.10} parent=11 // pred_check
          %p840 = pneg %p148
        $region14: #{_lambda_.10} parent=11 // pred_check_branch
          %842 = sbr.rel (%p840) target = $region16
        $region15: #{_lambda_.10} parent=11 // pred_region
          %s844 = ssub.s32 16, 16
          %845 = vsyncadd [#allocation8], %s844
          %s847 = sshll.u32 [#allocation7], 4
          %s848 = int_to_ptr.vmem [resolvable:$true] %s847
          %850 = dma.hbm_to_vmem [thread:$0]  %s5, 16, %s848, [#allocation8]
        $region16: #{_lambda_.10} parent=11 // pred_fallthru
          _
        // Predicated region
        $region17: #{_lambda_.10} parent=11 // pred_check
          %p851 = pneg %p169
        $region18: #{_lambda_.10} parent=11 // pred_check_branch
          %853 = sbr.rel (%p851) target = $region20
        $region19: #{_lambda_.10} parent=11 // pred_region
          %s855 = ssub.s32 16, 16
          %856 = vsyncadd [#allocation8], %s855
          %s858 = sshll.u32 [#allocation9], 4
          %s859 = int_to_ptr.vmem [resolvable:$true] %s858
          %861 = dma.hbm_to_vmem [thread:$0]  %s7, 16, %s859, [#allocation8]
        $region20: #{_lambda_.10} parent=11 // pred_fallthru
          _
        // Predicated region
        $region21: #{_lambda_.10} parent=11 // pred_check
          %p862 = pneg %p190
        $region22: #{_lambda_.10} parent=11 // pred_check_branch
          %864 = sbr.rel (%p862) target = $region24
        $region23: #{_lambda_.10} parent=11 // pred_region
          %s866 = ssub.s32 256, 256
          %867 = vsyncadd [#allocation11], %s866
          %s868 = sshll.u32 [#allocation10], 4
          %s869 = int_to_ptr.vmem [resolvable:$true] %s868
          %874 = dma.hbm_to_vmem [thread:$0]  %s9, 256, %s869, [#allocation11], 64, 64, 4
        $region24: #{_lambda_.10} parent=11 // pred_fallthru
          _
        // Predicated region
        $region25: #{_lambda_.10} parent=11 // pred_check
          %p875 = pneg %p211
        $region26: #{_lambda_.10} parent=11 // pred_check_branch
          %877 = sbr.rel (%p875) target = $region28
        $region27: #{_lambda_.10} parent=11 // pred_region
          %s879 = ssub.s32 16, 16
          %880 = vsyncadd [#allocation11], %s879
          %s882 = sshll.u32 [#allocation12], 4
          %s883 = int_to_ptr.vmem [resolvable:$true] %s882
          %885 = dma.hbm_to_vmem [thread:$0]  %s11, 16, %s883, [#allocation11]
        $region28: #{_lambda_.10} parent=11 // pred_fallthru
          _
        // Predicated region
        $region29: #{_lambda_.10} parent=11 // pred_check
          %p886 = pneg %p232
        $region30: #{_lambda_.10} parent=11 // pred_check_branch
          %888 = sbr.rel (%p886) target = $region32
        $region31: #{_lambda_.10} parent=11 // pred_region
          %s890 = ssub.s32 512, 512
          %891 = vsyncadd [#allocation14], %s890
          %s892 = sshll.u32 [#allocation13], 4
          %s893 = int_to_ptr.vmem [resolvable:$true] %s892
          %898 = dma.hbm_to_vmem [thread:$0]  %s13, 512, %s893, [#allocation14], 64, 64, 4
        $region32: #{_lambda_.10} parent=11 // pred_fallthru
          _
        // Predicated region
        $region33: #{_lambda_.10} parent=11 // pred_check
          %p899 = pneg %p253
        $region34: #{_lambda_.10} parent=11 // pred_check_branch
          %901 = sbr.rel (%p899) target = $region36
        $region35: #{_lambda_.10} parent=11 // pred_region
          %s903 = ssub.s32 16, 16
          %904 = vsyncadd [#allocation14], %s903
          %s906 = sshll.u32 [#allocation15], 4
          %s907 = int_to_ptr.vmem [resolvable:$true] %s906
          %909 = dma.hbm_to_vmem [thread:$0]  %s15, 16, %s907, [#allocation14]
        $region36: #{_lambda_.10} parent=11 // pred_fallthru
          _
        // Predicated region
        $region37: #{_lambda_.10} parent=11 // pred_check
          %p910 = pneg %p274
        $region38: #{_lambda_.10} parent=11 // pred_check_branch
          %912 = sbr.rel (%p910) target = $region40
        $region39: #{_lambda_.10} parent=11 // pred_region
          %s914 = ssub.s32 16, 16
          %915 = vsyncadd [#allocation17], %s914
          %s917 = sshll.u32 [#allocation16], 4
          %s918 = int_to_ptr.vmem [resolvable:$true] %s917
          %920 = dma.hbm_to_vmem [thread:$0]  %s17, 16, %s918, [#allocation17]
        $region40: #{_lambda_.10} parent=11 // pred_fallthru
          _
        // Predicated region
        $region41: #{_lambda_.10} parent=11 // pred_check
          %p921 = pneg %p295
        $region42: #{_lambda_.10} parent=11 // pred_check_branch
          %923 = sbr.rel (%p921) target = $region44
        $region43: #{_lambda_.10} parent=11 // pred_region
          %s925 = ssub.s32 16, 16
          %926 = vsyncadd [#allocation17], %s925
          %s928 = sshll.u32 [#allocation18], 4
          %s929 = int_to_ptr.vmem [resolvable:$true] %s928
          %931 = dma.hbm_to_vmem [thread:$0]  %s19, 16, %s929, [#allocation17]
        $region44: #{_lambda_.10} parent=11 // pred_fallthru
          _
        // Predicated region
        $region45: #{_lambda_.10} parent=11 // pred_check
          %p932 = pneg %p316
        $region46: #{_lambda_.10} parent=11 // pred_check_branch
          %934 = sbr.rel (%p932) target = $region48
        $region47: #{_lambda_.10} parent=11 // pred_region
          %s936 = ssub.s32 256, 256
          %937 = vsyncadd [#allocation20], %s936
          %s938 = sshll.u32 [#allocation19], 4
          %s939 = int_to_ptr.vmem [resolvable:$true] %s938
          %944 = dma.hbm_to_vmem [thread:$0]  %s21, 256, %s939, [#allocation20], 64, 64, 4
        $region48: #{_lambda_.10} parent=11 // pred_fallthru
          _
        // Predicated region
        $region49: #{_lambda_.10} parent=11 // pred_check
          %p945 = pneg %p337
        $region50: #{_lambda_.10} parent=11 // pred_check_branch
          %947 = sbr.rel (%p945) target = $region52
        $region51: #{_lambda_.10} parent=11 // pred_region
          %s949 = ssub.s32 16, 16
          %950 = vsyncadd [#allocation20], %s949
          %s952 = sshll.u32 [#allocation21], 4
          %s953 = int_to_ptr.vmem [resolvable:$true] %s952
          %955 = dma.hbm_to_vmem [thread:$0]  %s23, 16, %s953, [#allocation20]
        $region52: #{_lambda_.10} parent=11 // pred_fallthru
          _
        // Predicated region
        $region53: #{_lambda_.10} parent=11 // pred_check
          %p956 = pneg %p358
        $region54: #{_lambda_.10} parent=11 // pred_check_branch
          %958 = sbr.rel (%p956) target = $region56
        $region55: #{_lambda_.10} parent=11 // pred_region
          %s960 = ssub.s32 256, 256
          %961 = vsyncadd [#allocation23], %s960
          %s962 = sshll.u32 [#allocation22], 4
          %s963 = int_to_ptr.vmem [resolvable:$true] %s962
          %968 = dma.hbm_to_vmem [thread:$0]  %s25, 256, %s963, [#allocation23], 64, 64, 4
        $region56: #{_lambda_.10} parent=11 // pred_fallthru
          _
        // Predicated region
        $region57: #{_lambda_.10} parent=11 // pred_check
          %p969 = pneg %p379
        $region58: #{_lambda_.10} parent=11 // pred_check_branch
          %971 = sbr.rel (%p969) target = $region60
        $region59: #{_lambda_.10} parent=11 // pred_region
          %s973 = ssub.s32 16, 16
          %974 = vsyncadd [#allocation23], %s973
          %s976 = sshll.u32 [#allocation24], 4
          %s977 = int_to_ptr.vmem [resolvable:$true] %s976
          %979 = dma.hbm_to_vmem [thread:$0]  %s27, 16, %s977, [#allocation23]
        $region60: #{_lambda_.10} parent=11 // pred_fallthru
          _
        // Predicated region
        $region61: #{_lambda_.10} parent=11 // pred_check
          %p980 = pneg %p400
        $region62: #{_lambda_.10} parent=11 // pred_check_branch
          %982 = sbr.rel (%p980) target = $region64
        $region63: #{_lambda_.10} parent=11 // pred_region
          %s984 = ssub.s32 16, 16
          %985 = vsyncadd [#allocation26], %s984
          %s987 = sshll.u32 [#allocation25], 4
          %s988 = int_to_ptr.vmem [resolvable:$true] %s987
          %990 = dma.hbm_to_vmem [thread:$0]  %s29, 16, %s988, [#allocation26]
        $region64: #{_lambda_.10} parent=11 // pred_fallthru
          _
        // Predicated region
        $region65: #{_lambda_.10} parent=11 // pred_check
          %p991 = pneg %p421
        $region66: #{_lambda_.10} parent=11 // pred_check_branch
          %993 = sbr.rel (%p991) target = $region68
        $region67: #{_lambda_.10} parent=11 // pred_region
          %s995 = ssub.s32 16, 16
          %996 = vsyncadd [#allocation26], %s995
          %s998 = sshll.u32 [#allocation27], 4
          %s999 = int_to_ptr.vmem [resolvable:$true] %s998
          %1001 = dma.hbm_to_vmem [thread:$0]  %s31, 16, %s999, [#allocation26]
        $region68: #{_lambda_.10} parent=11 // pred_fallthru
          _
        // Predicated region
        $region69: #{_lambda_.10} parent=11 // pred_check
          %p1002 = pneg %p442
        $region70: #{_lambda_.10} parent=11 // pred_check_branch
          %1004 = sbr.rel (%p1002) target = $region72
        $region71: #{_lambda_.10} parent=11 // pred_region
          %s1006 = ssub.s32 256, 256
          %1007 = vsyncadd [#allocation29], %s1006
          %s1008 = sshll.u32 [#allocation28], 4
          %s1009 = int_to_ptr.vmem [resolvable:$true] %s1008
          %1014 = dma.hbm_to_vmem [thread:$0]  %s33, 256, %s1009, [#allocation29], 64, 64, 4
        $region72: #{_lambda_.10} parent=11 // pred_fallthru
          _
        // Predicated region
        $region73: #{_lambda_.10} parent=11 // pred_check
          %p1015 = pneg %p463
        $region74: #{_lambda_.10} parent=11 // pred_check_branch
          %1017 = sbr.rel (%p1015) target = $region76
        $region75: #{_lambda_.10} parent=11 // pred_region
          %s1019 = ssub.s32 16, 16
          %1020 = vsyncadd [#allocation29], %s1019
          %s1022 = sshll.u32 [#allocation30], 4
          %s1023 = int_to_ptr.vmem [resolvable:$true] %s1022
          %1025 = dma.hbm_to_vmem [thread:$0]  %s35, 16, %s1023, [#allocation29]
        $region76: #{_lambda_.10} parent=11 // pred_fallthru
          _
        // Predicated region
        $region77: #{_lambda_.10} parent=11 // pred_check
          %p1026 = pneg %p484
        $region78: #{_lambda_.10} parent=11 // pred_check_branch
          %1028 = sbr.rel (%p1026) target = $region80
        $region79: #{_lambda_.10} parent=11 // pred_region
          %s1030 = ssub.s32 256, 256
          %1031 = vsyncadd [#allocation32], %s1030
          %s1032 = sshll.u32 [#allocation31], 4
          %s1033 = int_to_ptr.vmem [resolvable:$true] %s1032
          %1038 = dma.hbm_to_vmem [thread:$0]  %s37, 256, %s1033, [#allocation32], 64, 64, 4
        $region80: #{_lambda_.10} parent=11 // pred_fallthru
          _
        // Predicated region
        $region81: #{_lambda_.10} parent=11 // pred_check
          %p1039 = pneg %p505
        $region82: #{_lambda_.10} parent=11 // pred_check_branch
          %1041 = sbr.rel (%p1039) target = $region84
        $region83: #{_lambda_.10} parent=11 // pred_region
          %s1043 = ssub.s32 16, 16
          %1044 = vsyncadd [#allocation32], %s1043
          %s1046 = sshll.u32 [#allocation33], 4
          %s1047 = int_to_ptr.vmem [resolvable:$true] %s1046
          %1049 = dma.hbm_to_vmem [thread:$0]  %s39, 16, %s1047, [#allocation32]
        $region84: #{_lambda_.10} parent=11 // pred_fallthru
          _
        // Predicated region
        $region85: #{_lambda_.10} parent=11 // pred_check
          %p1050 = pneg %p526
        $region86: #{_lambda_.10} parent=11 // pred_check_branch
          %1052 = sbr.rel (%p1050) target = $region88
        $region87: #{_lambda_.10} parent=11 // pred_region
          %s1054 = ssub.s32 64, 64
          %1055 = vsyncadd [#allocation35], %s1054
          %s1057 = sshll.u32 [#allocation34], 4
          %s1058 = int_to_ptr.vmem [resolvable:$true] %s1057
          %1060 = dma.hbm_to_vmem [thread:$0]  %s41, 64, %s1058, [#allocation35]
        $region88: #{_lambda_.10} parent=11 // pred_fallthru
          _
        // Predicated region
        $region89: #{_lambda_.10} parent=11 // pred_check
          %p1061 = pneg %p547
        $region90: #{_lambda_.10} parent=11 // pred_check_branch
          %1063 = sbr.rel (%p1061) target = $region92
        $region91: #{_lambda_.10} parent=11 // pred_region
          %s1065 = ssub.s32 16, 16
          %1066 = vsyncadd [#allocation35], %s1065
          %s1068 = sshll.u32 [#allocation36], 4
          %s1069 = int_to_ptr.vmem [resolvable:$true] %s1068
          %1071 = dma.hbm_to_vmem [thread:$0]  %s43, 16, %s1069, [#allocation35]
        $region92: #{_lambda_.10} parent=11 // pred_fallthru
          _
        // Predicated region
        $region93: #{_lambda_.10} parent=11 // pred_check
          %p1072 = pneg %p568
        $region94: #{_lambda_.10} parent=11 // pred_check_branch
          %1074 = sbr.rel (%p1072) target = $region96
        $region95: #{_lambda_.10} parent=11 // pred_region
          %s1076 = ssub.s32 16, 16
          %1077 = vsyncadd [#allocation38], %s1076
          %s1079 = sshll.u32 [#allocation37], 4
          %s1080 = int_to_ptr.vmem [resolvable:$true] %s1079
          %1082 = dma.hbm_to_vmem [thread:$0]  %s45, 16, %s1080, [#allocation38]
        $region96: #{_lambda_.10} parent=11 // pred_fallthru
          _
        // Predicated region
        $region97: #{_lambda_.10} parent=11 // pred_check
          %p1083 = pneg %p589
        $region98: #{_lambda_.10} parent=11 // pred_check_branch
          %1085 = sbr.rel (%p1083) target = $region100
        $region99: #{_lambda_.10} parent=11 // pred_region
          %s1087 = ssub.s32 16, 16
          %1088 = vsyncadd [#allocation38], %s1087
          %s1090 = sshll.u32 [#allocation39], 4
          %s1091 = int_to_ptr.vmem [resolvable:$true] %s1090
          %1093 = dma.hbm_to_vmem [thread:$0]  %s47, 16, %s1091, [#allocation38]
        $region100: #{_lambda_.10} parent=11 // pred_fallthru
          _
        // Predicated region
        $region101: #{_lambda_.10} parent=11 // pred_check
          %p1094 = pneg %p610
        $region102: #{_lambda_.10} parent=11 // pred_check_branch
          %1096 = sbr.rel (%p1094) target = $region104
        $region103: #{_lambda_.10} parent=11 // pred_region
          %s1098 = ssub.s32 256, 256
          %1099 = vsyncadd [#allocation41], %s1098
          %s1100 = sshll.u32 [#allocation40], 4
          %s1101 = int_to_ptr.vmem [resolvable:$true] %s1100
          %1106 = dma.hbm_to_vmem [thread:$0]  %s49, 256, %s1101, [#allocation41], 64, 64, 4
        $region104: #{_lambda_.10} parent=11 // pred_fallthru
          _
        // Predicated region
        $region105: #{_lambda_.10} parent=11 // pred_check
          %p1107 = pneg %p631
        $region106: #{_lambda_.10} parent=11 // pred_check_branch
          %1109 = sbr.rel (%p1107) target = $region108
        $region107: #{_lambda_.10} parent=11 // pred_region
          %s1111 = ssub.s32 16, 16
          %1112 = vsyncadd [#allocation41], %s1111
          %s1114 = sshll.u32 [#allocation42], 4
          %s1115 = int_to_ptr.vmem [resolvable:$true] %s1114
          %1117 = dma.hbm_to_vmem [thread:$0]  %s51, 16, %s1115, [#allocation41]
        $region108: #{_lambda_.10} parent=11 // pred_fallthru
          _
        // Predicated region
        $region109: #{_lambda_.10} parent=11 // pred_check
          %p1118 = pneg %p652
        $region110: #{_lambda_.10} parent=11 // pred_check_branch
          %1120 = sbr.rel (%p1118) target = $region112
        $region111: #{_lambda_.10} parent=11 // pred_region
          %s1122 = ssub.s32 16, 16
          %1123 = vsyncadd [#allocation44], %s1122
          %s1125 = sshll.u32 [#allocation43], 4
          %s1126 = int_to_ptr.vmem [resolvable:$true] %s1125
          %1128 = dma.hbm_to_vmem [thread:$0]  %s53, 16, %s1126, [#allocation44]
        $region112: #{_lambda_.10} parent=11 // pred_fallthru
          _
        // Predicated region
        $region113: #{_lambda_.10} parent=11 // pred_check
          %p1129 = pneg %p673
        $region114: #{_lambda_.10} parent=11 // pred_check_branch
          %1131 = sbr.rel (%p1129) target = $region116
        $region115: #{_lambda_.10} parent=11 // pred_region
          %s1133 = ssub.s32 16, 16
          %1134 = vsyncadd [#allocation44], %s1133
          %s1136 = sshll.u32 [#allocation45], 4
          %s1137 = int_to_ptr.vmem [resolvable:$true] %s1136
          %1139 = dma.hbm_to_vmem [thread:$0]  %s55, 16, %s1137, [#allocation44]
        $region116: #{_lambda_.10} parent=11 // pred_fallthru
          _
        // Predicated region
        $region117: #{_lambda_.10} parent=11 // pred_check
          %p1140 = pneg %p694
        $region118: #{_lambda_.10} parent=11 // pred_check_branch
          %1142 = sbr.rel (%p1140) target = $region120
        $region119: #{_lambda_.10} parent=11 // pred_region
          %s1144 = ssub.s32 256, 256
          %1145 = vsyncadd [#allocation47], %s1144
          %s1146 = sshll.u32 [#allocation46], 4
          %s1147 = int_to_ptr.vmem [resolvable:$true] %s1146
          %1152 = dma.hbm_to_vmem [thread:$0]  %s57, 256, %s1147, [#allocation47], 64, 64, 4
        $region120: #{_lambda_.10} parent=11 // pred_fallthru
          _
        // Predicated region
        $region121: #{_lambda_.10} parent=11 // pred_check
          %p1153 = pneg %p715
        $region122: #{_lambda_.10} parent=11 // pred_check_branch
          %1155 = sbr.rel (%p1153) target = $region124
        $region123: #{_lambda_.10} parent=11 // pred_region
          %s1157 = ssub.s32 16, 16
          %1158 = vsyncadd [#allocation47], %s1157
          %s1160 = sshll.u32 [#allocation48], 4
          %s1161 = int_to_ptr.vmem [resolvable:$true] %s1160
          %1163 = dma.hbm_to_vmem [thread:$0]  %s59, 16, %s1161, [#allocation47]
        $region124: #{_lambda_.10} parent=11 // pred_fallthru
          _
        // Predicated region
        $region125: #{_lambda_.10} parent=11 // pred_check
          %p1164 = pneg %p736
        $region126: #{_lambda_.10} parent=11 // pred_check_branch
          %1166 = sbr.rel (%p1164) target = $region128
        $region127: #{_lambda_.10} parent=11 // pred_region
          %s1168 = ssub.s32 512, 512
          %1169 = vsyncadd [#allocation50], %s1168
          %s1170 = sshll.u32 [#allocation49], 4
          %s1171 = int_to_ptr.vmem [resolvable:$true] %s1170
          %1176 = dma.hbm_to_vmem [thread:$0]  %s61, 512, %s1171, [#allocation50], 64, 64, 4
        $region128: #{_lambda_.10} parent=11 // pred_fallthru
          _
        // Predicated region
        $region129: #{_lambda_.10} parent=11 // pred_check
          %p1177 = pneg %p757
        $region130: #{_lambda_.10} parent=11 // pred_check_branch
          %1179 = sbr.rel (%p1177) target = $region132
        $region131: #{_lambda_.10} parent=11 // pred_region
          %s1181 = ssub.s32 16, 16
          %1182 = vsyncadd [#allocation50], %s1181
          %s1184 = sshll.u32 [#allocation51], 4
          %s1185 = int_to_ptr.vmem [resolvable:$true] %s1184
          %1187 = dma.hbm_to_vmem [thread:$0]  %s63, 16, %s1185, [#allocation50]
        $region132: #{_lambda_.10} parent=11 // pred_fallthru
          _
        // Predicated region
        $region133: #{_lambda_.10} parent=11 // pred_check
          %p1188 = pneg %p778
        $region134: #{_lambda_.10} parent=11 // pred_check_branch
          %1190 = sbr.rel (%p1188) target = $region136
        $region135: #{_lambda_.10} parent=11 // pred_region
          %s1192 = ssub.s32 16, 16
          %1193 = vsyncadd [#allocation53], %s1192
          %s1195 = sshll.u32 [#allocation52], 4
          %s1196 = int_to_ptr.vmem [resolvable:$true] %s1195
          %1198 = dma.hbm_to_vmem [thread:$0]  %s65, 16, %s1196, [#allocation53]
        $region136: #{_lambda_.10} parent=11 // pred_fallthru
          _
        // Predicated region
        $region137: #{_lambda_.10} parent=11 // pred_check
          %p1199 = pneg %p799
        $region138: #{_lambda_.10} parent=11 // pred_check_branch
          %1201 = sbr.rel (%p1199) target = $region140
        $region139: #{_lambda_.10} parent=11 // pred_region
          %s1203 = ssub.s32 16, 16
          %1204 = vsyncadd [#allocation53], %s1203
          %s1206 = sshll.u32 [#allocation54], 4
          %s1207 = int_to_ptr.vmem [resolvable:$true] %s1206
          %1209 = dma.hbm_to_vmem [thread:$0]  %s67, 16, %s1207, [#allocation53]
        $region140: #{_lambda_.10} parent=11 // pred_fallthru
          _
      $region12: #{_lambda_.10} parent=5 // pred_fallthru
        _
      %p1210 = scmp.lt.s32.totalorder %s101, 2
      // Predicated region
      $region141: #{_lambda_.10} parent=5 // pred_check
        %p1211 = pneg %p1210
      $region142: #{_lambda_.10} parent=5 // pred_check_branch
        %1213 = sbr.rel (%p1211) target = $region144
      $region143: #{_lambda_.10} parent=5 // pred_region
        // Predicated region
        $region145: #{_lambda_.10} parent=143 // pred_check
          %p1214 = pneg %p121
        $region146: #{_lambda_.10} parent=143 // pred_check_branch
          %1216 = sbr.rel (%p1214) target = $region148
        $region147: #{_lambda_.10} parent=143 // pred_region
          %s1217 = sand.u32 %s111, 1
          %s1218 = scalar_lea.sflag [#allocation5], %s1217
          %s1219 = sand.u32 %s111, 1
          %s1220 = smul.addr %s1219, 4
          %s1221 = scalar_lea.vmem [#allocation4], %s1220
          %s1223 = ssub.s32 64, 64
          %1224 = vsyncadd %s1218, %s1223
          %s1225 = smul.addr %s101, 64
          %s1226 = scalar_lea.hbm %s3, %s1225
          %s1228 = sshll.u32 %s1221, 4
          %s1229 = int_to_ptr.vmem [resolvable:$true] %s1228
          %1231 = dma.hbm_to_vmem [thread:$0]  %s1226, 64, %s1229, %s1218
        $region148: #{_lambda_.10} parent=143 // pred_fallthru
          _
      $region144: #{_lambda_.10} parent=5 // pred_fallthru
        _
      %p1232 = scmp.le.s32.totalorder 1, %s101
      %p1233 = scmp.lt.s32.totalorder %s101, 3
      %p1234 = pnand %p1232, %p1233
      %p1235 = pneg %p1234
      // Predicated region
      $region149: #{_lambda_.10} parent=5 // pred_check
        _
      $region150: #{_lambda_.10} parent=5 // pred_check_branch
        %1237 = sbr.rel (%p1234) target = $region152
      $region151: #{_lambda_.10} parent=5 // pred_region
        %s1238 = ssub.s32 %s101, 1
        %s1239 = sand.u32 %s114, 1
        %s1240 = scalar_lea.sflag [#allocation5], %s1239
        %s1241 = sand.u32 %s114, 1
        %s1242 = smul.addr %s1241, 4
        %s1243 = scalar_lea.vmem [#allocation4], %s1242
        // Predicated region
        $region153: #{_lambda_.10} parent=151 // pred_check
          %p1244 = pneg %p127
        $region154: #{_lambda_.10} parent=151 // pred_check_branch
          %1246 = sbr.rel (%p1244) target = $region156
        $region155: #{_lambda_.10} parent=151 // pred_region
          %1247 = dma.done %s1240, 64
        $region156: #{_lambda_.10} parent=151 // pred_fallthru
          _
        // Predicated region
        $region157: #{_lambda_.10} parent=151 // pred_check
          %p1248 = pneg %p148
        $region158: #{_lambda_.10} parent=151 // pred_check_branch
          %1250 = sbr.rel (%p1248) target = $region160
        $region159: #{_lambda_.10} parent=151 // pred_region
          %1251 = dma.done [#allocation8], 16
        $region160: #{_lambda_.10} parent=151 // pred_fallthru
          _
        // Predicated region
        $region161: #{_lambda_.10} parent=151 // pred_check
          %p1252 = pneg %p169
        $region162: #{_lambda_.10} parent=151 // pred_check_branch
          %1254 = sbr.rel (%p1252) target = $region164
        $region163: #{_lambda_.10} parent=151 // pred_region
          %1255 = dma.done [#allocation8], 16
        $region164: #{_lambda_.10} parent=151 // pred_fallthru
          _
        // Predicated region
        $region165: #{_lambda_.10} parent=151 // pred_check
          %p1256 = pneg %p190
        $region166: #{_lambda_.10} parent=151 // pred_check_branch
          %1258 = sbr.rel (%p1256) target = $region168
        $region167: #{_lambda_.10} parent=151 // pred_region
          %1259 = dma.done [#allocation11], 256
        $region168: #{_lambda_.10} parent=151 // pred_fallthru
          _
        // Predicated region
        $region169: #{_lambda_.10} parent=151 // pred_check
          %p1260 = pneg %p211
        $region170: #{_lambda_.10} parent=151 // pred_check_branch
          %1262 = sbr.rel (%p1260) target = $region172
        $region171: #{_lambda_.10} parent=151 // pred_region
          %1263 = dma.done [#allocation11], 16
        $region172: #{_lambda_.10} parent=151 // pred_fallthru
          _
        // Predicated region
        $region173: #{_lambda_.10} parent=151 // pred_check
          %p1264 = pneg %p232
        $region174: #{_lambda_.10} parent=151 // pred_check_branch
          %1266 = sbr.rel (%p1264) target = $region176
        $region175: #{_lambda_.10} parent=151 // pred_region
          %1267 = dma.done [#allocation14], 512
        $region176: #{_lambda_.10} parent=151 // pred_fallthru
          _
        // Predicated region
        $region177: #{_lambda_.10} parent=151 // pred_check
          %p1268 = pneg %p253
        $region178: #{_lambda_.10} parent=151 // pred_check_branch
          %1270 = sbr.rel (%p1268) target = $region180
        $region179: #{_lambda_.10} parent=151 // pred_region
          %1271 = dma.done [#allocation14], 16
        $region180: #{_lambda_.10} parent=151 // pred_fallthru
          _
        // Predicated region
        $region181: #{_lambda_.10} parent=151 // pred_check
          %p1272 = pneg %p274
        $region182: #{_lambda_.10} parent=151 // pred_check_branch
          %1274 = sbr.rel (%p1272) target = $region184
        $region183: #{_lambda_.10} parent=151 // pred_region
          %1275 = dma.done [#allocation17], 16
        $region184: #{_lambda_.10} parent=151 // pred_fallthru
          _
        // Predicated region
        $region185: #{_lambda_.10} parent=151 // pred_check
          %p1276 = pneg %p295
        $region186: #{_lambda_.10} parent=151 // pred_check_branch
          %1278 = sbr.rel (%p1276) target = $region188
        $region187: #{_lambda_.10} parent=151 // pred_region
          %1279 = dma.done [#allocation17], 16
        $region188: #{_lambda_.10} parent=151 // pred_fallthru
          _
        // Predicated region
        $region189: #{_lambda_.10} parent=151 // pred_check
          %p1280 = pneg %p316
        $region190: #{_lambda_.10} parent=151 // pred_check_branch
          %1282 = sbr.rel (%p1280) target = $region192
        $region191: #{_lambda_.10} parent=151 // pred_region
          %1283 = dma.done [#allocation20], 256
        $region192: #{_lambda_.10} parent=151 // pred_fallthru
          _
        // Predicated region
        $region193: #{_lambda_.10} parent=151 // pred_check
          %p1284 = pneg %p337
        $region194: #{_lambda_.10} parent=151 // pred_check_branch
          %1286 = sbr.rel (%p1284) target = $region196
        $region195: #{_lambda_.10} parent=151 // pred_region
          %1287 = dma.done [#allocation20], 16
        $region196: #{_lambda_.10} parent=151 // pred_fallthru
          _
        // Predicated region
        $region197: #{_lambda_.10} parent=151 // pred_check
          %p1288 = pneg %p358
        $region198: #{_lambda_.10} parent=151 // pred_check_branch
          %1290 = sbr.rel (%p1288) target = $region200
        $region199: #{_lambda_.10} parent=151 // pred_region
          %1291 = dma.done [#allocation23], 256
        $region200: #{_lambda_.10} parent=151 // pred_fallthru
          _
        // Predicated region
        $region201: #{_lambda_.10} parent=151 // pred_check
          %p1292 = pneg %p379
        $region202: #{_lambda_.10} parent=151 // pred_check_branch
          %1294 = sbr.rel (%p1292) target = $region204
        $region203: #{_lambda_.10} parent=151 // pred_region
          %1295 = dma.done [#allocation23], 16
        $region204: #{_lambda_.10} parent=151 // pred_fallthru
          _
        // Predicated region
        $region205: #{_lambda_.10} parent=151 // pred_check
          %p1296 = pneg %p400
        $region206: #{_lambda_.10} parent=151 // pred_check_branch
          %1298 = sbr.rel (%p1296) target = $region208
        $region207: #{_lambda_.10} parent=151 // pred_region
          %1299 = dma.done [#allocation26], 16
        $region208: #{_lambda_.10} parent=151 // pred_fallthru
          _
        // Predicated region
        $region209: #{_lambda_.10} parent=151 // pred_check
          %p1300 = pneg %p421
        $region210: #{_lambda_.10} parent=151 // pred_check_branch
          %1302 = sbr.rel (%p1300) target = $region212
        $region211: #{_lambda_.10} parent=151 // pred_region
          %1303 = dma.done [#allocation26], 16
        $region212: #{_lambda_.10} parent=151 // pred_fallthru
          _
        // Predicated region
        $region213: #{_lambda_.10} parent=151 // pred_check
          %p1304 = pneg %p442
        $region214: #{_lambda_.10} parent=151 // pred_check_branch
          %1306 = sbr.rel (%p1304) target = $region216
        $region215: #{_lambda_.10} parent=151 // pred_region
          %1307 = dma.done [#allocation29], 256
        $region216: #{_lambda_.10} parent=151 // pred_fallthru
          _
        // Predicated region
        $region217: #{_lambda_.10} parent=151 // pred_check
          %p1308 = pneg %p463
        $region218: #{_lambda_.10} parent=151 // pred_check_branch
          %1310 = sbr.rel (%p1308) target = $region220
        $region219: #{_lambda_.10} parent=151 // pred_region
          %1311 = dma.done [#allocation29], 16
        $region220: #{_lambda_.10} parent=151 // pred_fallthru
          _
        // Predicated region
        $region221: #{_lambda_.10} parent=151 // pred_check
          %p1312 = pneg %p484
        $region222: #{_lambda_.10} parent=151 // pred_check_branch
          %1314 = sbr.rel (%p1312) target = $region224
        $region223: #{_lambda_.10} parent=151 // pred_region
          %1315 = dma.done [#allocation32], 256
        $region224: #{_lambda_.10} parent=151 // pred_fallthru
          _
        // Predicated region
        $region225: #{_lambda_.10} parent=151 // pred_check
          %p1316 = pneg %p505
        $region226: #{_lambda_.10} parent=151 // pred_check_branch
          %1318 = sbr.rel (%p1316) target = $region228
        $region227: #{_lambda_.10} parent=151 // pred_region
          %1319 = dma.done [#allocation32], 16
        $region228: #{_lambda_.10} parent=151 // pred_fallthru
          _
        // Predicated region
        $region229: #{_lambda_.10} parent=151 // pred_check
          %p1320 = pneg %p526
        $region230: #{_lambda_.10} parent=151 // pred_check_branch
          %1322 = sbr.rel (%p1320) target = $region232
        $region231: #{_lambda_.10} parent=151 // pred_region
          %1323 = dma.done [#allocation35], 64
        $region232: #{_lambda_.10} parent=151 // pred_fallthru
          _
        // Predicated region
        $region233: #{_lambda_.10} parent=151 // pred_check
          %p1324 = pneg %p547
        $region234: #{_lambda_.10} parent=151 // pred_check_branch
          %1326 = sbr.rel (%p1324) target = $region236
        $region235: #{_lambda_.10} parent=151 // pred_region
          %1327 = dma.done [#allocation35], 16
        $region236: #{_lambda_.10} parent=151 // pred_fallthru
          _
        // Predicated region
        $region237: #{_lambda_.10} parent=151 // pred_check
          %p1328 = pneg %p568
        $region238: #{_lambda_.10} parent=151 // pred_check_branch
          %1330 = sbr.rel (%p1328) target = $region240
        $region239: #{_lambda_.10} parent=151 // pred_region
          %1331 = dma.done [#allocation38], 16
        $region240: #{_lambda_.10} parent=151 // pred_fallthru
          _
        // Predicated region
        $region241: #{_lambda_.10} parent=151 // pred_check
          %p1332 = pneg %p589
        $region242: #{_lambda_.10} parent=151 // pred_check_branch
          %1334 = sbr.rel (%p1332) target = $region244
        $region243: #{_lambda_.10} parent=151 // pred_region
          %1335 = dma.done [#allocation38], 16
        $region244: #{_lambda_.10} parent=151 // pred_fallthru
          _
        // Predicated region
        $region245: #{_lambda_.10} parent=151 // pred_check
          %p1336 = pneg %p610
        $region246: #{_lambda_.10} parent=151 // pred_check_branch
          %1338 = sbr.rel (%p1336) target = $region248
        $region247: #{_lambda_.10} parent=151 // pred_region
          %1339 = dma.done [#allocation41], 256
        $region248: #{_lambda_.10} parent=151 // pred_fallthru
          _
        // Predicated region
        $region249: #{_lambda_.10} parent=151 // pred_check
          %p1340 = pneg %p631
        $region250: #{_lambda_.10} parent=151 // pred_check_branch
          %1342 = sbr.rel (%p1340) target = $region252
        $region251: #{_lambda_.10} parent=151 // pred_region
          %1343 = dma.done [#allocation41], 16
        $region252: #{_lambda_.10} parent=151 // pred_fallthru
          _
        // Predicated region
        $region253: #{_lambda_.10} parent=151 // pred_check
          %p1344 = pneg %p652
        $region254: #{_lambda_.10} parent=151 // pred_check_branch
          %1346 = sbr.rel (%p1344) target = $region256
        $region255: #{_lambda_.10} parent=151 // pred_region
          %1347 = dma.done [#allocation44], 16
        $region256: #{_lambda_.10} parent=151 // pred_fallthru
          _
        // Predicated region
        $region257: #{_lambda_.10} parent=151 // pred_check
          %p1348 = pneg %p673
        $region258: #{_lambda_.10} parent=151 // pred_check_branch
          %1350 = sbr.rel (%p1348) target = $region260
        $region259: #{_lambda_.10} parent=151 // pred_region
          %1351 = dma.done [#allocation44], 16
        $region260: #{_lambda_.10} parent=151 // pred_fallthru
          _
        // Predicated region
        $region261: #{_lambda_.10} parent=151 // pred_check
          %p1352 = pneg %p694
        $region262: #{_lambda_.10} parent=151 // pred_check_branch
          %1354 = sbr.rel (%p1352) target = $region264
        $region263: #{_lambda_.10} parent=151 // pred_region
          %1355 = dma.done [#allocation47], 256
        $region264: #{_lambda_.10} parent=151 // pred_fallthru
          _
        // Predicated region
        $region265: #{_lambda_.10} parent=151 // pred_check
          %p1356 = pneg %p715
        $region266: #{_lambda_.10} parent=151 // pred_check_branch
          %1358 = sbr.rel (%p1356) target = $region268
        $region267: #{_lambda_.10} parent=151 // pred_region
          %1359 = dma.done [#allocation47], 16
        $region268: #{_lambda_.10} parent=151 // pred_fallthru
          _
        // Predicated region
        $region269: #{_lambda_.10} parent=151 // pred_check
          %p1360 = pneg %p736
        $region270: #{_lambda_.10} parent=151 // pred_check_branch
          %1362 = sbr.rel (%p1360) target = $region272
        $region271: #{_lambda_.10} parent=151 // pred_region
          %1363 = dma.done [#allocation50], 512
        $region272: #{_lambda_.10} parent=151 // pred_fallthru
          _
        // Predicated region
        $region273: #{_lambda_.10} parent=151 // pred_check
          %p1364 = pneg %p757
        $region274: #{_lambda_.10} parent=151 // pred_check_branch
          %1366 = sbr.rel (%p1364) target = $region276
        $region275: #{_lambda_.10} parent=151 // pred_region
          %1367 = dma.done [#allocation50], 16
        $region276: #{_lambda_.10} parent=151 // pred_fallthru
          _
        // Predicated region
        $region277: #{_lambda_.10} parent=151 // pred_check
          %p1368 = pneg %p778
        $region278: #{_lambda_.10} parent=151 // pred_check_branch
          %1370 = sbr.rel (%p1368) target = $region280
        $region279: #{_lambda_.10} parent=151 // pred_region
          %1371 = dma.done [#allocation53], 16
        $region280: #{_lambda_.10} parent=151 // pred_fallthru
          _
        // Predicated region
        $region281: #{_lambda_.10} parent=151 // pred_check
          %p1372 = pneg %p799
        $region282: #{_lambda_.10} parent=151 // pred_check_branch
          %1374 = sbr.rel (%p1372) target = $region284
        $region283: #{_lambda_.10} parent=151 // pred_region
          %1375 = dma.done [#allocation53], 16
        $region284: #{_lambda_.10} parent=151 // pred_fallthru
          _
        %s1376 = sand.u32 %s114, 1
        %s1377 = scalar_lea.sflag [#allocation5], %s1376
        %s1378 = sand.u32 %s114, 1
        %s1379 = smul.addr %s1378, 4
        %s1380 = scalar_lea.vmem [#allocation4], %s1379
        %p1381 = pneg %p127
        %p1382 = pneg %p124
        %p1383 = pneg %p148
        %p1384 = pneg %p145
        %p1385 = pneg %p169
        %p1386 = pneg %p166
        %p1387 = pneg %p190
        %p1388 = pneg %p187
        %p1389 = pneg %p211
        %p1390 = pneg %p208
        %p1391 = pneg %p232
        %p1392 = pneg %p229
        %p1393 = pneg %p253
        %p1394 = pneg %p250
        %p1395 = pneg %p274
        %p1396 = pneg %p271
        %p1397 = pneg %p295
        %p1398 = pneg %p292
        %p1399 = pneg %p316
        %p1400 = pneg %p313
        %p1401 = pneg %p337
        %p1402 = pneg %p334
        %p1403 = pneg %p358
        %p1404 = pneg %p355
        %p1405 = pneg %p379
        %p1406 = pneg %p376
        %p1407 = pneg %p400
        %p1408 = pneg %p397
        %p1409 = pneg %p421
        %p1410 = pneg %p418
        %p1411 = pneg %p442
        %p1412 = pneg %p439
        %p1413 = pneg %p463
        %p1414 = pneg %p460
        %p1415 = pneg %p484
        %p1416 = pneg %p481
        %p1417 = pneg %p505
        %p1418 = pneg %p502
        %p1419 = pneg %p526
        %p1420 = pneg %p523
        %p1421 = pneg %p547
        %p1422 = pneg %p544
        %p1423 = pneg %p568
        %p1424 = pneg %p565
        %p1425 = pneg %p589
        %p1426 = pneg %p586
        %p1427 = pneg %p610
        %p1428 = pneg %p607
        %p1429 = pneg %p631
        %p1430 = pneg %p628
        %p1431 = pneg %p652
        %p1432 = pneg %p649
        %p1433 = pneg %p673
        %p1434 = pneg %p670
        %p1435 = pneg %p694
        %p1436 = pneg %p691
        %p1437 = pneg %p715
        %p1438 = pneg %p712
        %p1439 = pneg %p736
        %p1440 = pneg %p733
        %p1441 = pneg %p757
        %p1442 = pneg %p754
        %p1443 = pneg %p778
        %p1444 = pneg %p775
        %p1445 = pneg %p799
        %p1446 = pneg %p796
        %p1447 = pneg %p825
        %p1448 = pneg %p822
        %s1449 = sand.u32 %s812, 1
        %s1450 = scalar_lea.sflag [#allocation6], %s1449
        %s1451 = sand.u32 %s812, 1
        %s1452 = smul.addr %s1451, 4
        %s1453 = scalar_lea.vmem [#allocation55], %s1452
        %s1455 = sld [smem:[#allocation3 + %s106]]
        %v1456 = vld [vmem:[%s1243] sm:$0x7]
        %v1457 = vlaneseq
        %v1458 = vshrl.u32 %v1457, 7
        %v1459 = vlaneseq
        %v1460 = vand.u32 %v1459, 127
        %vm1461 = vcmp.le.s32.totalorder %v1460, %v1458
        %v1462 = vstv %s1455
        %vm1463 = vcmp.lt.s32.totalorder %v1460, %v1462
        %vm1464 = vmand %vm1461, %vm1463
        %v1465 = vsub.s32 %v1458, %v1460
        %vm1466 = vcmp.le.s32.totalorder %v1465, 4
        %vm1467 = vmand %vm1464, %vm1466
        %v1468 = vld [vmem:[#allocation7] sm:$0x1]
        %v1469 = vld [vmem:[#allocation9] sm:$0x1]
        %vm1470 = vcmask 256000
        %v1471 = vsel %vm1470, %v1456, 0.0
        %1472 = vadd.xlane.f32.xlu0 %v1471
        %v1473 = vpop.xlane.xlu0 %1472
        %v1474 = vrcp.pop 32.0
        %v1475 = vmul.f32 %v1473, %v1474
        %v1476 = vsub.f32 %v1456, %v1475
        %v1477 = vmul.f32 %v1476, %v1476
        %v1478 = vsel %vm1470, %v1477, 0.0
        %1479 = vadd.xlane.f32.xlu0 %v1478
        %v1480 = vpop.xlane.xlu0 %1479
        %v1481 = vmul.f32 %v1480, %v1474
        %v1482 = vadd.f32 %v1481, 1e-05
        %v1483 = vrsqrt.pop %v1482
        %v1484 = vmul.f32 %v1476, %v1483
        %v1486 = vlaneseq
        %v1487 = vshrl.u32 %v1486, 7
        %v1488 = vsub.s32 0, %v1487
        %v1489 = vrot.slane %v1468, %v1488
        %v1491 = vmul.f32 %v1484, %v1489
        %v1493 = vlaneseq
        %v1494 = vshrl.u32 %v1493, 7
        %v1495 = vsub.s32 0, %v1494
        %v1496 = vrot.slane %v1469, %v1495
        %v1498 = vadd.f32 %v1491, %v1496
        %v1499 = vpack.c.bf16 %v1498, %v1498
        %v1500 = vld [vmem:[#allocation10] sm:$0xf]
        %v1501 = vld [vmem:[#allocation10 + $0x4] sm:$0xf]
        %v1502 = vld [vmem:[#allocation10 + $0x8] sm:$0xf]
        %v1503 = vld [vmem:[#allocation10 + $0xc] sm:$0xf]
        %v1504 = vld [vmem:[#allocation12] sm:$0x1]
        %v1506 = vlaneseq
        %v1507 = vshrl.u32 %v1506, 7
        %v1508 = vsub.s32 0, %v1507
        %v1509 = vrot.slane %v1504, %v1508
        %v1515 = vunpack.c.l.b16 %v1500
        %v1516 = vunpack.c.l.b16 %v1501
        %v1517 = vunpack.c.l.b16 %v1502
        %v1518 = vunpack.c.l.b16 %v1503
        %v1519 = vpack.c.b16 %v1516, %v1515
        %v1520 = vpack.c.b16 %v1518, %v1517
        %vm1523 = vcmask 261120
        %v1525 = vsel %vm1523, %v1499, 0
        %1527 = vmatprep.subr.bf16.mxu0 0
        %1528 = vmatpush1.bf16.msra.mxu0 %v1519
        %1529 = vmatprep.subr.bf16.mxu0 0
        %1530 = vmatpush1.bf16.msra.mxu0 %v1520
        %1531 = vmatprep.subr.bf16.mxu0 0
        %1532 = vmatpush1.bf16.msra.mxu0 0
        %1533 = vmatprep.subr.bf16.mxu0 0
        %1534 = vmatpush1.bf16.msra.mxu0 0
        %1535 = vmatprep.subr.bf16.mxu0 0
        %1536 = vmatpush1.bf16.msra.mxu0 0
        %1537 = vmatprep.subr.bf16.mxu0 0
        %1538 = vmatpush1.bf16.msra.mxu0 0
        %1539 = vmatprep.subr.bf16.mxu0 0
        %1540 = vmatpush1.bf16.msra.mxu0 0
        %1541 = vmatprep.subr.bf16.mxu0 0
        %1542 = vmatpush1.bf16.msra.mxu0 0
        %1543 = vmatprep.subr.bf16.mxu0 0
        %1544 = vmatpush1.bf16.msra.mxu0 0
        %1545 = vmatprep.subr.bf16.mxu0 0
        %1546 = vmatpush1.bf16.msra.mxu0 0
        %1547 = vmatprep.subr.bf16.mxu0 0
        %1548 = vmatpush1.bf16.msra.mxu0 0
        %1549 = vmatprep.subr.bf16.mxu0 0
        %1550 = vmatpush1.bf16.msra.mxu0 0
        %1551 = vmatprep.subr.bf16.mxu0 0
        %1552 = vmatpush1.bf16.msra.mxu0 0
        %1553 = vmatprep.subr.bf16.mxu0 0
        %1554 = vmatpush1.bf16.msra.mxu0 0
        %1555 = vmatprep.subr.bf16.mxu0 0
        %1556 = vmatpush1.bf16.msra.mxu0 0
        %1557 = vmatprep.subr.bf16.mxu0 0
        %1558 = vmatpush1.bf16.msra.mxu0 0
        %1559 = vmatprep.mubr.bf16.mxu0 0
        %1560 = vmatmul.mubr.bf16.gmra.mrb[0].mxu0 %v1525
        %v1561 = vpop.f32.mrb[0].mxu0
        %v1562 = vadd.f32 %v1509, %v1561
        %v1563 = vpop.f32.mrb[0].mxu0
        %v1564 = vpop.f32.mrb[0].mxu0
        %v1565 = vpop.f32.mrb[0].mxu0
        %1566 = vdwg.mxu0
        %v1567 = vxor.u32 %v1562, 2147483648
        %v1568 = vmul.f32 %v1567, 1.442695
        %v1569 = vpow.pop %v1568
        %v1570 = vadd.f32 %v1569, 1.0
        %v1571 = vrcp.pop %v1570
        %v1572 = vmul.f32 1.0, %v1571
        %v1573 = vmul.f32 %v1562, %v1572
        %v1574 = vpack.c.bf16 %v1573, %v1573
        %v1575 = vld [vmem:[#allocation13] sm:$0xf]
        %v1576 = vld [vmem:[#allocation13 + $0x4] sm:$0xf]
        %v1577 = vld [vmem:[#allocation13 + $0x8] sm:$0xf]
        %v1578 = vld [vmem:[#allocation13 + $0xc] sm:$0xf]
        %v1579 = vld [vmem:[#allocation13 + $0x10] sm:$0xf]
        %v1580 = vld [vmem:[#allocation13 + $0x14] sm:$0xf]
        %v1581 = vld [vmem:[#allocation13 + $0x18] sm:$0xf]
        %v1582 = vld [vmem:[#allocation13 + $0x1c] sm:$0xf]
        %v1583 = vld [vmem:[#allocation15] sm:$0x1]
        %v1585 = vlaneseq
        %v1586 = vshrl.u32 %v1585, 7
        %v1587 = vsub.s32 0, %v1586
        %v1588 = vrot.slane %v1583, %v1587
        %v1598 = vunpack.c.l.b16 %v1575
        %v1599 = vunpack.c.l.b16 %v1576
        %v1600 = vunpack.c.l.b16 %v1577
        %v1601 = vunpack.c.l.b16 %v1578
        %v1602 = vunpack.c.l.b16 %v1579
        %v1603 = vunpack.c.l.b16 %v1580
        %v1604 = vunpack.c.l.b16 %v1581
        %v1605 = vunpack.c.l.b16 %v1582
        %v1606 = vpack.c.b16 %v1599, %v1598
        %v1607 = vpack.c.b16 %v1601, %v1600
        %v1608 = vpack.c.b16 %v1603, %v1602
        %v1609 = vpack.c.b16 %v1605, %v1604
        %vm1614 = vcmask 523264
        %v1616 = vsel %vm1614, %v1574, 0
        %1618 = vmatprep.subr.bf16.mxu0 0
        %1619 = vmatpush1.bf16.msra.mxu0 %v1606
        %1620 = vmatprep.subr.bf16.mxu0 0
        %1621 = vmatpush1.bf16.msra.mxu0 %v1607
        %1622 = vmatprep.subr.bf16.mxu0 0
        %1623 = vmatpush1.bf16.msra.mxu0 %v1608
        %1624 = vmatprep.subr.bf16.mxu0 0
        %1625 = vmatpush1.bf16.msra.mxu0 %v1609
        %1626 = vmatprep.subr.bf16.mxu0 0
        %1627 = vmatpush1.bf16.msra.mxu0 0
        %1628 = vmatprep.subr.bf16.mxu0 0
        %1629 = vmatpush1.bf16.msra.mxu0 0
        %1630 = vmatprep.subr.bf16.mxu0 0
        %1631 = vmatpush1.bf16.msra.mxu0 0
        %1632 = vmatprep.subr.bf16.mxu0 0
        %1633 = vmatpush1.bf16.msra.mxu0 0
        %1634 = vmatprep.subr.bf16.mxu0 0
        %1635 = vmatpush1.bf16.msra.mxu0 0
        %1636 = vmatprep.subr.bf16.mxu0 0
        %1637 = vmatpush1.bf16.msra.mxu0 0
        %1638 = vmatprep.subr.bf16.mxu0 0
        %1639 = vmatpush1.bf16.msra.mxu0 0
        %1640 = vmatprep.subr.bf16.mxu0 0
        %1641 = vmatpush1.bf16.msra.mxu0 0
        %1642 = vmatprep.subr.bf16.mxu0 0
        %1643 = vmatpush1.bf16.msra.mxu0 0
        %1644 = vmatprep.subr.bf16.mxu0 0
        %1645 = vmatpush1.bf16.msra.mxu0 0
        %1646 = vmatprep.subr.bf16.mxu0 0
        %1647 = vmatpush1.bf16.msra.mxu0 0
        %1648 = vmatprep.subr.bf16.mxu0 0
        %1649 = vmatpush1.bf16.msra.mxu0 0
        %1650 = vmatprep.mubr.bf16.mxu0 0
        %1651 = vmatmul.mubr.bf16.gmra.mrb[0].mxu0 %v1616
        %v1652 = vpop.f32.mrb[0].mxu0
        %v1653 = vadd.f32 %v1588, %v1652
        %v1654 = vpop.f32.mrb[0].mxu0
        %v1655 = vpop.f32.mrb[0].mxu0
        %v1656 = vpop.f32.mrb[0].mxu0
        %1657 = vdwg.mxu0
        %v1658 = vmul.f32 %v1653, 0.5
        %v1659 = vadd.f32 %v1456, %v1658
        %v1660 = vld [vmem:[#allocation16] sm:$0x1]
        %v1661 = vld [vmem:[#allocation18] sm:$0x1]
        %v1662 = vsel %vm1470, %v1659, 0.0
        %1663 = vadd.xlane.f32.xlu0 %v1662
        %v1664 = vpop.xlane.xlu0 %1663
        %v1665 = vmul.f32 %v1664, %v1474
        %v1666 = vsub.f32 %v1659, %v1665
        %v1667 = vmul.f32 %v1666, %v1666
        %v1668 = vsel %vm1470, %v1667, 0.0
        %1669 = vadd.xlane.f32.xlu0 %v1668
        %v1670 = vpop.xlane.xlu0 %1669
        %v1671 = vmul.f32 %v1670, %v1474
        %v1672 = vadd.f32 %v1671, 1e-05
        %v1673 = vrsqrt.pop %v1672
        %v1674 = vmul.f32 %v1666, %v1673
        %v1676 = vlaneseq
        %v1677 = vshrl.u32 %v1676, 7
        %v1678 = vsub.s32 0, %v1677
        %v1679 = vrot.slane %v1660, %v1678
        %v1681 = vmul.f32 %v1674, %v1679
        %v1683 = vlaneseq
        %v1684 = vshrl.u32 %v1683, 7
        %v1685 = vsub.s32 0, %v1684
        %v1686 = vrot.slane %v1661, %v1685
        %v1688 = vadd.f32 %v1681, %v1686
        %v1689 = vpack.c.bf16 %v1688, %v1688
        %v1690 = vld [vmem:[#allocation19] sm:$0xf]
        %v1691 = vld [vmem:[#allocation19 + $0x4] sm:$0xf]
        %v1692 = vld [vmem:[#allocation19 + $0x8] sm:$0xf]
        %v1693 = vld [vmem:[#allocation19 + $0xc] sm:$0xf]
        %v1694 = vld [vmem:[#allocation21] sm:$0x1]
        %v1696 = vlaneseq
        %v1697 = vshrl.u32 %v1696, 7
        %v1698 = vsub.s32 0, %v1697
        %v1699 = vrot.slane %v1694, %v1698
        %v1705 = vunpack.c.l.b16 %v1690
        %v1706 = vunpack.c.l.b16 %v1691
        %v1707 = vunpack.c.l.b16 %v1692
        %v1708 = vunpack.c.l.b16 %v1693
        %v1709 = vpack.c.b16 %v1706, %v1705
        %v1710 = vpack.c.b16 %v1708, %v1707
        %v1714 = vsel %vm1523, %v1689, 0
        %1716 = vmatprep.subr.bf16.mxu0 0
        %1717 = vmatpush1.bf16.msra.mxu0 %v1709
        %1718 = vmatprep.subr.bf16.mxu0 0
        %1719 = vmatpush1.bf16.msra.mxu0 %v1710
        %1720 = vmatprep.subr.bf16.mxu0 0
        %1721 = vmatpush1.bf16.msra.mxu0 0
        %1722 = vmatprep.subr.bf16.mxu0 0
        %1723 = vmatpush1.bf16.msra.mxu0 0
        %1724 = vmatprep.subr.bf16.mxu0 0
        %1725 = vmatpush1.bf16.msra.mxu0 0
        %1726 = vmatprep.subr.bf16.mxu0 0
        %1727 = vmatpush1.bf16.msra.mxu0 0
        %1728 = vmatprep.subr.bf16.mxu0 0
        %1729 = vmatpush1.bf16.msra.mxu0 0
        %1730 = vmatprep.subr.bf16.mxu0 0
        %1731 = vmatpush1.bf16.msra.mxu0 0
        %1732 = vmatprep.subr.bf16.mxu0 0
        %1733 = vmatpush1.bf16.msra.mxu0 0
        %1734 = vmatprep.subr.bf16.mxu0 0
        %1735 = vmatpush1.bf16.msra.mxu0 0
        %1736 = vmatprep.subr.bf16.mxu0 0
        %1737 = vmatpush1.bf16.msra.mxu0 0
        %1738 = vmatprep.subr.bf16.mxu0 0
        %1739 = vmatpush1.bf16.msra.mxu0 0
        %1740 = vmatprep.subr.bf16.mxu0 0
        %1741 = vmatpush1.bf16.msra.mxu0 0
        %1742 = vmatprep.subr.bf16.mxu0 0
        %1743 = vmatpush1.bf16.msra.mxu0 0
        %1744 = vmatprep.subr.bf16.mxu0 0
        %1745 = vmatpush1.bf16.msra.mxu0 0
        %1746 = vmatprep.subr.bf16.mxu0 0
        %1747 = vmatpush1.bf16.msra.mxu0 0
        %1748 = vmatprep.mubr.bf16.mxu0 0
        %1749 = vmatmul.mubr.bf16.gmra.mrb[0].mxu0 %v1714
        %v1750 = vpop.f32.mrb[0].mxu0
        %v1751 = vadd.f32 %v1699, %v1750
        %v1752 = vpop.f32.mrb[0].mxu0
        %v1753 = vpop.f32.mrb[0].mxu0
        %v1754 = vpop.f32.mrb[0].mxu0
        %1755 = vdwg.mxu0
        %v1756 = vmul.f32 %v1751, 0.35355338
        %v1757 = vpack.c.bf16 %v1756, %v1756
        %v1758 = vpack.c.bf16 %v1751, %v1751
        %1760 = vrot.lane.b32.xlu0 %v1758, 96
        %v1761 = vpop.permute.xlu0 %1760
        %vm1762 = vcmask 64512
        %v1764 = vsel %vm1762, %v1757, 0
        %v1767 = vsel %vm1762, %v1761, 0
        %1769 = vmatprep.subr.bf16.mxu0 0
        %1770 = vmatpush1.bf16.xpose.msra.mxu0 %v1767
        %1771 = vmatprep.subr.bf16.mxu0 0
        %1772 = vmatpush1.bf16.xpose.msra.mxu0 0
        %1773 = vmatprep.subr.bf16.mxu0 0
        %1774 = vmatpush1.bf16.xpose.msra.mxu0 0
        %1775 = vmatprep.subr.bf16.mxu0 0
        %1776 = vmatpush1.bf16.xpose.msra.mxu0 0
        %1777 = vmatprep.subr.bf16.mxu0 0
        %1778 = vmatpush1.bf16.xpose.msra.mxu0 0
        %1779 = vmatprep.subr.bf16.mxu0 0
        %1780 = vmatpush1.bf16.xpose.msra.mxu0 0
        %1781 = vmatprep.subr.bf16.mxu0 0
        %1782 = vmatpush1.bf16.xpose.msra.mxu0 0
        %1783 = vmatprep.subr.bf16.mxu0 0
        %1784 = vmatpush1.bf16.xpose.msra.mxu0 0
        %1785 = vmatprep.subr.bf16.mxu0 0
        %1786 = vmatpush1.bf16.xpose.msra.mxu0 0
        %1787 = vmatprep.subr.bf16.mxu0 0
        %1788 = vmatpush1.bf16.xpose.msra.mxu0 0
        %1789 = vmatprep.subr.bf16.mxu0 0
        %1790 = vmatpush1.bf16.xpose.msra.mxu0 0
        %1791 = vmatprep.subr.bf16.mxu0 0
        %1792 = vmatpush1.bf16.xpose.msra.mxu0 0
        %1793 = vmatprep.subr.bf16.mxu0 0
        %1794 = vmatpush1.bf16.xpose.msra.mxu0 0
        %1795 = vmatprep.subr.bf16.mxu0 0
        %1796 = vmatpush1.bf16.xpose.msra.mxu0 0
        %1797 = vmatprep.subr.bf16.mxu0 0
        %1798 = vmatpush1.bf16.xpose.msra.mxu0 0
        %1799 = vmatprep.subr.bf16.mxu0 0
        %1800 = vmatpush1.bf16.xpose.msra.mxu0 0
        %1801 = vmatprep.mubr.bf16.mxu0 0
        %1802 = vmatmul.mubr.bf16.gmra.mrb[0].mxu0 %v1764
        %v1803 = vpop.f32.mrb[0].mxu0
        %v1804 = vadd.f32 0.0, %v1803
        %v1805 = vpop.f32.mrb[0].mxu0
        %v1806 = vpop.f32.mrb[0].mxu0
        %v1807 = vpop.f32.mrb[0].mxu0
        %1808 = vdwg.mxu0
        %v1809 = vsel %vm1467, %v1804, -1e+30
        %vm1810 = vcmask 18432
        %v1811 = vsel %vm1810, %v1809, -inf
        %1812 = vmax.xlane.f32.xlu0 %v1811
        %v1813 = vpop.xlane.xlu0 %1812
        %v1814 = vsub.f32 %v1809, %v1813
        %v1815 = vmul.f32 %v1814, 1.442695
        %v1816 = vpow.pop %v1815
        %v1817 = vsel %vm1810, %v1816, 0.0
        %1818 = vadd.xlane.f32.xlu0 %v1817
        %v1819 = vpop.xlane.xlu0 %1818
        %v1820 = vrcp.pop %v1819
        %v1821 = vmul.f32 %v1816, %v1820
        %v1822 = vpack.c.bf16 %v1821, %v1821
        %1823 = vrot.lane.b32.xlu0 %v1758, 64
        %v1824 = vpop.permute.xlu0 %1823
        %vm1825 = vcmask 23552
        %v1827 = vsel %vm1825, %v1822, 0
        %vm1829 = vcmask 1040384
        %vm1830 = vcmask 1041408
        %v1831 = vsel %vm1829, 4294967295, 65535
        %v1832 = vsel %vm1830, %v1831, 0
        %v1834 = vand.u32 %v1824, %v1832
        %1836 = vmatprep.subr.bf16.mxu0 0
        %1837 = vmatpush1.bf16.msra.mxu0 %v1834
        %1838 = vmatprep.subr.bf16.mxu0 0
        %1839 = vmatpush1.bf16.msra.mxu0 0
        %1840 = vmatprep.subr.bf16.mxu0 0
        %1841 = vmatpush1.bf16.msra.mxu0 0
        %1842 = vmatprep.subr.bf16.mxu0 0
        %1843 = vmatpush1.bf16.msra.mxu0 0
        %1844 = vmatprep.subr.bf16.mxu0 0
        %1845 = vmatpush1.bf16.msra.mxu0 0
        %1846 = vmatprep.subr.bf16.mxu0 0
        %1847 = vmatpush1.bf16.msra.mxu0 0
        %1848 = vmatprep.subr.bf16.mxu0 0
        %1849 = vmatpush1.bf16.msra.mxu0 0
        %1850 = vmatprep.subr.bf16.mxu0 0
        %1851 = vmatpush1.bf16.msra.mxu0 0
        %1852 = vmatprep.subr.bf16.mxu0 0
        %1853 = vmatpush1.bf16.msra.mxu0 0
        %1854 = vmatprep.subr.bf16.mxu0 0
        %1855 = vmatpush1.bf16.msra.mxu0 0
        %1856 = vmatprep.subr.bf16.mxu0 0
        %1857 = vmatpush1.bf16.msra.mxu0 0
        %1858 = vmatprep.subr.bf16.mxu0 0
        %1859 = vmatpush1.bf16.msra.mxu0 0
        %1860 = vmatprep.subr.bf16.mxu0 0
        %1861 = vmatpush1.bf16.msra.mxu0 0
        %1862 = vmatprep.subr.bf16.mxu0 0
        %1863 = vmatpush1.bf16.msra.mxu0 0
        %1864 = vmatprep.subr.bf16.mxu0 0
        %1865 = vmatpush1.bf16.msra.mxu0 0
        %1866 = vmatprep.subr.bf16.mxu0 0
        %1867 = vmatpush1.bf16.msra.mxu0 0
        %1868 = vmatprep.mubr.bf16.mxu0 0
        %1869 = vmatmul.mubr.bf16.gmra.mrb[0].mxu0 %v1827
        %v1870 = vpop.f32.mrb[0].mxu0
        %v1871 = vadd.f32 0.0, %v1870
        %v1872 = vpop.f32.mrb[0].mxu0
        %v1873 = vpop.f32.mrb[0].mxu0
        %v1874 = vpop.f32.mrb[0].mxu0
        %1875 = vdwg.mxu0
        %1877 = vrot.lane.b32.xlu0 %v1757, 120
        %v1878 = vpop.permute.xlu0 %1877
        %1879 = vrot.lane.b32.xlu0 %v1758, 88
        %v1880 = vpop.permute.xlu0 %1879
        %v1882 = vsel %vm1762, %v1878, 0
        %v1885 = vsel %vm1762, %v1880, 0
        %1887 = vmatprep.subr.bf16.mxu0 0
        %1888 = vmatpush1.bf16.xpose.msra.mxu0 %v1885
        %1889 = vmatprep.subr.bf16.mxu0 0
        %1890 = vmatpush1.bf16.xpose.msra.mxu0 0
        %1891 = vmatprep.subr.bf16.mxu0 0
        %1892 = vmatpush1.bf16.xpose.msra.mxu0 0
        %1893 = vmatprep.subr.bf16.mxu0 0
        %1894 = vmatpush1.bf16.xpose.msra.mxu0 0
        %1895 = vmatprep.subr.bf16.mxu0 0
        %1896 = vmatpush1.bf16.xpose.msra.mxu0 0
        %1897 = vmatprep.subr.bf16.mxu0 0
        %1898 = vmatpush1.bf16.xpose.msra.mxu0 0
        %1899 = vmatprep.subr.bf16.mxu0 0
        %1900 = vmatpush1.bf16.xpose.msra.mxu0 0
        %1901 = vmatprep.subr.bf16.mxu0 0
        %1902 = vmatpush1.bf16.xpose.msra.mxu0 0
        %1903 = vmatprep.subr.bf16.mxu0 0
        %1904 = vmatpush1.bf16.xpose.msra.mxu0 0
        %1905 = vmatprep.subr.bf16.mxu0 0
        %1906 = vmatpush1.bf16.xpose.msra.mxu0 0
        %1907 = vmatprep.subr.bf16.mxu0 0
        %1908 = vmatpush1.bf16.xpose.msra.mxu0 0
        %1909 = vmatprep.subr.bf16.mxu0 0
        %1910 = vmatpush1.bf16.xpose.msra.mxu0 0
        %1911 = vmatprep.subr.bf16.mxu0 0
        %1912 = vmatpush1.bf16.xpose.msra.mxu0 0
        %1913 = vmatprep.subr.bf16.mxu0 0
        %1914 = vmatpush1.bf16.xpose.msra.mxu0 0
        %1915 = vmatprep.subr.bf16.mxu0 0
        %1916 = vmatpush1.bf16.xpose.msra.mxu0 0
        %1917 = vmatprep.subr.bf16.mxu0 0
        %1918 = vmatpush1.bf16.xpose.msra.mxu0 0
        %1919 = vmatprep.mubr.bf16.mxu0 0
        %1920 = vmatmul.mubr.bf16.gmra.mrb[0].mxu0 %v1882
        %v1921 = vpop.f32.mrb[0].mxu0
        %v1922 = vadd.f32 0.0, %v1921
        %v1923 = vpop.f32.mrb[0].mxu0
        %v1924 = vpop.f32.mrb[0].mxu0
        %v1925 = vpop.f32.mrb[0].mxu0
        %1926 = vdwg.mxu0
        %v1927 = vsel %vm1467, %v1922, -1e+30
        %v1928 = vsel %vm1810, %v1927, -inf
        %1929 = vmax.xlane.f32.xlu0 %v1928
        %v1930 = vpop.xlane.xlu0 %1929
        %v1931 = vsub.f32 %v1927, %v1930
        %v1932 = vmul.f32 %v1931, 1.442695
        %v1933 = vpow.pop %v1932
        %v1934 = vsel %vm1810, %v1933, 0.0
        %1935 = vadd.xlane.f32.xlu0 %v1934
        %v1936 = vpop.xlane.xlu0 %1935
        %v1937 = vrcp.pop %v1936
        %v1938 = vmul.f32 %v1933, %v1937
        %v1939 = vpack.c.bf16 %v1938, %v1938
        %1940 = vrot.lane.b32.xlu0 %v1758, 56
        %v1941 = vpop.permute.xlu0 %1940
        %v1943 = vsel %vm1825, %v1939, 0
        %v1946 = vand.u32 %v1941, %v1832
        %1948 = vmatprep.subr.bf16.mxu0 0
        %1949 = vmatpush1.bf16.msra.mxu0 %v1946
        %1950 = vmatprep.subr.bf16.mxu0 0
        %1951 = vmatpush1.bf16.msra.mxu0 0
        %1952 = vmatprep.subr.bf16.mxu0 0
        %1953 = vmatpush1.bf16.msra.mxu0 0
        %1954 = vmatprep.subr.bf16.mxu0 0
        %1955 = vmatpush1.bf16.msra.mxu0 0
        %1956 = vmatprep.subr.bf16.mxu0 0
        %1957 = vmatpush1.bf16.msra.mxu0 0
        %1958 = vmatprep.subr.bf16.mxu0 0
        %1959 = vmatpush1.bf16.msra.mxu0 0
        %1960 = vmatprep.subr.bf16.mxu0 0
        %1961 = vmatpush1.bf16.msra.mxu0 0
        %1962 = vmatprep.subr.bf16.mxu0 0
        %1963 = vmatpush1.bf16.msra.mxu0 0
        %1964 = vmatprep.subr.bf16.mxu0 0
        %1965 = vmatpush1.bf16.msra.mxu0 0
        %1966 = vmatprep.subr.bf16.mxu0 0
        %1967 = vmatpush1.bf16.msra.mxu0 0
        %1968 = vmatprep.subr.bf16.mxu0 0
        %1969 = vmatpush1.bf16.msra.mxu0 0
        %1970 = vmatprep.subr.bf16.mxu0 0
        %1971 = vmatpush1.bf16.msra.mxu0 0
        %1972 = vmatprep.subr.bf16.mxu0 0
        %1973 = vmatpush1.bf16.msra.mxu0 0
        %1974 = vmatprep.subr.bf16.mxu0 0
        %1975 = vmatpush1.bf16.msra.mxu0 0
        %1976 = vmatprep.subr.bf16.mxu0 0
        %1977 = vmatpush1.bf16.msra.mxu0 0
        %1978 = vmatprep.subr.bf16.mxu0 0
        %1979 = vmatpush1.bf16.msra.mxu0 0
        %1980 = vmatprep.mubr.bf16.mxu0 0
        %1981 = vmatmul.mubr.bf16.gmra.mrb[0].mxu0 %v1943
        %v1982 = vpop.f32.mrb[0].mxu0
        %v1983 = vadd.f32 0.0, %v1982
        %v1984 = vpop.f32.mrb[0].mxu0
        %v1985 = vpop.f32.mrb[0].mxu0
        %v1986 = vpop.f32.mrb[0].mxu0
        %1987 = vdwg.mxu0
        %1988 = vrot.lane.b32.xlu0 %v1757, 112
        %v1989 = vpop.permute.xlu0 %1988
        %1990 = vrot.lane.b32.xlu0 %v1758, 80
        %v1991 = vpop.permute.xlu0 %1990
        %v1993 = vsel %vm1762, %v1989, 0
        %v1996 = vsel %vm1762, %v1991, 0
        %1998 = vmatprep.subr.bf16.mxu0 0
        %1999 = vmatpush1.bf16.xpose.msra.mxu0 %v1996
        %2000 = vmatprep.subr.bf16.mxu0 0
        %2001 = vmatpush1.bf16.xpose.msra.mxu0 0
        %2002 = vmatprep.subr.bf16.mxu0 0
        %2003 = vmatpush1.bf16.xpose.msra.mxu0 0
        %2004 = vmatprep.subr.bf16.mxu0 0
        %2005 = vmatpush1.bf16.xpose.msra.mxu0 0
        %2006 = vmatprep.subr.bf16.mxu0 0
        %2007 = vmatpush1.bf16.xpose.msra.mxu0 0
        %2008 = vmatprep.subr.bf16.mxu0 0
        %2009 = vmatpush1.bf16.xpose.msra.mxu0 0
        %2010 = vmatprep.subr.bf16.mxu0 0
        %2011 = vmatpush1.bf16.xpose.msra.mxu0 0
        %2012 = vmatprep.subr.bf16.mxu0 0
        %2013 = vmatpush1.bf16.xpose.msra.mxu0 0
        %2014 = vmatprep.subr.bf16.mxu0 0
        %2015 = vmatpush1.bf16.xpose.msra.mxu0 0
        %2016 = vmatprep.subr.bf16.mxu0 0
        %2017 = vmatpush1.bf16.xpose.msra.mxu0 0
        %2018 = vmatprep.subr.bf16.mxu0 0
        %2019 = vmatpush1.bf16.xpose.msra.mxu0 0
        %2020 = vmatprep.subr.bf16.mxu0 0
        %2021 = vmatpush1.bf16.xpose.msra.mxu0 0
        %2022 = vmatprep.subr.bf16.mxu0 0
        %2023 = vmatpush1.bf16.xpose.msra.mxu0 0
        %2024 = vmatprep.subr.bf16.mxu0 0
        %2025 = vmatpush1.bf16.xpose.msra.mxu0 0
        %2026 = vmatprep.subr.bf16.mxu0 0
        %2027 = vmatpush1.bf16.xpose.msra.mxu0 0
        %2028 = vmatprep.subr.bf16.mxu0 0
        %2029 = vmatpush1.bf16.xpose.msra.mxu0 0
        %2030 = vmatprep.mubr.bf16.mxu0 0
        %2031 = vmatmul.mubr.bf16.gmra.mrb[0].mxu0 %v1993
        %v2032 = vpop.f32.mrb[0].mxu0
        %v2033 = vadd.f32 0.0, %v2032
        %v2034 = vpop.f32.mrb[0].mxu0
        %v2035 = vpop.f32.mrb[0].mxu0
        %v2036 = vpop.f32.mrb[0].mxu0
        %2037 = vdwg.mxu0
        %v2038 = vsel %vm1467, %v2033, -1e+30
        %v2039 = vsel %vm1810, %v2038, -inf
        %2040 = vmax.xlane.f32.xlu0 %v2039
        %v2041 = vpop.xlane.xlu0 %2040
        %v2042 = vsub.f32 %v2038, %v2041
        %v2043 = vmul.f32 %v2042, 1.442695
        %v2044 = vpow.pop %v2043
        %v2045 = vsel %vm1810, %v2044, 0.0
        %2046 = vadd.xlane.f32.xlu0 %v2045
        %v2047 = vpop.xlane.xlu0 %2046
        %v2048 = vrcp.pop %v2047
        %v2049 = vmul.f32 %v2044, %v2048
        %v2050 = vpack.c.bf16 %v2049, %v2049
        %2051 = vrot.lane.b32.xlu0 %v1758, 48
        %v2052 = vpop.permute.xlu0 %2051
        %v2054 = vsel %vm1825, %v2050, 0
        %v2057 = vand.u32 %v2052, %v1832
        %2059 = vmatprep.subr.bf16.mxu0 0
        %2060 = vmatpush1.bf16.msra.mxu0 %v2057
        %2061 = vmatprep.subr.bf16.mxu0 0
        %2062 = vmatpush1.bf16.msra.mxu0 0
        %2063 = vmatprep.subr.bf16.mxu0 0
        %2064 = vmatpush1.bf16.msra.mxu0 0
        %2065 = vmatprep.subr.bf16.mxu0 0
        %2066 = vmatpush1.bf16.msra.mxu0 0
        %2067 = vmatprep.subr.bf16.mxu0 0
        %2068 = vmatpush1.bf16.msra.mxu0 0
        %2069 = vmatprep.subr.bf16.mxu0 0
        %2070 = vmatpush1.bf16.msra.mxu0 0
        %2071 = vmatprep.subr.bf16.mxu0 0
        %2072 = vmatpush1.bf16.msra.mxu0 0
        %2073 = vmatprep.subr.bf16.mxu0 0
        %2074 = vmatpush1.bf16.msra.mxu0 0
        %2075 = vmatprep.subr.bf16.mxu0 0
        %2076 = vmatpush1.bf16.msra.mxu0 0
        %2077 = vmatprep.subr.bf16.mxu0 0
        %2078 = vmatpush1.bf16.msra.mxu0 0
        %2079 = vmatprep.subr.bf16.mxu0 0
        %2080 = vmatpush1.bf16.msra.mxu0 0
        %2081 = vmatprep.subr.bf16.mxu0 0
        %2082 = vmatpush1.bf16.msra.mxu0 0
        %2083 = vmatprep.subr.bf16.mxu0 0
        %2084 = vmatpush1.bf16.msra.mxu0 0
        %2085 = vmatprep.subr.bf16.mxu0 0
        %2086 = vmatpush1.bf16.msra.mxu0 0
        %2087 = vmatprep.subr.bf16.mxu0 0
        %2088 = vmatpush1.bf16.msra.mxu0 0
        %2089 = vmatprep.subr.bf16.mxu0 0
        %2090 = vmatpush1.bf16.msra.mxu0 0
        %2091 = vmatprep.mubr.bf16.mxu0 0
        %2092 = vmatmul.mubr.bf16.gmra.mrb[0].mxu0 %v2054
        %v2093 = vpop.f32.mrb[0].mxu0
        %v2094 = vadd.f32 0.0, %v2093
        %v2095 = vpop.f32.mrb[0].mxu0
        %v2096 = vpop.f32.mrb[0].mxu0
        %v2097 = vpop.f32.mrb[0].mxu0
        %2098 = vdwg.mxu0
        %2099 = vrot.lane.b32.xlu0 %v1757, 104
        %v2100 = vpop.permute.xlu0 %2099
        %2101 = vrot.lane.b32.xlu0 %v1758, 72
        %v2102 = vpop.permute.xlu0 %2101
        %v2104 = vsel %vm1762, %v2100, 0
        %v2107 = vsel %vm1762, %v2102, 0
        %2109 = vmatprep.subr.bf16.mxu0 0
        %2110 = vmatpush1.bf16.xpose.msra.mxu0 %v2107
        %2111 = vmatprep.subr.bf16.mxu0 0
        %2112 = vmatpush1.bf16.xpose.msra.mxu0 0
        %2113 = vmatprep.subr.bf16.mxu0 0
        %2114 = vmatpush1.bf16.xpose.msra.mxu0 0
        %2115 = vmatprep.subr.bf16.mxu0 0
        %2116 = vmatpush1.bf16.xpose.msra.mxu0 0
        %2117 = vmatprep.subr.bf16.mxu0 0
        %2118 = vmatpush1.bf16.xpose.msra.mxu0 0
        %2119 = vmatprep.subr.bf16.mxu0 0
        %2120 = vmatpush1.bf16.xpose.msra.mxu0 0
        %2121 = vmatprep.subr.bf16.mxu0 0
        %2122 = vmatpush1.bf16.xpose.msra.mxu0 0
        %2123 = vmatprep.subr.bf16.mxu0 0
        %2124 = vmatpush1.bf16.xpose.msra.mxu0 0
        %2125 = vmatprep.subr.bf16.mxu0 0
        %2126 = vmatpush1.bf16.xpose.msra.mxu0 0
        %2127 = vmatprep.subr.bf16.mxu0 0
        %2128 = vmatpush1.bf16.xpose.msra.mxu0 0
        %2129 = vmatprep.subr.bf16.mxu0 0
        %2130 = vmatpush1.bf16.xpose.msra.mxu0 0
        %2131 = vmatprep.subr.bf16.mxu0 0
        %2132 = vmatpush1.bf16.xpose.msra.mxu0 0
        %2133 = vmatprep.subr.bf16.mxu0 0
        %2134 = vmatpush1.bf16.xpose.msra.mxu0 0
        %2135 = vmatprep.subr.bf16.mxu0 0
        %2136 = vmatpush1.bf16.xpose.msra.mxu0 0
        %2137 = vmatprep.subr.bf16.mxu0 0
        %2138 = vmatpush1.bf16.xpose.msra.mxu0 0
        %2139 = vmatprep.subr.bf16.mxu0 0
        %2140 = vmatpush1.bf16.xpose.msra.mxu0 0
        %2141 = vmatprep.mubr.bf16.mxu0 0
        %2142 = vmatmul.mubr.bf16.gmra.mrb[0].mxu0 %v2104
        %v2143 = vpop.f32.mrb[0].mxu0
        %v2144 = vadd.f32 0.0, %v2143
        %v2145 = vpop.f32.mrb[0].mxu0
        %v2146 = vpop.f32.mrb[0].mxu0
        %v2147 = vpop.f32.mrb[0].mxu0
        %2148 = vdwg.mxu0
        %v2149 = vsel %vm1467, %v2144, -1e+30
        %v2150 = vsel %vm1810, %v2149, -inf
        %2151 = vmax.xlane.f32.xlu0 %v2150
        %v2152 = vpop.xlane.xlu0 %2151
        %v2153 = vsub.f32 %v2149, %v2152
        %v2154 = vmul.f32 %v2153, 1.442695
        %v2155 = vpow.pop %v2154
        %v2156 = vsel %vm1810, %v2155, 0.0
        %2157 = vadd.xlane.f32.xlu0 %v2156
        %v2158 = vpop.xlane.xlu0 %2157
        %v2159 = vrcp.pop %v2158
        %v2160 = vmul.f32 %v2155, %v2159
        %v2161 = vpack.c.bf16 %v2160, %v2160
        %2162 = vrot.lane.b32.xlu0 %v1758, 40
        %v2163 = vpop.permute.xlu0 %2162
        %v2165 = vsel %vm1825, %v2161, 0
        %v2168 = vand.u32 %v2163, %v1832
        %2170 = vmatprep.subr.bf16.mxu0 0
        %2171 = vmatpush1.bf16.msra.mxu0 %v2168
        %2172 = vmatprep.subr.bf16.mxu0 0
        %2173 = vmatpush1.bf16.msra.mxu0 0
        %2174 = vmatprep.subr.bf16.mxu0 0
        %2175 = vmatpush1.bf16.msra.mxu0 0
        %2176 = vmatprep.subr.bf16.mxu0 0
        %2177 = vmatpush1.bf16.msra.mxu0 0
        %2178 = vmatprep.subr.bf16.mxu0 0
        %2179 = vmatpush1.bf16.msra.mxu0 0
        %2180 = vmatprep.subr.bf16.mxu0 0
        %2181 = vmatpush1.bf16.msra.mxu0 0
        %2182 = vmatprep.subr.bf16.mxu0 0
        %2183 = vmatpush1.bf16.msra.mxu0 0
        %2184 = vmatprep.subr.bf16.mxu0 0
        %2185 = vmatpush1.bf16.msra.mxu0 0
        %2186 = vmatprep.subr.bf16.mxu0 0
        %2187 = vmatpush1.bf16.msra.mxu0 0
        %2188 = vmatprep.subr.bf16.mxu0 0
        %2189 = vmatpush1.bf16.msra.mxu0 0
        %2190 = vmatprep.subr.bf16.mxu0 0
        %2191 = vmatpush1.bf16.msra.mxu0 0
        %2192 = vmatprep.subr.bf16.mxu0 0
        %2193 = vmatpush1.bf16.msra.mxu0 0
        %2194 = vmatprep.subr.bf16.mxu0 0
        %2195 = vmatpush1.bf16.msra.mxu0 0
        %2196 = vmatprep.subr.bf16.mxu0 0
        %2197 = vmatpush1.bf16.msra.mxu0 0
        %2198 = vmatprep.subr.bf16.mxu0 0
        %2199 = vmatpush1.bf16.msra.mxu0 0
        %2200 = vmatprep.subr.bf16.mxu0 0
        %2201 = vmatpush1.bf16.msra.mxu0 0
        %2202 = vmatprep.mubr.bf16.mxu0 0
        %2203 = vmatmul.mubr.bf16.gmra.mrb[0].mxu0 %v2165
        %v2204 = vpop.f32.mrb[0].mxu0
        %v2205 = vadd.f32 0.0, %v2204
        %v2206 = vpop.f32.mrb[0].mxu0
        %v2207 = vpop.f32.mrb[0].mxu0
        %v2208 = vpop.f32.mrb[0].mxu0
        %2209 = vdwg.mxu0
        %2211 = vrot.lane.b32.xlu0 %v1983, 8
        %v2212 = vpop.permute.xlu0 %2211
        %2215 = vrot.lane.b32.xlu0 %v2094, 16
        %v2216 = vpop.permute.xlu0 %2215
        %2219 = vrot.lane.b32.xlu0 %v2205, 24
        %v2220 = vpop.permute.xlu0 %2219
        %v2222 = vsel %vm1762, %v1871, %v2212
        %vm2223 = vcmask 130048
        %v2224 = vsel %vm2223, %v2222, %v2216
        %vm2225 = vcmask 195584
        %v2226 = vsel %vm2225, %v2224, %v2220
        %v2227 = vpack.c.bf16 %v2226, %v2226
        %v2228 = vld [vmem:[#allocation22] sm:$0xf]
        %v2229 = vld [vmem:[#allocation22 + $0x4] sm:$0xf]
        %v2230 = vld [vmem:[#allocation22 + $0x8] sm:$0xf]
        %v2231 = vld [vmem:[#allocation22 + $0xc] sm:$0xf]
        %v2232 = vld [vmem:[#allocation24] sm:$0x1]
        %v2234 = vlaneseq
        %v2235 = vshrl.u32 %v2234, 7
        %v2236 = vsub.s32 0, %v2235
        %v2237 = vrot.slane %v2232, %v2236
        %v2243 = vunpack.c.l.b16 %v2228
        %v2244 = vunpack.c.l.b16 %v2229
        %v2245 = vunpack.c.l.b16 %v2230
        %v2246 = vunpack.c.l.b16 %v2231
        %v2247 = vpack.c.b16 %v2244, %v2243
        %v2248 = vpack.c.b16 %v2246, %v2245
        %v2252 = vsel %vm1523, %v2227, 0
        %2254 = vmatprep.subr.bf16.mxu0 0
        %2255 = vmatpush1.bf16.msra.mxu0 %v2247
        %2256 = vmatprep.subr.bf16.mxu0 0
        %2257 = vmatpush1.bf16.msra.mxu0 %v2248
        %2258 = vmatprep.subr.bf16.mxu0 0
        %2259 = vmatpush1.bf16.msra.mxu0 0
        %2260 = vmatprep.subr.bf16.mxu0 0
        %2261 = vmatpush1.bf16.msra.mxu0 0
        %2262 = vmatprep.subr.bf16.mxu0 0
        %2263 = vmatpush1.bf16.msra.mxu0 0
        %2264 = vmatprep.subr.bf16.mxu0 0
        %2265 = vmatpush1.bf16.msra.mxu0 0
        %2266 = vmatprep.subr.bf16.mxu0 0
        %2267 = vmatpush1.bf16.msra.mxu0 0
        %2268 = vmatprep.subr.bf16.mxu0 0
        %2269 = vmatpush1.bf16.msra.mxu0 0
        %2270 = vmatprep.subr.bf16.mxu0 0
        %2271 = vmatpush1.bf16.msra.mxu0 0
        %2272 = vmatprep.subr.bf16.mxu0 0
        %2273 = vmatpush1.bf16.msra.mxu0 0
        %2274 = vmatprep.subr.bf16.mxu0 0
        %2275 = vmatpush1.bf16.msra.mxu0 0
        %2276 = vmatprep.subr.bf16.mxu0 0
        %2277 = vmatpush1.bf16.msra.mxu0 0
        %2278 = vmatprep.subr.bf16.mxu0 0
        %2279 = vmatpush1.bf16.msra.mxu0 0
        %2280 = vmatprep.subr.bf16.mxu0 0
        %2281 = vmatpush1.bf16.msra.mxu0 0
        %2282 = vmatprep.subr.bf16.mxu0 0
        %2283 = vmatpush1.bf16.msra.mxu0 0
        %2284 = vmatprep.subr.bf16.mxu0 0
        %2285 = vmatpush1.bf16.msra.mxu0 0
        %2286 = vmatprep.mubr.bf16.mxu0 0
        %2287 = vmatmul.mubr.bf16.gmra.mrb[0].mxu0 %v2252
        %v2288 = vpop.f32.mrb[0].mxu0
        %v2289 = vadd.f32 %v2237, %v2288
        %v2290 = vpop.f32.mrb[0].mxu0
        %v2291 = vpop.f32.mrb[0].mxu0
        %v2292 = vpop.f32.mrb[0].mxu0
        %2293 = vdwg.mxu0
        %v2294 = vadd.f32 %v1659, %v2289
        %v2295 = vld [vmem:[#allocation25] sm:$0x1]
        %v2296 = vld [vmem:[#allocation27] sm:$0x1]
        %v2297 = vsel %vm1470, %v2294, 0.0
        %2298 = vadd.xlane.f32.xlu0 %v2297
        %v2299 = vpop.xlane.xlu0 %2298
        %v2300 = vmul.f32 %v2299, %v1474
        %v2301 = vsub.f32 %v2294, %v2300
        %v2302 = vmul.f32 %v2301, %v2301
        %v2303 = vsel %vm1470, %v2302, 0.0
        %2304 = vadd.xlane.f32.xlu0 %v2303
        %v2305 = vpop.xlane.xlu0 %2304
        %v2306 = vmul.f32 %v2305, %v1474
        %v2307 = vadd.f32 %v2306, 1e-05
        %v2308 = vrsqrt.pop %v2307
        %v2309 = vmul.f32 %v2301, %v2308
        %v2311 = vlaneseq
        %v2312 = vshrl.u32 %v2311, 7
        %v2313 = vsub.s32 0, %v2312
        %v2314 = vrot.slane %v2295, %v2313
        %v2316 = vmul.f32 %v2309, %v2314
        %v2318 = vlaneseq
        %v2319 = vshrl.u32 %v2318, 7
        %v2320 = vsub.s32 0, %v2319
        %v2321 = vrot.slane %v2296, %v2320
        %v2323 = vadd.f32 %v2316, %v2321
        %v2324 = vpack.c.bf16 %v2323, %v2323
        %v2325 = vld [vmem:[#allocation28] sm:$0xf]
        %v2326 = vld [vmem:[#allocation28 + $0x4] sm:$0xf]
        %v2327 = vld [vmem:[#allocation28 + $0x8] sm:$0xf]
        %v2328 = vld [vmem:[#allocation28 + $0xc] sm:$0xf]
        %v2329 = vld [vmem:[#allocation30] sm:$0x1]
        %v2331 = vlaneseq
        %v2332 = vshrl.u32 %v2331, 7
        %v2333 = vsub.s32 0, %v2332
        %v2334 = vrot.slane %v2329, %v2333
        %v2340 = vunpack.c.l.b16 %v2325
        %v2341 = vunpack.c.l.b16 %v2326
        %v2342 = vunpack.c.l.b16 %v2327
        %v2343 = vunpack.c.l.b16 %v2328
        %v2344 = vpack.c.b16 %v2341, %v2340
        %v2345 = vpack.c.b16 %v2343, %v2342
        %v2349 = vsel %vm1523, %v2324, 0
        %2351 = vmatprep.subr.bf16.mxu0 0
        %2352 = vmatpush1.bf16.msra.mxu0 %v2344
        %2353 = vmatprep.subr.bf16.mxu0 0
        %2354 = vmatpush1.bf16.msra.mxu0 %v2345
        %2355 = vmatprep.subr.bf16.mxu0 0
        %2356 = vmatpush1.bf16.msra.mxu0 0
        %2357 = vmatprep.subr.bf16.mxu0 0
        %2358 = vmatpush1.bf16.msra.mxu0 0
        %2359 = vmatprep.subr.bf16.mxu0 0
        %2360 = vmatpush1.bf16.msra.mxu0 0
        %2361 = vmatprep.subr.bf16.mxu0 0
        %2362 = vmatpush1.bf16.msra.mxu0 0
        %2363 = vmatprep.subr.bf16.mxu0 0
        %2364 = vmatpush1.bf16.msra.mxu0 0
        %2365 = vmatprep.subr.bf16.mxu0 0
        %2366 = vmatpush1.bf16.msra.mxu0 0
        %2367 = vmatprep.subr.bf16.mxu0 0
        %2368 = vmatpush1.bf16.msra.mxu0 0
        %2369 = vmatprep.subr.bf16.mxu0 0
        %2370 = vmatpush1.bf16.msra.mxu0 0
        %2371 = vmatprep.subr.bf16.mxu0 0
        %2372 = vmatpush1.bf16.msra.mxu0 0
        %2373 = vmatprep.subr.bf16.mxu0 0
        %2374 = vmatpush1.bf16.msra.mxu0 0
        %2375 = vmatprep.subr.bf16.mxu0 0
        %2376 = vmatpush1.bf16.msra.mxu0 0
        %2377 = vmatprep.subr.bf16.mxu0 0
        %2378 = vmatpush1.bf16.msra.mxu0 0
        %2379 = vmatprep.subr.bf16.mxu0 0
        %2380 = vmatpush1.bf16.msra.mxu0 0
        %2381 = vmatprep.subr.bf16.mxu0 0
        %2382 = vmatpush1.bf16.msra.mxu0 0
        %2383 = vmatprep.mubr.bf16.mxu0 0
        %2384 = vmatmul.mubr.bf16.gmra.mrb[0].mxu0 %v2349
        %v2385 = vpop.f32.mrb[0].mxu0
        %v2386 = vadd.f32 %v2334, %v2385
        %v2387 = vpop.f32.mrb[0].mxu0
        %v2388 = vpop.f32.mrb[0].mxu0
        %v2389 = vpop.f32.mrb[0].mxu0
        %2390 = vdwg.mxu0
        %v2391 = vld [vmem:[#allocation31] sm:$0xf]
        %v2392 = vld [vmem:[#allocation31 + $0x4] sm:$0xf]
        %v2393 = vld [vmem:[#allocation31 + $0x8] sm:$0xf]
        %v2394 = vld [vmem:[#allocation31 + $0xc] sm:$0xf]
        %v2395 = vld [vmem:[#allocation33] sm:$0x1]
        %v2397 = vlaneseq
        %v2398 = vshrl.u32 %v2397, 7
        %v2399 = vsub.s32 0, %v2398
        %v2400 = vrot.slane %v2395, %v2399
        %v2406 = vunpack.c.l.b16 %v2391
        %v2407 = vunpack.c.l.b16 %v2392
        %v2408 = vunpack.c.l.b16 %v2393
        %v2409 = vunpack.c.l.b16 %v2394
        %v2410 = vpack.c.b16 %v2407, %v2406
        %v2411 = vpack.c.b16 %v2409, %v2408
        %2414 = vmatprep.subr.bf16.mxu0 0
        %2415 = vmatpush1.bf16.msra.mxu0 %v2410
        %2416 = vmatprep.subr.bf16.mxu0 0
        %2417 = vmatpush1.bf16.msra.mxu0 %v2411
        %2418 = vmatprep.subr.bf16.mxu0 0
        %2419 = vmatpush1.bf16.msra.mxu0 0
        %2420 = vmatprep.subr.bf16.mxu0 0
        %2421 = vmatpush1.bf16.msra.mxu0 0
        %2422 = vmatprep.subr.bf16.mxu0 0
        %2423 = vmatpush1.bf16.msra.mxu0 0
        %2424 = vmatprep.subr.bf16.mxu0 0
        %2425 = vmatpush1.bf16.msra.mxu0 0
        %2426 = vmatprep.subr.bf16.mxu0 0
        %2427 = vmatpush1.bf16.msra.mxu0 0
        %2428 = vmatprep.subr.bf16.mxu0 0
        %2429 = vmatpush1.bf16.msra.mxu0 0
        %2430 = vmatprep.subr.bf16.mxu0 0
        %2431 = vmatpush1.bf16.msra.mxu0 0
        %2432 = vmatprep.subr.bf16.mxu0 0
        %2433 = vmatpush1.bf16.msra.mxu0 0
        %2434 = vmatprep.subr.bf16.mxu0 0
        %2435 = vmatpush1.bf16.msra.mxu0 0
        %2436 = vmatprep.subr.bf16.mxu0 0
        %2437 = vmatpush1.bf16.msra.mxu0 0
        %2438 = vmatprep.subr.bf16.mxu0 0
        %2439 = vmatpush1.bf16.msra.mxu0 0
        %2440 = vmatprep.subr.bf16.mxu0 0
        %2441 = vmatpush1.bf16.msra.mxu0 0
        %2442 = vmatprep.subr.bf16.mxu0 0
        %2443 = vmatpush1.bf16.msra.mxu0 0
        %2444 = vmatprep.subr.bf16.mxu0 0
        %2445 = vmatpush1.bf16.msra.mxu0 0
        %2446 = vmatprep.mubr.bf16.mxu0 0
        %2447 = vmatmul.mubr.bf16.gmra.mrb[0].mxu0 %v2349
        %v2448 = vpop.f32.mrb[0].mxu0
        %v2449 = vadd.f32 %v2400, %v2448
        %v2450 = vpop.f32.mrb[0].mxu0
        %v2451 = vpop.f32.mrb[0].mxu0
        %v2452 = vpop.f32.mrb[0].mxu0
        %2453 = vdwg.mxu0
        %v2454 = vxor.u32 %v2449, 2147483648
        %v2455 = vmul.f32 %v2454, 1.442695
        %v2456 = vpow.pop %v2455
        %v2457 = vadd.f32 %v2456, 1.0
        %v2458 = vrcp.pop %v2457
        %v2459 = vmul.f32 1.0, %v2458
        %v2460 = vmul.f32 %v2386, %v2459
        %v2461 = vld [vmem:[#allocation34 + $0x2] sm:$0x1]
        %v2462 = vlaneseq
        %v2463 = vshrl.u32 %v2462, 7
        %v2464 = vsub.s32 0, %v2463
        %v2465 = vrot.slane %v2461, %v2464
        %v2466 = vmul.f32 %v2460, %v2465
        %vm2467 = vcmp.eq.s32.totalorder %v1465, 2
        %v2468 = vsel %vm2467, 1, 0
        %v2469 = vcvt.s32.f32 %v2468
        %v2471 = vsel %vm1825, %v2469, 0
        %vm2473 = vcmask 1042432
        %v2475 = vsel %vm2473, %v2460, 0
        %2477 = vmatprep.subr.mxu0 0.0
        %2478 = vmatpush1.msra.mxu0 %v2475
        %2479 = vmatprep.subr.mxu0 0.0
        %2480 = vmatpush1.msra.mxu0 0.0
        %2481 = vmatprep.subr.mxu0 0.0
        %2482 = vmatpush1.msra.mxu0 0.0
        %2483 = vmatprep.subr.mxu0 0.0
        %2484 = vmatpush1.msra.mxu0 0.0
        %2485 = vmatprep.subr.mxu0 0.0
        %2486 = vmatpush1.msra.mxu0 0.0
        %2487 = vmatprep.subr.mxu0 0.0
        %2488 = vmatpush1.msra.mxu0 0.0
        %2489 = vmatprep.subr.mxu0 0.0
        %2490 = vmatpush1.msra.mxu0 0.0
        %2491 = vmatprep.subr.mxu0 0.0
        %2492 = vmatpush1.msra.mxu0 0.0
        %2493 = vmatprep.subr.mxu0 0.0
        %2494 = vmatpush1.msra.mxu0 0.0
        %2495 = vmatprep.subr.mxu0 0.0
        %2496 = vmatpush1.msra.mxu0 0.0
        %2497 = vmatprep.subr.mxu0 0.0
        %2498 = vmatpush1.msra.mxu0 0.0
        %2499 = vmatprep.subr.mxu0 0.0
        %2500 = vmatpush1.msra.mxu0 0.0
        %2501 = vmatprep.subr.mxu0 0.0
        %2502 = vmatpush1.msra.mxu0 0.0
        %2503 = vmatprep.subr.mxu0 0.0
        %2504 = vmatpush1.msra.mxu0 0.0
        %2505 = vmatprep.subr.mxu0 0.0
        %2506 = vmatpush1.msra.mxu0 0.0
        %2507 = vmatprep.subr.mxu0 0.0
        %2508 = vmatpush1.msra.mxu0 0.0
        %2509 = vmatprep.subr.mxu0 0.0
        %2510 = vmatpush1.msra.mxu0 0.0
        %2511 = vmatprep.subr.mxu0 0.0
        %2512 = vmatpush1.msra.mxu0 0.0
        %2513 = vmatprep.subr.mxu0 0.0
        %2514 = vmatpush1.msra.mxu0 0.0
        %2515 = vmatprep.subr.mxu0 0.0
        %2516 = vmatpush1.msra.mxu0 0.0
        %2517 = vmatprep.subr.mxu0 0.0
        %2518 = vmatpush1.msra.mxu0 0.0
        %2519 = vmatprep.subr.mxu0 0.0
        %2520 = vmatpush1.msra.mxu0 0.0
        %2521 = vmatprep.subr.mxu0 0.0
        %2522 = vmatpush1.msra.mxu0 0.0
        %2523 = vmatprep.subr.mxu0 0.0
        %2524 = vmatpush1.msra.mxu0 0.0
        %2525 = vmatprep.subr.mxu0 0.0
        %2526 = vmatpush1.msra.mxu0 0.0
        %2527 = vmatprep.subr.mxu0 0.0
        %2528 = vmatpush1.msra.mxu0 0.0
        %2529 = vmatprep.subr.mxu0 0.0
        %2530 = vmatpush1.msra.mxu0 0.0
        %2531 = vmatprep.subr.mxu0 0.0
        %2532 = vmatpush1.msra.mxu0 0.0
        %2533 = vmatprep.subr.mxu0 0.0
        %2534 = vmatpush1.msra.mxu0 0.0
        %2535 = vmatprep.subr.mxu0 0.0
        %2536 = vmatpush1.msra.mxu0 0.0
        %2537 = vmatprep.subr.mxu0 0.0
        %2538 = vmatpush1.msra.mxu0 0.0
        %2539 = vmatprep.subr.mxu0 0.0
        %2540 = vmatpush1.msra.mxu0 0.0
        %2541 = vmatprep.mubr.f32.mxu0 0.0
        %2542 = vmatmul.mubr.f32.gmra.mrb[0].mxu0 %v2471
        %v2543 = vpop.f32.mrb[0].mxu0
        %v2544 = vadd.f32 0.0, %v2543
        %v2545 = vpop.f32.mrb[0].mxu0
        %2546 = vdwg.mxu0
        %v2547 = vld [vmem:[#allocation34] sm:$0x1]
        %v2548 = vlaneseq
        %v2549 = vshrl.u32 %v2548, 7
        %v2550 = vsub.s32 0, %v2549
        %v2551 = vrot.slane %v2547, %v2550
        %v2552 = vmul.f32 %v2544, %v2551
        %v2553 = vadd.f32 %v2466, %v2552
        %vm2554 = vcmp.eq.s32.totalorder %v1465, 1
        %v2555 = vsel %vm2554, 1, 0
        %v2556 = vcvt.s32.f32 %v2555
        %v2558 = vsel %vm1825, %v2556, 0
        %2560 = vmatprep.subr.mxu0 0.0
        %2561 = vmatpush1.msra.mxu0 %v2475
        %2562 = vmatprep.subr.mxu0 0.0
        %2563 = vmatpush1.msra.mxu0 0.0
        %2564 = vmatprep.subr.mxu0 0.0
        %2565 = vmatpush1.msra.mxu0 0.0
        %2566 = vmatprep.subr.mxu0 0.0
        %2567 = vmatpush1.msra.mxu0 0.0
        %2568 = vmatprep.subr.mxu0 0.0
        %2569 = vmatpush1.msra.mxu0 0.0
        %2570 = vmatprep.subr.mxu0 0.0
        %2571 = vmatpush1.msra.mxu0 0.0
        %2572 = vmatprep.subr.mxu0 0.0
        %2573 = vmatpush1.msra.mxu0 0.0
        %2574 = vmatprep.subr.mxu0 0.0
        %2575 = vmatpush1.msra.mxu0 0.0
        %2576 = vmatprep.subr.mxu0 0.0
        %2577 = vmatpush1.msra.mxu0 0.0
        %2578 = vmatprep.subr.mxu0 0.0
        %2579 = vmatpush1.msra.mxu0 0.0
        %2580 = vmatprep.subr.mxu0 0.0
        %2581 = vmatpush1.msra.mxu0 0.0
        %2582 = vmatprep.subr.mxu0 0.0
        %2583 = vmatpush1.msra.mxu0 0.0
        %2584 = vmatprep.subr.mxu0 0.0
        %2585 = vmatpush1.msra.mxu0 0.0
        %2586 = vmatprep.subr.mxu0 0.0
        %2587 = vmatpush1.msra.mxu0 0.0
        %2588 = vmatprep.subr.mxu0 0.0
        %2589 = vmatpush1.msra.mxu0 0.0
        %2590 = vmatprep.subr.mxu0 0.0
        %2591 = vmatpush1.msra.mxu0 0.0
        %2592 = vmatprep.subr.mxu0 0.0
        %2593 = vmatpush1.msra.mxu0 0.0
        %2594 = vmatprep.subr.mxu0 0.0
        %2595 = vmatpush1.msra.mxu0 0.0
        %2596 = vmatprep.subr.mxu0 0.0
        %2597 = vmatpush1.msra.mxu0 0.0
        %2598 = vmatprep.subr.mxu0 0.0
        %2599 = vmatpush1.msra.mxu0 0.0
        %2600 = vmatprep.subr.mxu0 0.0
        %2601 = vmatpush1.msra.mxu0 0.0
        %2602 = vmatprep.subr.mxu0 0.0
        %2603 = vmatpush1.msra.mxu0 0.0
        %2604 = vmatprep.subr.mxu0 0.0
        %2605 = vmatpush1.msra.mxu0 0.0
        %2606 = vmatprep.subr.mxu0 0.0
        %2607 = vmatpush1.msra.mxu0 0.0
        %2608 = vmatprep.subr.mxu0 0.0
        %2609 = vmatpush1.msra.mxu0 0.0
        %2610 = vmatprep.subr.mxu0 0.0
        %2611 = vmatpush1.msra.mxu0 0.0
        %2612 = vmatprep.subr.mxu0 0.0
        %2613 = vmatpush1.msra.mxu0 0.0
        %2614 = vmatprep.subr.mxu0 0.0
        %2615 = vmatpush1.msra.mxu0 0.0
        %2616 = vmatprep.subr.mxu0 0.0
        %2617 = vmatpush1.msra.mxu0 0.0
        %2618 = vmatprep.subr.mxu0 0.0
        %2619 = vmatpush1.msra.mxu0 0.0
        %2620 = vmatprep.subr.mxu0 0.0
        %2621 = vmatpush1.msra.mxu0 0.0
        %2622 = vmatprep.subr.mxu0 0.0
        %2623 = vmatpush1.msra.mxu0 0.0
        %2624 = vmatprep.mubr.f32.mxu0 0.0
        %2625 = vmatmul.mubr.f32.gmra.mrb[0].mxu0 %v2558
        %v2626 = vpop.f32.mrb[0].mxu0
        %v2627 = vadd.f32 0.0, %v2626
        %v2628 = vpop.f32.mrb[0].mxu0
        %2629 = vdwg.mxu0
        %v2630 = vld [vmem:[#allocation34 + $0x1] sm:$0x1]
        %v2631 = vlaneseq
        %v2632 = vshrl.u32 %v2631, 7
        %v2633 = vsub.s32 0, %v2632
        %v2634 = vrot.slane %v2630, %v2633
        %v2635 = vmul.f32 %v2627, %v2634
        %v2636 = vadd.f32 %v2553, %v2635
        %v2637 = vld [vmem:[#allocation36] sm:$0x1]
        %v2639 = vlaneseq
        %v2640 = vshrl.u32 %v2639, 7
        %v2641 = vsub.s32 0, %v2640
        %v2642 = vrot.slane %v2637, %v2641
        %v2644 = vadd.f32 %v2636, %v2642
        %v2645 = vld [vmem:[#allocation37] sm:$0x1]
        %v2646 = vld [vmem:[#allocation39] sm:$0x1]
        %v2647 = vsel %vm1470, %v2644, 0.0
        %2648 = vadd.xlane.f32.xlu0 %v2647
        %v2649 = vpop.xlane.xlu0 %2648
        %v2650 = vmul.f32 %v2649, %v1474
        %v2651 = vsub.f32 %v2644, %v2650
        %v2652 = vmul.f32 %v2651, %v2651
        %v2653 = vsel %vm1470, %v2652, 0.0
        %2654 = vadd.xlane.f32.xlu0 %v2653
        %v2655 = vpop.xlane.xlu0 %2654
        %v2656 = vmul.f32 %v2655, %v1474
        %v2657 = vadd.f32 %v2656, 1e-05
        %v2658 = vrsqrt.pop %v2657
        %v2659 = vmul.f32 %v2651, %v2658
        %v2661 = vlaneseq
        %v2662 = vshrl.u32 %v2661, 7
        %v2663 = vsub.s32 0, %v2662
        %v2664 = vrot.slane %v2645, %v2663
        %v2666 = vmul.f32 %v2659, %v2664
        %v2668 = vlaneseq
        %v2669 = vshrl.u32 %v2668, 7
        %v2670 = vsub.s32 0, %v2669
        %v2671 = vrot.slane %v2646, %v2670
        %v2673 = vadd.f32 %v2666, %v2671
        %v2674 = vxor.u32 %v2673, 2147483648
        %v2675 = vmul.f32 %v2674, 1.442695
        %v2676 = vpow.pop %v2675
        %v2677 = vadd.f32 %v2676, 1.0
        %v2678 = vrcp.pop %v2677
        %v2679 = vmul.f32 1.0, %v2678
        %v2680 = vmul.f32 %v2673, %v2679
        %v2681 = vpack.c.bf16 %v2680, %v2680
        %v2682 = vld [vmem:[#allocation40] sm:$0xf]
        %v2683 = vld [vmem:[#allocation40 + $0x4] sm:$0xf]
        %v2684 = vld [vmem:[#allocation40 + $0x8] sm:$0xf]
        %v2685 = vld [vmem:[#allocation40 + $0xc] sm:$0xf]
        %v2686 = vld [vmem:[#allocation42] sm:$0x1]
        %v2688 = vlaneseq
        %v2689 = vshrl.u32 %v2688, 7
        %v2690 = vsub.s32 0, %v2689
        %v2691 = vrot.slane %v2686, %v2690
        %v2697 = vunpack.c.l.b16 %v2682
        %v2698 = vunpack.c.l.b16 %v2683
        %v2699 = vunpack.c.l.b16 %v2684
        %v2700 = vunpack.c.l.b16 %v2685
        %v2701 = vpack.c.b16 %v2698, %v2697
        %v2702 = vpack.c.b16 %v2700, %v2699
        %v2706 = vsel %vm1523, %v2681, 0
        %2708 = vmatprep.subr.bf16.mxu0 0
        %2709 = vmatpush1.bf16.msra.mxu0 %v2701
        %2710 = vmatprep.subr.bf16.mxu0 0
        %2711 = vmatpush1.bf16.msra.mxu0 %v2702
        %2712 = vmatprep.subr.bf16.mxu0 0
        %2713 = vmatpush1.bf16.msra.mxu0 0
        %2714 = vmatprep.subr.bf16.mxu0 0
        %2715 = vmatpush1.bf16.msra.mxu0 0
        %2716 = vmatprep.subr.bf16.mxu0 0
        %2717 = vmatpush1.bf16.msra.mxu0 0
        %2718 = vmatprep.subr.bf16.mxu0 0
        %2719 = vmatpush1.bf16.msra.mxu0 0
        %2720 = vmatprep.subr.bf16.mxu0 0
        %2721 = vmatpush1.bf16.msra.mxu0 0
        %2722 = vmatprep.subr.bf16.mxu0 0
        %2723 = vmatpush1.bf16.msra.mxu0 0
        %2724 = vmatprep.subr.bf16.mxu0 0
        %2725 = vmatpush1.bf16.msra.mxu0 0
        %2726 = vmatprep.subr.bf16.mxu0 0
        %2727 = vmatpush1.bf16.msra.mxu0 0
        %2728 = vmatprep.subr.bf16.mxu0 0
        %2729 = vmatpush1.bf16.msra.mxu0 0
        %2730 = vmatprep.subr.bf16.mxu0 0
        %2731 = vmatpush1.bf16.msra.mxu0 0
        %2732 = vmatprep.subr.bf16.mxu0 0
        %2733 = vmatpush1.bf16.msra.mxu0 0
        %2734 = vmatprep.subr.bf16.mxu0 0
        %2735 = vmatpush1.bf16.msra.mxu0 0
        %2736 = vmatprep.subr.bf16.mxu0 0
        %2737 = vmatpush1.bf16.msra.mxu0 0
        %2738 = vmatprep.subr.bf16.mxu0 0
        %2739 = vmatpush1.bf16.msra.mxu0 0
        %2740 = vmatprep.mubr.bf16.mxu0 0
        %2741 = vmatmul.mubr.bf16.gmra.mrb[0].mxu0 %v2706
        %v2742 = vpop.f32.mrb[0].mxu0
        %v2743 = vadd.f32 %v2691, %v2742
        %v2744 = vpop.f32.mrb[0].mxu0
        %v2745 = vpop.f32.mrb[0].mxu0
        %v2746 = vpop.f32.mrb[0].mxu0
        %2747 = vdwg.mxu0
        %v2748 = vadd.f32 %v2294, %v2743
        %v2749 = vld [vmem:[#allocation43] sm:$0x1]
        %v2750 = vld [vmem:[#allocation45] sm:$0x1]
        %v2751 = vsel %vm1470, %v2748, 0.0
        %2752 = vadd.xlane.f32.xlu0 %v2751
        %v2753 = vpop.xlane.xlu0 %2752
        %v2754 = vmul.f32 %v2753, %v1474
        %v2755 = vsub.f32 %v2748, %v2754
        %v2756 = vmul.f32 %v2755, %v2755
        %v2757 = vsel %vm1470, %v2756, 0.0
        %2758 = vadd.xlane.f32.xlu0 %v2757
        %v2759 = vpop.xlane.xlu0 %2758
        %v2760 = vmul.f32 %v2759, %v1474
        %v2761 = vadd.f32 %v2760, 1e-05
        %v2762 = vrsqrt.pop %v2761
        %v2763 = vmul.f32 %v2755, %v2762
        %v2765 = vlaneseq
        %v2766 = vshrl.u32 %v2765, 7
        %v2767 = vsub.s32 0, %v2766
        %v2768 = vrot.slane %v2749, %v2767
        %v2770 = vmul.f32 %v2763, %v2768
        %v2772 = vlaneseq
        %v2773 = vshrl.u32 %v2772, 7
        %v2774 = vsub.s32 0, %v2773
        %v2775 = vrot.slane %v2750, %v2774
        %v2777 = vadd.f32 %v2770, %v2775
        %v2778 = vpack.c.bf16 %v2777, %v2777
        %v2779 = vld [vmem:[#allocation46] sm:$0xf]
        %v2780 = vld [vmem:[#allocation46 + $0x4] sm:$0xf]
        %v2781 = vld [vmem:[#allocation46 + $0x8] sm:$0xf]
        %v2782 = vld [vmem:[#allocation46 + $0xc] sm:$0xf]
        %v2783 = vld [vmem:[#allocation48] sm:$0x1]
        %v2785 = vlaneseq
        %v2786 = vshrl.u32 %v2785, 7
        %v2787 = vsub.s32 0, %v2786
        %v2788 = vrot.slane %v2783, %v2787
        %v2794 = vunpack.c.l.b16 %v2779
        %v2795 = vunpack.c.l.b16 %v2780
        %v2796 = vunpack.c.l.b16 %v2781
        %v2797 = vunpack.c.l.b16 %v2782
        %v2798 = vpack.c.b16 %v2795, %v2794
        %v2799 = vpack.c.b16 %v2797, %v2796
        %v2803 = vsel %vm1523, %v2778, 0
        %2805 = vmatprep.subr.bf16.mxu0 0
        %2806 = vmatpush1.bf16.msra.mxu0 %v2798
        %2807 = vmatprep.subr.bf16.mxu0 0
        %2808 = vmatpush1.bf16.msra.mxu0 %v2799
        %2809 = vmatprep.subr.bf16.mxu0 0
        %2810 = vmatpush1.bf16.msra.mxu0 0
        %2811 = vmatprep.subr.bf16.mxu0 0
        %2812 = vmatpush1.bf16.msra.mxu0 0
        %2813 = vmatprep.subr.bf16.mxu0 0
        %2814 = vmatpush1.bf16.msra.mxu0 0
        %2815 = vmatprep.subr.bf16.mxu0 0
        %2816 = vmatpush1.bf16.msra.mxu0 0
        %2817 = vmatprep.subr.bf16.mxu0 0
        %2818 = vmatpush1.bf16.msra.mxu0 0
        %2819 = vmatprep.subr.bf16.mxu0 0
        %2820 = vmatpush1.bf16.msra.mxu0 0
        %2821 = vmatprep.subr.bf16.mxu0 0
        %2822 = vmatpush1.bf16.msra.mxu0 0
        %2823 = vmatprep.subr.bf16.mxu0 0
        %2824 = vmatpush1.bf16.msra.mxu0 0
        %2825 = vmatprep.subr.bf16.mxu0 0
        %2826 = vmatpush1.bf16.msra.mxu0 0
        %2827 = vmatprep.subr.bf16.mxu0 0
        %2828 = vmatpush1.bf16.msra.mxu0 0
        %2829 = vmatprep.subr.bf16.mxu0 0
        %2830 = vmatpush1.bf16.msra.mxu0 0
        %2831 = vmatprep.subr.bf16.mxu0 0
        %2832 = vmatpush1.bf16.msra.mxu0 0
        %2833 = vmatprep.subr.bf16.mxu0 0
        %2834 = vmatpush1.bf16.msra.mxu0 0
        %2835 = vmatprep.subr.bf16.mxu0 0
        %2836 = vmatpush1.bf16.msra.mxu0 0
        %2837 = vmatprep.mubr.bf16.mxu0 0
        %2838 = vmatmul.mubr.bf16.gmra.mrb[0].mxu0 %v2803
        %v2839 = vpop.f32.mrb[0].mxu0
        %v2840 = vadd.f32 %v2788, %v2839
        %v2841 = vpop.f32.mrb[0].mxu0
        %v2842 = vpop.f32.mrb[0].mxu0
        %v2843 = vpop.f32.mrb[0].mxu0
        %2844 = vdwg.mxu0
        %v2845 = vxor.u32 %v2840, 2147483648
        %v2846 = vmul.f32 %v2845, 1.442695
        %v2847 = vpow.pop %v2846
        %v2848 = vadd.f32 %v2847, 1.0
        %v2849 = vrcp.pop %v2848
        %v2850 = vmul.f32 1.0, %v2849
        %v2851 = vmul.f32 %v2840, %v2850
        %v2852 = vpack.c.bf16 %v2851, %v2851
        %v2853 = vld [vmem:[#allocation49] sm:$0xf]
        %v2854 = vld [vmem:[#allocation49 + $0x4] sm:$0xf]
        %v2855 = vld [vmem:[#allocation49 + $0x8] sm:$0xf]
        %v2856 = vld [vmem:[#allocation49 + $0xc] sm:$0xf]
        %v2857 = vld [vmem:[#allocation49 + $0x10] sm:$0xf]
        %v2858 = vld [vmem:[#allocation49 + $0x14] sm:$0xf]
        %v2859 = vld [vmem:[#allocation49 + $0x18] sm:$0xf]
        %v2860 = vld [vmem:[#allocation49 + $0x1c] sm:$0xf]
        %v2861 = vld [vmem:[#allocation51] sm:$0x1]
        %v2863 = vlaneseq
        %v2864 = vshrl.u32 %v2863, 7
        %v2865 = vsub.s32 0, %v2864
        %v2866 = vrot.slane %v2861, %v2865
        %v2876 = vunpack.c.l.b16 %v2853
        %v2877 = vunpack.c.l.b16 %v2854
        %v2878 = vunpack.c.l.b16 %v2855
        %v2879 = vunpack.c.l.b16 %v2856
        %v2880 = vunpack.c.l.b16 %v2857
        %v2881 = vunpack.c.l.b16 %v2858
        %v2882 = vunpack.c.l.b16 %v2859
        %v2883 = vunpack.c.l.b16 %v2860
        %v2884 = vpack.c.b16 %v2877, %v2876
        %v2885 = vpack.c.b16 %v2879, %v2878
        %v2886 = vpack.c.b16 %v2881, %v2880
        %v2887 = vpack.c.b16 %v2883, %v2882
        %v2893 = vsel %vm1614, %v2852, 0
        %2895 = vmatprep.subr.bf16.mxu0 0
        %2896 = vmatpush1.bf16.msra.mxu0 %v2884
        %2897 = vmatprep.subr.bf16.mxu0 0
        %2898 = vmatpush1.bf16.msra.mxu0 %v2885
        %2899 = vmatprep.subr.bf16.mxu0 0
        %2900 = vmatpush1.bf16.msra.mxu0 %v2886
        %2901 = vmatprep.subr.bf16.mxu0 0
        %2902 = vmatpush1.bf16.msra.mxu0 %v2887
        %2903 = vmatprep.subr.bf16.mxu0 0
        %2904 = vmatpush1.bf16.msra.mxu0 0
        %2905 = vmatprep.subr.bf16.mxu0 0
        %2906 = vmatpush1.bf16.msra.mxu0 0
        %2907 = vmatprep.subr.bf16.mxu0 0
        %2908 = vmatpush1.bf16.msra.mxu0 0
        %2909 = vmatprep.subr.bf16.mxu0 0
        %2910 = vmatpush1.bf16.msra.mxu0 0
        %2911 = vmatprep.subr.bf16.mxu0 0
        %2912 = vmatpush1.bf16.msra.mxu0 0
        %2913 = vmatprep.subr.bf16.mxu0 0
        %2914 = vmatpush1.bf16.msra.mxu0 0
        %2915 = vmatprep.subr.bf16.mxu0 0
        %2916 = vmatpush1.bf16.msra.mxu0 0
        %2917 = vmatprep.subr.bf16.mxu0 0
        %2918 = vmatpush1.bf16.msra.mxu0 0
        %2919 = vmatprep.subr.bf16.mxu0 0
        %2920 = vmatpush1.bf16.msra.mxu0 0
        %2921 = vmatprep.subr.bf16.mxu0 0
        %2922 = vmatpush1.bf16.msra.mxu0 0
        %2923 = vmatprep.subr.bf16.mxu0 0
        %2924 = vmatpush1.bf16.msra.mxu0 0
        %2925 = vmatprep.subr.bf16.mxu0 0
        %2926 = vmatpush1.bf16.msra.mxu0 0
        %2927 = vmatprep.mubr.bf16.mxu0 0
        %2928 = vmatmul.mubr.bf16.gmra.mrb[0].mxu0 %v2893
        %v2929 = vpop.f32.mrb[0].mxu0
        %v2930 = vadd.f32 %v2866, %v2929
        %v2931 = vpop.f32.mrb[0].mxu0
        %v2932 = vpop.f32.mrb[0].mxu0
        %v2933 = vpop.f32.mrb[0].mxu0
        %2934 = vdwg.mxu0
        %v2935 = vmul.f32 %v2930, 0.5
        %v2936 = vadd.f32 %v2748, %v2935
        %v2937 = vld [vmem:[#allocation52] sm:$0x1]
        %v2938 = vld [vmem:[#allocation54] sm:$0x1]
        %v2939 = vsel %vm1470, %v2936, 0.0
        %2940 = vadd.xlane.f32.xlu0 %v2939
        %v2941 = vpop.xlane.xlu0 %2940
        %v2942 = vmul.f32 %v2941, %v1474
        %v2943 = vsub.f32 %v2936, %v2942
        %v2944 = vmul.f32 %v2943, %v2943
        %v2945 = vsel %vm1470, %v2944, 0.0
        %2946 = vadd.xlane.f32.xlu0 %v2945
        %v2947 = vpop.xlane.xlu0 %2946
        %v2948 = vmul.f32 %v2947, %v1474
        %v2949 = vadd.f32 %v2948, 1e-05
        %v2950 = vrsqrt.pop %v2949
        %v2951 = vmul.f32 %v2943, %v2950
        %v2953 = vlaneseq
        %v2954 = vshrl.u32 %v2953, 7
        %v2955 = vsub.s32 0, %v2954
        %v2956 = vrot.slane %v2937, %v2955
        %v2958 = vmul.f32 %v2951, %v2956
        %v2960 = vlaneseq
        %v2961 = vshrl.u32 %v2960, 7
        %v2962 = vsub.s32 0, %v2961
        %v2963 = vrot.slane %v2938, %v2962
        %v2965 = vadd.f32 %v2958, %v2963
        %2966 = vst.msk [vmem:[%s1453] sm:$0x7] %vm1470, %v2965
        %s2967 = sand.u32 %s812, 1
        %s2968 = scalar_lea.sflag [#allocation6], %s2967
        %s2969 = sand.u32 %s812, 1
        %s2970 = smul.addr %s2969, 4
        %s2971 = scalar_lea.vmem [#allocation55], %s2970
        // Predicated region
        $region285: #{_lambda_.10} parent=151 // pred_check
          %p2972 = pneg %p822
        $region286: #{_lambda_.10} parent=151 // pred_check_branch
          %2974 = sbr.rel (%p2972) target = $region288
        $region287: #{_lambda_.10} parent=151 // pred_region
          %s2976 = ssub.s32 64, 64
          %2977 = vsyncadd %s2968, %s2976
          %s2978 = smul.addr %s106, 64
          %s2979 = scalar_lea.hbm %s69, %s2978
          %s2981 = sshll.u32 %s2971, 4
          %s2982 = int_to_ptr.vmem [resolvable:$true] %s2981
          %2984 = dma.vmem_to_hbm [thread:$0]  %s2982, 64, %s2979, %s2968
        $region288: #{_lambda_.10} parent=151 // pred_fallthru
          _
      $region152: #{_lambda_.10} parent=5 // pred_fallthru
        _
      %p2985 = scmp.le.s32.totalorder 2, %s101
      // Predicated region
      $region289: #{_lambda_.10} parent=5 // pred_check
        %p2986 = pneg %p2985
      $region290: #{_lambda_.10} parent=5 // pred_check_branch
        %2988 = sbr.rel (%p2986) target = $region292
      $region291: #{_lambda_.10} parent=5 // pred_region
        %s2989 = ssub.s32 %s101, 2
        // Predicated region
        $region293: #{_lambda_.10} parent=291 // pred_check
          %p2990 = pneg %p828
        $region294: #{_lambda_.10} parent=291 // pred_check_branch
          %2992 = sbr.rel (%p2990) target = $region296
        $region295: #{_lambda_.10} parent=291 // pred_region
          %s2993 = sand.u32 %s813, 1
          %s2994 = scalar_lea.sflag [#allocation6], %s2993
          %s2995 = sand.u32 %s813, 1
          %s2996 = smul.addr %s2995, 4
          %s2997 = scalar_lea.vmem [#allocation55], %s2996
          %2998 = dma.done %s2994, 64
        $region296: #{_lambda_.10} parent=291 // pred_fallthru
          _
      $region292: #{_lambda_.10} parent=5 // pred_fallthru
        _
    $region6: #{_lambda_.10} parent=1 // loop_footer
      %s105 = sadd.s32 1, %s101
    $region7: #{_lambda_.10} parent=1 // loop_footer_branch
      %100 = sbr.rel target = $region3
    $region8: #{_lambda_.10} parent=1 // loop_exit
      _
    %2999 = vsyncpa [#allocation5], 1
    %s3000 = scalar_lea.sflag [#allocation5], 1
    %3001 = vsyncpa %s3000, 1
    %3002 = vsyncpa [#allocation8], 1
    %3003 = vsyncpa [#allocation11], 1
    %3004 = vsyncpa [#allocation14], 1
    %3005 = vsyncpa [#allocation17], 1
    %3006 = vsyncpa [#allocation20], 1
    %3007 = vsyncpa [#allocation23], 1
    %3008 = vsyncpa [#allocation26], 1
    %3009 = vsyncpa [#allocation29], 1
    %3010 = vsyncpa [#allocation32], 1
    %3011 = vsyncpa [#allocation35], 1
    %3012 = vsyncpa [#allocation38], 1
    %3013 = vsyncpa [#allocation41], 1
    %3014 = vsyncpa [#allocation44], 1
    %3015 = vsyncpa [#allocation47], 1
    %3016 = vsyncpa [#allocation50], 1
    %3017 = vsyncpa [#allocation53], 1
    %3018 = vsyncpa [#allocation6], 1
    %s3019 = scalar_lea.sflag [#allocation6], 1
    %3020 = vsyncpa %s3019, 1

</llo_original>
